<compile_context>
chip_gen: v7x
topology: tpu7x:2x2x1
jax: 0.10.0
libtpu: 0.0.40
codegen_flags: <defaults>
</compile_context>

<pallas_src>
import jax
import jax.numpy as jnp
import numpy as np
from jax import lax
from jax.experimental import pallas as pl
from jax.experimental.pallas import tpu as pltpu

HIDDEN = 20
INPUT_SIZE = 1
NUM_LAYERS = 5
OUTPUT_SIZE = 1
OUT_PAD = 128  # lane-dense fc output; real column 0 is sliced out in the wrapper


def rnn_kernel(x_ref, wih0_ref, wih_ref, whh_ref, b_ref, fcw_ref, fcb_ref,
               out_ref, seq_buf):
    """Whole multi-layer RNN recurrence + final Linear in one kernel.

    x_ref:    (T*Bp, H)   input value replicated along H (time-major, batch-padded)
    wih0_ref: (1, H)      layer-0 input weight row (W_ih0[:, 0], input_size == 1)
    wih_ref:  (L-1, H, H) layers 1..L-1 input-to-hidden weights, transposed (x @ W)
    whh_ref:  (L, H, H)   hidden-to-hidden weights, transposed
    b_ref:    (L, 1, H)   fused biases b_ih + b_hh
    fcw_ref:  (H, OUT_PAD) fc weight, transposed and lane-padded
    fcb_ref:  (1, OUT_PAD) fc bias, lane-padded
    out_ref:  (Bp, OUT_PAD)
    seq_buf:  (T*Bp, H)   scratch: running per-layer sequence (proj -> hidden)
    """
    TB, H = seq_buf.shape
    Bp = out_ref.shape[0]
    T = TB // Bp
    L = whh_ref.shape[0]

    # Layer 0: input_size == 1, so the input projection is an elementwise
    # broadcast multiply done for the whole sequence at once (VPU only).
    # Fused bias is added here, outside the serial time loop.
    seq_buf[...] = x_ref[...] * wih0_ref[...] + b_ref[0]

    for l in range(L):  # static, small layer count -> unrolled at trace time
        whh = whh_ref[l]  # (H, H), hoisted out of the time loop

        if l > 0:
            # Hoisted input-to-hidden projection: one batched matmul over all
            # T timesteps, instead of T tiny matmuls on the serial chain.
            seq_buf[...] = (jnp.dot(seq_buf[...], wih_ref[l - 1],
                                    preferred_element_type=jnp.float32)
                            + b_ref[l])

        # Serial recurrence: only one matmul per step on the dependent chain.
        # Hidden state lives in the loop carry (vregs), not VMEM.
        def step(t, h):
            start = pl.multiple_of(t * Bp, 8)
            h = jnp.tanh(seq_buf[pl.ds(start, Bp), :]
                         + jnp.dot(h, whh, preferred_element_type=jnp.float32))
            seq_buf[pl.ds(start, Bp), :] = h  # in place: next layer's input
            return h

        lax.fori_loop(0, T, step, jnp.zeros((Bp, H), jnp.float32), unroll=True)

    # Final Linear on the last timestep of the top layer (lane-dense output).
    last = seq_buf[pl.ds((T - 1) * Bp, Bp), :]
    out_ref[...] = (jnp.dot(last, fcw_ref[...], preferred_element_type=jnp.float32)
                    + fcb_ref[...])
    # TODO(synk): for large B, add a batch-parallel grid axis (v7x megacore) and
    # optionally a (layer, time) wavefront to overlap independent cell updates.


def rnn_forward(x, params):
    """x: (B, T, input_size) float32 -> (B, output_size) float32."""
    wih0, wih_rest, whh, b, fcw_pad, fcb_pad = params
    B, T, _ = x.shape
    Bp = ((B + 7) // 8) * 8                      # pad batch to the f32 sublane tile

    x_tb = jnp.transpose(x[:, :, 0])             # (T, B), time-major
    x_tb = jnp.pad(x_tb, ((0, 0), (0, Bp - B)))  # (T, Bp)
    # Replicate the scalar input along H so the layer-0 projection is a pure
    # elementwise multiply in the kernel (no zero-padded matmul).
    x_flat = jnp.broadcast_to(x_tb.reshape(T * Bp, 1), (T * Bp, HIDDEN))

    out = pl.pallas_call(
        rnn_kernel,
        out_shape=jax.ShapeDtypeStruct((Bp, OUT_PAD), jnp.float32),
        in_specs=[pl.BlockSpec(memory_space=pltpu.MemorySpace.VMEM)] * 7,
        out_specs=pl.BlockSpec(memory_space=pltpu.MemorySpace.VMEM),
        scratch_shapes=[
            pltpu.VMEM((T * Bp, HIDDEN), jnp.float32),  # seq_buf
        ],
    )(x_flat, wih0, wih_rest, whh, b, fcw_pad, fcb_pad)

    return out[:B, :OUTPUT_SIZE]


def init_params(key):
    """Deterministic PyTorch-style init: U(-1/sqrt(H), 1/sqrt(H))."""
    k = 1.0 / np.sqrt(HIDDEN)
    keys = jax.random.split(key, 4 * NUM_LAYERS + 2)
    ki = iter(keys)

    wih0 = None       # (1, H)      layer-0 input weight row
    wih_rest = []     # (L-1, H, H) pre-transposed input-to-hidden
    whh = []          # (L, H, H)   pre-transposed hidden-to-hidden
    b = []            # (L, 1, H)   fused b_ih + b_hh
    for l in range(NUM_LAYERS):
        in_dim = INPUT_SIZE if l == 0 else HIDDEN
        w_ih = jax.random.uniform(next(ki), (HIDDEN, in_dim), jnp.float32, -k, k)
        w_hh = jax.random.uniform(next(ki), (HIDDEN, HIDDEN), jnp.float32, -k, k)
        b_i = jax.random.uniform(next(ki), (HIDDEN,), jnp.float32, -k, k)
        b_h = jax.random.uniform(next(ki), (HIDDEN,), jnp.float32, -k, k)
        if l == 0:
            wih0 = w_ih.T                      # (1, H)
        else:
            wih_rest.append(w_ih.T)            # (H, H)
        whh.append(w_hh.T)
        b.append((b_i + b_h)[None, :])         # fused bias, (1, H)

    fc_w = jax.random.uniform(next(ki), (OUTPUT_SIZE, HIDDEN), jnp.float32, -k, k)
    fc_b = jax.random.uniform(next(ki), (OUTPUT_SIZE,), jnp.float32, -k, k)
    fcw_pad = jnp.zeros((HIDDEN, OUT_PAD), jnp.float32).at[:, :OUTPUT_SIZE].set(fc_w.T)
    fcb_pad = jnp.zeros((1, OUT_PAD), jnp.float32).at[:, :OUTPUT_SIZE].set(fc_b[None, :])

    return (wih0, jnp.stack(wih_rest), jnp.stack(whh), jnp.stack(b),
            fcw_pad, fcb_pad)


def rnn_forward_reference(x, params):
    """Pure-JAX reference of the same math (PyTorch nn.RNN semantics)."""
    wih0, wih_rest, whh, b, fcw_pad, fcb_pad = params
    B, T, _ = x.shape
    H = whh.shape[-1]
    L = whh.shape[0]

    # layer-0 input projection: x_t * W_ih0[:, 0] (+ fused bias)
    seq = x[:, :, 0].T[:, :, None] * wih0 + b[0]          # (T, B, H)
    for l in range(L):
        if l > 0:
            seq = seq @ wih_rest[l - 1] + b[l]            # (T, B, H)
        h = jnp.zeros((B, H), jnp.float32)
        outs = []
        for t in range(T):
            h = jnp.tanh(seq[t] + h @ whh[l])
            outs.append(h)
        seq = jnp.stack(outs, axis=0)
    out = seq[-1] @ fcw_pad + fcb_pad                     # (B, OUT_PAD)
    return out[:, :OUTPUT_SIZE]


if __name__ == "__main__":
    key = jax.random.PRNGKey(0)
    k_param, k_x = jax.random.split(key)

    B, T = 2, 8
    x = jax.random.normal(k_x, (B, T, INPUT_SIZE), jnp.float32)
    params = init_params(k_param)

    out = rnn_forward(x, params)
    out = jax.block_until_ready(out)

    ref = rnn_forward_reference(x, params)
    assert out.shape == (B, OUTPUT_SIZE)
    np.testing.assert_allclose(np.asarray(out), np.asarray(ref),
                               rtol=1e-5, atol=1e-5)
    print("KERNEL_OK")
</pallas_src>

<mosaic_0001>
module attributes {stable_mosaic.version = 11 : i64} {
  func.func @rnn_kernel(%arg0: memref<64x20xf32, #tpu.memory_space<vmem>>, %arg1: memref<1x20xf32, #tpu.memory_space<vmem>>, %arg2: memref<4x20x20xf32, #tpu.memory_space<vmem>>, %arg3: memref<5x20x20xf32, #tpu.memory_space<vmem>>, %arg4: memref<5x1x20xf32, #tpu.memory_space<vmem>>, %arg5: memref<20x128xf32, #tpu.memory_space<vmem>>, %arg6: memref<1x128xf32, #tpu.memory_space<vmem>>, %arg7: memref<8x128xf32, #tpu.memory_space<vmem>>, %arg8: memref<64x20xf32, #tpu.memory_space<vmem>>) attributes {dimension_semantics = [], scalar_prefetch = 0 : i64, scratch_operands = 1 : i64, tpu.core_type = #tpu.core_type<tc>} {
    %c0 = arith.constant 0 : index
    %c0_0 = arith.constant 0 : index
    %0 = vector.load %arg0[%c0, %c0_0] : memref<64x20xf32, #tpu.memory_space<vmem>>, vector<64x20xf32>
    %c0_1 = arith.constant 0 : index
    %c0_2 = arith.constant 0 : index
    %1 = vector.load %arg1[%c0_1, %c0_2] : memref<1x20xf32, #tpu.memory_space<vmem>>, vector<1x20xf32>
    %2 = vector.broadcast %1 : vector<1x20xf32> to vector<64x20xf32>
    %3 = arith.mulf %0, %2 : vector<64x20xf32>
    %c0_3 = arith.constant 0 : index
    %c0_4 = arith.constant 0 : index
    %c0_5 = arith.constant 0 : index
    %4 = vector.load %arg4[%c0_3, %c0_4, %c0_5] : memref<5x1x20xf32, #tpu.memory_space<vmem>>, vector<1x1x20xf32>
    %5 = vector.shape_cast %4 : vector<1x1x20xf32> to vector<1x20xf32>
    %6 = vector.broadcast %5 : vector<1x20xf32> to vector<64x20xf32>
    %7 = arith.addf %3, %6 : vector<64x20xf32>
    %c0_6 = arith.constant 0 : index
    %c0_7 = arith.constant 0 : index
    %8 = vector.load %arg8[%c0_6, %c0_7] : memref<64x20xf32, #tpu.memory_space<vmem>>, vector<64x20xf32>
    tpu.vector_store %arg8[%c0_6, %c0_7], %7 {strides = array<i32>} : memref<64x20xf32, #tpu.memory_space<vmem>>, vector<64x20xf32>,
    %c0_8 = arith.constant 0 : index
    %c0_9 = arith.constant 0 : index
    %c0_10 = arith.constant 0 : index
    %9 = vector.load %arg3[%c0_8, %c0_9, %c0_10] : memref<5x20x20xf32, #tpu.memory_space<vmem>>, vector<1x20x20xf32>
    %10 = vector.shape_cast %9 : vector<1x20x20xf32> to vector<20x20xf32>
    %cst = arith.constant 0.000000e+00 : f32
    %11 = vector.broadcast %cst : f32 to vector<8x20xf32>
    %c0_i32 = arith.constant 0 : i32
    %c8_i32 = arith.constant 8 : i32
    %12 = arith.muli %c0_i32, %c8_i32 : i32
    %13 = tpu.assume_multiple %12, 8 : i32
    %14 = arith.index_cast %13 : i32 to index
    %c0_11 = arith.constant 0 : index
    %15 = vector.load %arg8[%14, %c0_11] : memref<64x20xf32, #tpu.memory_space<vmem>>, vector<8x20xf32>
    %cst_12 = arith.constant dense<0.000000e+00> : vector<8x20xf32>
    %16 = tpu.matmul %11, %10, %cst_12 {dimension_numbers = #tpu.dot_dimension_numbers<[1], [0], [0], [1], [0, 0, 1, 1], [], []>} : vector<8x20xf32>, vector<20x20xf32>, vector<8x20xf32> -> vector<8x20xf32>
    %17 = arith.addf %15, %16 : vector<8x20xf32>
    %18 = math.tanh %17 : vector<8x20xf32>
    %19 = arith.index_cast %13 : i32 to index
    %c0_13 = arith.constant 0 : index
    %20 = vector.load %arg8[%19, %c0_13] : memref<64x20xf32, #tpu.memory_space<vmem>>, vector<8x20xf32>
    tpu.vector_store %arg8[%19, %c0_13], %18 {strides = array<i32>} : memref<64x20xf32, #tpu.memory_space<vmem>>, vector<8x20xf32>,
    %c1_i32 = arith.constant 1 : i32
    %c8_i32_14 = arith.constant 8 : i32
    %21 = arith.muli %c1_i32, %c8_i32_14 : i32
    %22 = tpu.assume_multiple %21, 8 : i32
    %23 = arith.index_cast %22 : i32 to index
    %c0_15 = arith.constant 0 : index
    %24 = vector.load %arg8[%23, %c0_15] : memref<64x20xf32, #tpu.memory_space<vmem>>, vector<8x20xf32>
    %cst_16 = arith.constant dense<0.000000e+00> : vector<8x20xf32>
    %25 = tpu.matmul %18, %10, %cst_16 {dimension_numbers = #tpu.dot_dimension_numbers<[1], [0], [0], [1], [0, 0, 1, 1], [], []>} : vector<8x20xf32>, vector<20x20xf32>, vector<8x20xf32> -> vector<8x20xf32>
    %26 = arith.addf %24, %25 : vector<8x20xf32>
    %27 = math.tanh %26 : vector<8x20xf32>
    %28 = arith.index_cast %22 : i32 to index
    %c0_17 = arith.constant 0 : index
    %29 = vector.load %arg8[%28, %c0_17] : memref<64x20xf32, #tpu.memory_space<vmem>>, vector<8x20xf32>
    tpu.vector_store %arg8[%28, %c0_17], %27 {strides = array<i32>} : memref<64x20xf32, #tpu.memory_space<vmem>>, vector<8x20xf32>,
    %c2_i32 = arith.constant 2 : i32
    %c8_i32_18 = arith.constant 8 : i32
    %30 = arith.muli %c2_i32, %c8_i32_18 : i32
    %31 = tpu.assume_multiple %30, 8 : i32
    %32 = arith.index_cast %31 : i32 to index
    %c0_19 = arith.constant 0 : index
    %33 = vector.load %arg8[%32, %c0_19] : memref<64x20xf32, #tpu.memory_space<vmem>>, vector<8x20xf32>
    %cst_20 = arith.constant dense<0.000000e+00> : vector<8x20xf32>
    %34 = tpu.matmul %27, %10, %cst_20 {dimension_numbers = #tpu.dot_dimension_numbers<[1], [0], [0], [1], [0, 0, 1, 1], [], []>} : vector<8x20xf32>, vector<20x20xf32>, vector<8x20xf32> -> vector<8x20xf32>
    %35 = arith.addf %33, %34 : vector<8x20xf32>
    %36 = math.tanh %35 : vector<8x20xf32>
    %37 = arith.index_cast %31 : i32 to index
    %c0_21 = arith.constant 0 : index
    %38 = vector.load %arg8[%37, %c0_21] : memref<64x20xf32, #tpu.memory_space<vmem>>, vector<8x20xf32>
    tpu.vector_store %arg8[%37, %c0_21], %36 {strides = array<i32>} : memref<64x20xf32, #tpu.memory_space<vmem>>, vector<8x20xf32>,
    %c3_i32 = arith.constant 3 : i32
    %c8_i32_22 = arith.constant 8 : i32
    %39 = arith.muli %c3_i32, %c8_i32_22 : i32
    %40 = tpu.assume_multiple %39, 8 : i32
    %41 = arith.index_cast %40 : i32 to index
    %c0_23 = arith.constant 0 : index
    %42 = vector.load %arg8[%41, %c0_23] : memref<64x20xf32, #tpu.memory_space<vmem>>, vector<8x20xf32>
    %cst_24 = arith.constant dense<0.000000e+00> : vector<8x20xf32>
    %43 = tpu.matmul %36, %10, %cst_24 {dimension_numbers = #tpu.dot_dimension_numbers<[1], [0], [0], [1], [0, 0, 1, 1], [], []>} : vector<8x20xf32>, vector<20x20xf32>, vector<8x20xf32> -> vector<8x20xf32>
    %44 = arith.addf %42, %43 : vector<8x20xf32>
    %45 = math.tanh %44 : vector<8x20xf32>
    %46 = arith.index_cast %40 : i32 to index
    %c0_25 = arith.constant 0 : index
    %47 = vector.load %arg8[%46, %c0_25] : memref<64x20xf32, #tpu.memory_space<vmem>>, vector<8x20xf32>
    tpu.vector_store %arg8[%46, %c0_25], %45 {strides = array<i32>} : memref<64x20xf32, #tpu.memory_space<vmem>>, vector<8x20xf32>,
    %c4_i32 = arith.constant 4 : i32
    %c8_i32_26 = arith.constant 8 : i32
    %48 = arith.muli %c4_i32, %c8_i32_26 : i32
    %49 = tpu.assume_multiple %48, 8 : i32
    %50 = arith.index_cast %49 : i32 to index
    %c0_27 = arith.constant 0 : index
    %51 = vector.load %arg8[%50, %c0_27] : memref<64x20xf32, #tpu.memory_space<vmem>>, vector<8x20xf32>
    %cst_28 = arith.constant dense<0.000000e+00> : vector<8x20xf32>
    %52 = tpu.matmul %45, %10, %cst_28 {dimension_numbers = #tpu.dot_dimension_numbers<[1], [0], [0], [1], [0, 0, 1, 1], [], []>} : vector<8x20xf32>, vector<20x20xf32>, vector<8x20xf32> -> vector<8x20xf32>
    %53 = arith.addf %51, %52 : vector<8x20xf32>
    %54 = math.tanh %53 : vector<8x20xf32>
    %55 = arith.index_cast %49 : i32 to index
    %c0_29 = arith.constant 0 : index
    %56 = vector.load %arg8[%55, %c0_29] : memref<64x20xf32, #tpu.memory_space<vmem>>, vector<8x20xf32>
    tpu.vector_store %arg8[%55, %c0_29], %54 {strides = array<i32>} : memref<64x20xf32, #tpu.memory_space<vmem>>, vector<8x20xf32>,
    %c5_i32 = arith.constant 5 : i32
    %c8_i32_30 = arith.constant 8 : i32
    %57 = arith.muli %c5_i32, %c8_i32_30 : i32
    %58 = tpu.assume_multiple %57, 8 : i32
    %59 = arith.index_cast %58 : i32 to index
    %c0_31 = arith.constant 0 : index
    %60 = vector.load %arg8[%59, %c0_31] : memref<64x20xf32, #tpu.memory_space<vmem>>, vector<8x20xf32>
    %cst_32 = arith.constant dense<0.000000e+00> : vector<8x20xf32>
    %61 = tpu.matmul %54, %10, %cst_32 {dimension_numbers = #tpu.dot_dimension_numbers<[1], [0], [0], [1], [0, 0, 1, 1], [], []>} : vector<8x20xf32>, vector<20x20xf32>, vector<8x20xf32> -> vector<8x20xf32>
    %62 = arith.addf %60, %61 : vector<8x20xf32>
    %63 = math.tanh %62 : vector<8x20xf32>
    %64 = arith.index_cast %58 : i32 to index
    %c0_33 = arith.constant 0 : index
    %65 = vector.load %arg8[%64, %c0_33] : memref<64x20xf32, #tpu.memory_space<vmem>>, vector<8x20xf32>
    tpu.vector_store %arg8[%64, %c0_33], %63 {strides = array<i32>} : memref<64x20xf32, #tpu.memory_space<vmem>>, vector<8x20xf32>,
    %c6_i32 = arith.constant 6 : i32
    %c8_i32_34 = arith.constant 8 : i32
    %66 = arith.muli %c6_i32, %c8_i32_34 : i32
    %67 = tpu.assume_multiple %66, 8 : i32
    %68 = arith.index_cast %67 : i32 to index
    %c0_35 = arith.constant 0 : index
    %69 = vector.load %arg8[%68, %c0_35] : memref<64x20xf32, #tpu.memory_space<vmem>>, vector<8x20xf32>
    %cst_36 = arith.constant dense<0.000000e+00> : vector<8x20xf32>
    %70 = tpu.matmul %63, %10, %cst_36 {dimension_numbers = #tpu.dot_dimension_numbers<[1], [0], [0], [1], [0, 0, 1, 1], [], []>} : vector<8x20xf32>, vector<20x20xf32>, vector<8x20xf32> -> vector<8x20xf32>
    %71 = arith.addf %69, %70 : vector<8x20xf32>
    %72 = math.tanh %71 : vector<8x20xf32>
    %73 = arith.index_cast %67 : i32 to index
    %c0_37 = arith.constant 0 : index
    %74 = vector.load %arg8[%73, %c0_37] : memref<64x20xf32, #tpu.memory_space<vmem>>, vector<8x20xf32>
    tpu.vector_store %arg8[%73, %c0_37], %72 {strides = array<i32>} : memref<64x20xf32, #tpu.memory_space<vmem>>, vector<8x20xf32>,
    %c7_i32 = arith.constant 7 : i32
    %c8_i32_38 = arith.constant 8 : i32
    %75 = arith.muli %c7_i32, %c8_i32_38 : i32
    %76 = tpu.assume_multiple %75, 8 : i32
    %77 = arith.index_cast %76 : i32 to index
    %c0_39 = arith.constant 0 : index
    %78 = vector.load %arg8[%77, %c0_39] : memref<64x20xf32, #tpu.memory_space<vmem>>, vector<8x20xf32>
    %cst_40 = arith.constant dense<0.000000e+00> : vector<8x20xf32>
    %79 = tpu.matmul %72, %10, %cst_40 {dimension_numbers = #tpu.dot_dimension_numbers<[1], [0], [0], [1], [0, 0, 1, 1], [], []>} : vector<8x20xf32>, vector<20x20xf32>, vector<8x20xf32> -> vector<8x20xf32>
    %80 = arith.addf %78, %79 : vector<8x20xf32>
    %81 = math.tanh %80 : vector<8x20xf32>
    %82 = arith.index_cast %76 : i32 to index
    %c0_41 = arith.constant 0 : index
    %83 = vector.load %arg8[%82, %c0_41] : memref<64x20xf32, #tpu.memory_space<vmem>>, vector<8x20xf32>
    tpu.vector_store %arg8[%82, %c0_41], %81 {strides = array<i32>} : memref<64x20xf32, #tpu.memory_space<vmem>>, vector<8x20xf32>,
    %c8_i32_42 = arith.constant 8 : i32
    %c1 = arith.constant 1 : index
    %c0_43 = arith.constant 0 : index
    %c0_44 = arith.constant 0 : index
    %84 = vector.load %arg3[%c1, %c0_43, %c0_44] : memref<5x20x20xf32, #tpu.memory_space<vmem>>, vector<1x20x20xf32>
    %85 = vector.shape_cast %84 : vector<1x20x20xf32> to vector<20x20xf32>
    %c0_45 = arith.constant 0 : index
    %c0_46 = arith.constant 0 : index
    %86 = vector.load %arg8[%c0_45, %c0_46] : memref<64x20xf32, #tpu.memory_space<vmem>>, vector<64x20xf32>
    %c0_47 = arith.constant 0 : index
    %c0_48 = arith.constant 0 : index
    %c0_49 = arith.constant 0 : index
    %87 = vector.load %arg2[%c0_47, %c0_48, %c0_49] : memref<4x20x20xf32, #tpu.memory_space<vmem>>, vector<1x20x20xf32>
    %88 = vector.shape_cast %87 : vector<1x20x20xf32> to vector<20x20xf32>
    %cst_50 = arith.constant dense<0.000000e+00> : vector<64x20xf32>
    %89 = tpu.matmul %86, %88, %cst_50 {dimension_numbers = #tpu.dot_dimension_numbers<[1], [0], [0], [1], [0, 0, 1, 1], [], []>} : vector<64x20xf32>, vector<20x20xf32>, vector<64x20xf32> -> vector<64x20xf32>
    %c1_51 = arith.constant 1 : index
    %c0_52 = arith.constant 0 : index
    %c0_53 = arith.constant 0 : index
    %90 = vector.load %arg4[%c1_51, %c0_52, %c0_53] : memref<5x1x20xf32, #tpu.memory_space<vmem>>, vector<1x1x20xf32>
    %91 = vector.shape_cast %90 : vector<1x1x20xf32> to vector<1x20xf32>
    %92 = vector.broadcast %91 : vector<1x20xf32> to vector<64x20xf32>
    %93 = arith.addf %89, %92 : vector<64x20xf32>
    %c0_54 = arith.constant 0 : index
    %c0_55 = arith.constant 0 : index
    %94 = vector.load %arg8[%c0_54, %c0_55] : memref<64x20xf32, #tpu.memory_space<vmem>>, vector<64x20xf32>
    tpu.vector_store %arg8[%c0_54, %c0_55], %93 {strides = array<i32>} : memref<64x20xf32, #tpu.memory_space<vmem>>, vector<64x20xf32>,
    %cst_56 = arith.constant 0.000000e+00 : f32
    %95 = vector.broadcast %cst_56 : f32 to vector<8x20xf32>
    %c0_i32_57 = arith.constant 0 : i32
    %c8_i32_58 = arith.constant 8 : i32
    %96 = arith.muli %c0_i32_57, %c8_i32_58 : i32
    %97 = tpu.assume_multiple %96, 8 : i32
    %98 = arith.index_cast %97 : i32 to index
    %c0_59 = arith.constant 0 : index
    %99 = vector.load %arg8[%98, %c0_59] : memref<64x20xf32, #tpu.memory_space<vmem>>, vector<8x20xf32>
    %cst_60 = arith.constant dense<0.000000e+00> : vector<8x20xf32>
    %100 = tpu.matmul %95, %85, %cst_60 {dimension_numbers = #tpu.dot_dimension_numbers<[1], [0], [0], [1], [0, 0, 1, 1], [], []>} : vector<8x20xf32>, vector<20x20xf32>, vector<8x20xf32> -> vector<8x20xf32>
    %101 = arith.addf %99, %100 : vector<8x20xf32>
    %102 = math.tanh %101 : vector<8x20xf32>
    %103 = arith.index_cast %97 : i32 to index
    %c0_61 = arith.constant 0 : index
    %104 = vector.load %arg8[%103, %c0_61] : memref<64x20xf32, #tpu.memory_space<vmem>>, vector<8x20xf32>
    tpu.vector_store %arg8[%103, %c0_61], %102 {strides = array<i32>} : memref<64x20xf32, #tpu.memory_space<vmem>>, vector<8x20xf32>,
    %c1_i32_62 = arith.constant 1 : i32
    %c8_i32_63 = arith.constant 8 : i32
    %105 = arith.muli %c1_i32_62, %c8_i32_63 : i32
    %106 = tpu.assume_multiple %105, 8 : i32
    %107 = arith.index_cast %106 : i32 to index
    %c0_64 = arith.constant 0 : index
    %108 = vector.load %arg8[%107, %c0_64] : memref<64x20xf32, #tpu.memory_space<vmem>>, vector<8x20xf32>
    %cst_65 = arith.constant dense<0.000000e+00> : vector<8x20xf32>
    %109 = tpu.matmul %102, %85, %cst_65 {dimension_numbers = #tpu.dot_dimension_numbers<[1], [0], [0], [1], [0, 0, 1, 1], [], []>} : vector<8x20xf32>, vector<20x20xf32>, vector<8x20xf32> -> vector<8x20xf32>
    %110 = arith.addf %108, %109 : vector<8x20xf32>
    %111 = math.tanh %110 : vector<8x20xf32>
    %112 = arith.index_cast %106 : i32 to index
    %c0_66 = arith.constant 0 : index
    %113 = vector.load %arg8[%112, %c0_66] : memref<64x20xf32, #tpu.memory_space<vmem>>, vector<8x20xf32>
    tpu.vector_store %arg8[%112, %c0_66], %111 {strides = array<i32>} : memref<64x20xf32, #tpu.memory_space<vmem>>, vector<8x20xf32>,
    %c2_i32_67 = arith.constant 2 : i32
    %c8_i32_68 = arith.constant 8 : i32
    %114 = arith.muli %c2_i32_67, %c8_i32_68 : i32
    %115 = tpu.assume_multiple %114, 8 : i32
    %116 = arith.index_cast %115 : i32 to index
    %c0_69 = arith.constant 0 : index
    %117 = vector.load %arg8[%116, %c0_69] : memref<64x20xf32, #tpu.memory_space<vmem>>, vector<8x20xf32>
    %cst_70 = arith.constant dense<0.000000e+00> : vector<8x20xf32>
    %118 = tpu.matmul %111, %85, %cst_70 {dimension_numbers = #tpu.dot_dimension_numbers<[1], [0], [0], [1], [0, 0, 1, 1], [], []>} : vector<8x20xf32>, vector<20x20xf32>, vector<8x20xf32> -> vector<8x20xf32>
    %119 = arith.addf %117, %118 : vector<8x20xf32>
    %120 = math.tanh %119 : vector<8x20xf32>
    %121 = arith.index_cast %115 : i32 to index
    %c0_71 = arith.constant 0 : index
    %122 = vector.load %arg8[%121, %c0_71] : memref<64x20xf32, #tpu.memory_space<vmem>>, vector<8x20xf32>
    tpu.vector_store %arg8[%121, %c0_71], %120 {strides = array<i32>} : memref<64x20xf32, #tpu.memory_space<vmem>>, vector<8x20xf32>,
    %c3_i32_72 = arith.constant 3 : i32
    %c8_i32_73 = arith.constant 8 : i32
    %123 = arith.muli %c3_i32_72, %c8_i32_73 : i32
    %124 = tpu.assume_multiple %123, 8 : i32
    %125 = arith.index_cast %124 : i32 to index
    %c0_74 = arith.constant 0 : index
    %126 = vector.load %arg8[%125, %c0_74] : memref<64x20xf32, #tpu.memory_space<vmem>>, vector<8x20xf32>
    %cst_75 = arith.constant dense<0.000000e+00> : vector<8x20xf32>
    %127 = tpu.matmul %120, %85, %cst_75 {dimension_numbers = #tpu.dot_dimension_numbers<[1], [0], [0], [1], [0, 0, 1, 1], [], []>} : vector<8x20xf32>, vector<20x20xf32>, vector<8x20xf32> -> vector<8x20xf32>
    %128 = arith.addf %126, %127 : vector<8x20xf32>
    %129 = math.tanh %128 : vector<8x20xf32>
    %130 = arith.index_cast %124 : i32 to index
    %c0_76 = arith.constant 0 : index
    %131 = vector.load %arg8[%130, %c0_76] : memref<64x20xf32, #tpu.memory_space<vmem>>, vector<8x20xf32>
    tpu.vector_store %arg8[%130, %c0_76], %129 {strides = array<i32>} : memref<64x20xf32, #tpu.memory_space<vmem>>, vector<8x20xf32>,
    %c4_i32_77 = arith.constant 4 : i32
    %c8_i32_78 = arith.constant 8 : i32
    %132 = arith.muli %c4_i32_77, %c8_i32_78 : i32
    %133 = tpu.assume_multiple %132, 8 : i32
    %134 = arith.index_cast %133 : i32 to index
    %c0_79 = arith.constant 0 : index
    %135 = vector.load %arg8[%134, %c0_79] : memref<64x20xf32, #tpu.memory_space<vmem>>, vector<8x20xf32>
    %cst_80 = arith.constant dense<0.000000e+00> : vector<8x20xf32>
    %136 = tpu.matmul %129, %85, %cst_80 {dimension_numbers = #tpu.dot_dimension_numbers<[1], [0], [0], [1], [0, 0, 1, 1], [], []>} : vector<8x20xf32>, vector<20x20xf32>, vector<8x20xf32> -> vector<8x20xf32>
    %137 = arith.addf %135, %136 : vector<8x20xf32>
    %138 = math.tanh %137 : vector<8x20xf32>
    %139 = arith.index_cast %133 : i32 to index
    %c0_81 = arith.constant 0 : index
    %140 = vector.load %arg8[%139, %c0_81] : memref<64x20xf32, #tpu.memory_space<vmem>>, vector<8x20xf32>
    tpu.vector_store %arg8[%139, %c0_81], %138 {strides = array<i32>} : memref<64x20xf32, #tpu.memory_space<vmem>>, vector<8x20xf32>,
    %c5_i32_82 = arith.constant 5 : i32
    %c8_i32_83 = arith.constant 8 : i32
    %141 = arith.muli %c5_i32_82, %c8_i32_83 : i32
    %142 = tpu.assume_multiple %141, 8 : i32
    %143 = arith.index_cast %142 : i32 to index
    %c0_84 = arith.constant 0 : index
    %144 = vector.load %arg8[%143, %c0_84] : memref<64x20xf32, #tpu.memory_space<vmem>>, vector<8x20xf32>
    %cst_85 = arith.constant dense<0.000000e+00> : vector<8x20xf32>
    %145 = tpu.matmul %138, %85, %cst_85 {dimension_numbers = #tpu.dot_dimension_numbers<[1], [0], [0], [1], [0, 0, 1, 1], [], []>} : vector<8x20xf32>, vector<20x20xf32>, vector<8x20xf32> -> vector<8x20xf32>
    %146 = arith.addf %144, %145 : vector<8x20xf32>
    %147 = math.tanh %146 : vector<8x20xf32>
    %148 = arith.index_cast %142 : i32 to index
    %c0_86 = arith.constant 0 : index
    %149 = vector.load %arg8[%148, %c0_86] : memref<64x20xf32, #tpu.memory_space<vmem>>, vector<8x20xf32>
    tpu.vector_store %arg8[%148, %c0_86], %147 {strides = array<i32>} : memref<64x20xf32, #tpu.memory_space<vmem>>, vector<8x20xf32>,
    %c6_i32_87 = arith.constant 6 : i32
    %c8_i32_88 = arith.constant 8 : i32
    %150 = arith.muli %c6_i32_87, %c8_i32_88 : i32
    %151 = tpu.assume_multiple %150, 8 : i32
    %152 = arith.index_cast %151 : i32 to index
    %c0_89 = arith.constant 0 : index
    %153 = vector.load %arg8[%152, %c0_89] : memref<64x20xf32, #tpu.memory_space<vmem>>, vector<8x20xf32>
    %cst_90 = arith.constant dense<0.000000e+00> : vector<8x20xf32>
    %154 = tpu.matmul %147, %85, %cst_90 {dimension_numbers = #tpu.dot_dimension_numbers<[1], [0], [0], [1], [0, 0, 1, 1], [], []>} : vector<8x20xf32>, vector<20x20xf32>, vector<8x20xf32> -> vector<8x20xf32>
    %155 = arith.addf %153, %154 : vector<8x20xf32>
    %156 = math.tanh %155 : vector<8x20xf32>
    %157 = arith.index_cast %151 : i32 to index
    %c0_91 = arith.constant 0 : index
    %158 = vector.load %arg8[%157, %c0_91] : memref<64x20xf32, #tpu.memory_space<vmem>>, vector<8x20xf32>
    tpu.vector_store %arg8[%157, %c0_91], %156 {strides = array<i32>} : memref<64x20xf32, #tpu.memory_space<vmem>>, vector<8x20xf32>,
    %c7_i32_92 = arith.constant 7 : i32
    %c8_i32_93 = arith.constant 8 : i32
    %159 = arith.muli %c7_i32_92, %c8_i32_93 : i32
    %160 = tpu.assume_multiple %159, 8 : i32
    %161 = arith.index_cast %160 : i32 to index
    %c0_94 = arith.constant 0 : index
    %162 = vector.load %arg8[%161, %c0_94] : memref<64x20xf32, #tpu.memory_space<vmem>>, vector<8x20xf32>
    %cst_95 = arith.constant dense<0.000000e+00> : vector<8x20xf32>
    %163 = tpu.matmul %156, %85, %cst_95 {dimension_numbers = #tpu.dot_dimension_numbers<[1], [0], [0], [1], [0, 0, 1, 1], [], []>} : vector<8x20xf32>, vector<20x20xf32>, vector<8x20xf32> -> vector<8x20xf32>
    %164 = arith.addf %162, %163 : vector<8x20xf32>
    %165 = math.tanh %164 : vector<8x20xf32>
    %166 = arith.index_cast %160 : i32 to index
    %c0_96 = arith.constant 0 : index
    %167 = vector.load %arg8[%166, %c0_96] : memref<64x20xf32, #tpu.memory_space<vmem>>, vector<8x20xf32>
    tpu.vector_store %arg8[%166, %c0_96], %165 {strides = array<i32>} : memref<64x20xf32, #tpu.memory_space<vmem>>, vector<8x20xf32>,
    %c8_i32_97 = arith.constant 8 : i32
    %c2 = arith.constant 2 : index
    %c0_98 = arith.constant 0 : index
    %c0_99 = arith.constant 0 : index
    %168 = vector.load %arg3[%c2, %c0_98, %c0_99] : memref<5x20x20xf32, #tpu.memory_space<vmem>>, vector<1x20x20xf32>
    %169 = vector.shape_cast %168 : vector<1x20x20xf32> to vector<20x20xf32>
    %c0_100 = arith.constant 0 : index
    %c0_101 = arith.constant 0 : index
    %170 = vector.load %arg8[%c0_100, %c0_101] : memref<64x20xf32, #tpu.memory_space<vmem>>, vector<64x20xf32>
    %c1_102 = arith.constant 1 : index
    %c0_103 = arith.constant 0 : index
    %c0_104 = arith.constant 0 : index
    %171 = vector.load %arg2[%c1_102, %c0_103, %c0_104] : memref<4x20x20xf32, #tpu.memory_space<vmem>>, vector<1x20x20xf32>
    %172 = vector.shape_cast %171 : vector<1x20x20xf32> to vector<20x20xf32>
    %cst_105 = arith.constant dense<0.000000e+00> : vector<64x20xf32>
    %173 = tpu.matmul %170, %172, %cst_105 {dimension_numbers = #tpu.dot_dimension_numbers<[1], [0], [0], [1], [0, 0, 1, 1], [], []>} : vector<64x20xf32>, vector<20x20xf32>, vector<64x20xf32> -> vector<64x20xf32>
    %c2_106 = arith.constant 2 : index
    %c0_107 = arith.constant 0 : index
    %c0_108 = arith.constant 0 : index
    %174 = vector.load %arg4[%c2_106, %c0_107, %c0_108] : memref<5x1x20xf32, #tpu.memory_space<vmem>>, vector<1x1x20xf32>
    %175 = vector.shape_cast %174 : vector<1x1x20xf32> to vector<1x20xf32>
    %176 = vector.broadcast %175 : vector<1x20xf32> to vector<64x20xf32>
    %177 = arith.addf %173, %176 : vector<64x20xf32>
    %c0_109 = arith.constant 0 : index
    %c0_110 = arith.constant 0 : index
    %178 = vector.load %arg8[%c0_109, %c0_110] : memref<64x20xf32, #tpu.memory_space<vmem>>, vector<64x20xf32>
    tpu.vector_store %arg8[%c0_109, %c0_110], %177 {strides = array<i32>} : memref<64x20xf32, #tpu.memory_space<vmem>>, vector<64x20xf32>,
    %cst_111 = arith.constant 0.000000e+00 : f32
    %179 = vector.broadcast %cst_111 : f32 to vector<8x20xf32>
    %c0_i32_112 = arith.constant 0 : i32
    %c8_i32_113 = arith.constant 8 : i32
    %180 = arith.muli %c0_i32_112, %c8_i32_113 : i32
    %181 = tpu.assume_multiple %180, 8 : i32
    %182 = arith.index_cast %181 : i32 to index
    %c0_114 = arith.constant 0 : index
    %183 = vector.load %arg8[%182, %c0_114] : memref<64x20xf32, #tpu.memory_space<vmem>>, vector<8x20xf32>
    %cst_115 = arith.constant dense<0.000000e+00> : vector<8x20xf32>
    %184 = tpu.matmul %179, %169, %cst_115 {dimension_numbers = #tpu.dot_dimension_numbers<[1], [0], [0], [1], [0, 0, 1, 1], [], []>} : vector<8x20xf32>, vector<20x20xf32>, vector<8x20xf32> -> vector<8x20xf32>
    %185 = arith.addf %183, %184 : vector<8x20xf32>
    %186 = math.tanh %185 : vector<8x20xf32>
    %187 = arith.index_cast %181 : i32 to index
    %c0_116 = arith.constant 0 : index
    %188 = vector.load %arg8[%187, %c0_116] : memref<64x20xf32, #tpu.memory_space<vmem>>, vector<8x20xf32>
    tpu.vector_store %arg8[%187, %c0_116], %186 {strides = array<i32>} : memref<64x20xf32, #tpu.memory_space<vmem>>, vector<8x20xf32>,
    %c1_i32_117 = arith.constant 1 : i32
    %c8_i32_118 = arith.constant 8 : i32
    %189 = arith.muli %c1_i32_117, %c8_i32_118 : i32
    %190 = tpu.assume_multiple %189, 8 : i32
    %191 = arith.index_cast %190 : i32 to index
    %c0_119 = arith.constant 0 : index
    %192 = vector.load %arg8[%191, %c0_119] : memref<64x20xf32, #tpu.memory_space<vmem>>, vector<8x20xf32>
    %cst_120 = arith.constant dense<0.000000e+00> : vector<8x20xf32>
    %193 = tpu.matmul %186, %169, %cst_120 {dimension_numbers = #tpu.dot_dimension_numbers<[1], [0], [0], [1], [0, 0, 1, 1], [], []>} : vector<8x20xf32>, vector<20x20xf32>, vector<8x20xf32> -> vector<8x20xf32>
    %194 = arith.addf %192, %193 : vector<8x20xf32>
    %195 = math.tanh %194 : vector<8x20xf32>
    %196 = arith.index_cast %190 : i32 to index
    %c0_121 = arith.constant 0 : index
    %197 = vector.load %arg8[%196, %c0_121] : memref<64x20xf32, #tpu.memory_space<vmem>>, vector<8x20xf32>
    tpu.vector_store %arg8[%196, %c0_121], %195 {strides = array<i32>} : memref<64x20xf32, #tpu.memory_space<vmem>>, vector<8x20xf32>,
    %c2_i32_122 = arith.constant 2 : i32
    %c8_i32_123 = arith.constant 8 : i32
    %198 = arith.muli %c2_i32_122, %c8_i32_123 : i32
    %199 = tpu.assume_multiple %198, 8 : i32
    %200 = arith.index_cast %199 : i32 to index
    %c0_124 = arith.constant 0 : index
    %201 = vector.load %arg8[%200, %c0_124] : memref<64x20xf32, #tpu.memory_space<vmem>>, vector<8x20xf32>
    %cst_125 = arith.constant dense<0.000000e+00> : vector<8x20xf32>
    %202 = tpu.matmul %195, %169, %cst_125 {dimension_numbers = #tpu.dot_dimension_numbers<[1], [0], [0], [1], [0, 0, 1, 1], [], []>} : vector<8x20xf32>, vector<20x20xf32>, vector<8x20xf32> -> vector<8x20xf32>
    %203 = arith.addf %201, %202 : vector<8x20xf32>
    %204 = math.tanh %203 : vector<8x20xf32>
    %205 = arith.index_cast %199 : i32 to index
    %c0_126 = arith.constant 0 : index
    %206 = vector.load %arg8[%205, %c0_126] : memref<64x20xf32, #tpu.memory_space<vmem>>, vector<8x20xf32>
    tpu.vector_store %arg8[%205, %c0_126], %204 {strides = array<i32>} : memref<64x20xf32, #tpu.memory_space<vmem>>, vector<8x20xf32>,
    %c3_i32_127 = arith.constant 3 : i32
    %c8_i32_128 = arith.constant 8 : i32
    %207 = arith.muli %c3_i32_127, %c8_i32_128 : i32
    %208 = tpu.assume_multiple %207, 8 : i32
    %209 = arith.index_cast %208 : i32 to index
    %c0_129 = arith.constant 0 : index
    %210 = vector.load %arg8[%209, %c0_129] : memref<64x20xf32, #tpu.memory_space<vmem>>, vector<8x20xf32>
    %cst_130 = arith.constant dense<0.000000e+00> : vector<8x20xf32>
    %211 = tpu.matmul %204, %169, %cst_130 {dimension_numbers = #tpu.dot_dimension_numbers<[1], [0], [0], [1], [0, 0, 1, 1], [], []>} : vector<8x20xf32>, vector<20x20xf32>, vector<8x20xf32> -> vector<8x20xf32>
    %212 = arith.addf %210, %211 : vector<8x20xf32>
    %213 = math.tanh %212 : vector<8x20xf32>
    %214 = arith.index_cast %208 : i32 to index
    %c0_131 = arith.constant 0 : index
    %215 = vector.load %arg8[%214, %c0_131] : memref<64x20xf32, #tpu.memory_space<vmem>>, vector<8x20xf32>
    tpu.vector_store %arg8[%214, %c0_131], %213 {strides = array<i32>} : memref<64x20xf32, #tpu.memory_space<vmem>>, vector<8x20xf32>,
    %c4_i32_132 = arith.constant 4 : i32
    %c8_i32_133 = arith.constant 8 : i32
    %216 = arith.muli %c4_i32_132, %c8_i32_133 : i32
    %217 = tpu.assume_multiple %216, 8 : i32
    %218 = arith.index_cast %217 : i32 to index
    %c0_134 = arith.constant 0 : index
    %219 = vector.load %arg8[%218, %c0_134] : memref<64x20xf32, #tpu.memory_space<vmem>>, vector<8x20xf32>
    %cst_135 = arith.constant dense<0.000000e+00> : vector<8x20xf32>
    %220 = tpu.matmul %213, %169, %cst_135 {dimension_numbers = #tpu.dot_dimension_numbers<[1], [0], [0], [1], [0, 0, 1, 1], [], []>} : vector<8x20xf32>, vector<20x20xf32>, vector<8x20xf32> -> vector<8x20xf32>
    %221 = arith.addf %219, %220 : vector<8x20xf32>
    %222 = math.tanh %221 : vector<8x20xf32>
    %223 = arith.index_cast %217 : i32 to index
    %c0_136 = arith.constant 0 : index
    %224 = vector.load %arg8[%223, %c0_136] : memref<64x20xf32, #tpu.memory_space<vmem>>, vector<8x20xf32>
    tpu.vector_store %arg8[%223, %c0_136], %222 {strides = array<i32>} : memref<64x20xf32, #tpu.memory_space<vmem>>, vector<8x20xf32>,
    %c5_i32_137 = arith.constant 5 : i32
    %c8_i32_138 = arith.constant 8 : i32
    %225 = arith.muli %c5_i32_137, %c8_i32_138 : i32
    %226 = tpu.assume_multiple %225, 8 : i32
    %227 = arith.index_cast %226 : i32 to index
    %c0_139 = arith.constant 0 : index
    %228 = vector.load %arg8[%227, %c0_139] : memref<64x20xf32, #tpu.memory_space<vmem>>, vector<8x20xf32>
    %cst_140 = arith.constant dense<0.000000e+00> : vector<8x20xf32>
    %229 = tpu.matmul %222, %169, %cst_140 {dimension_numbers = #tpu.dot_dimension_numbers<[1], [0], [0], [1], [0, 0, 1, 1], [], []>} : vector<8x20xf32>, vector<20x20xf32>, vector<8x20xf32> -> vector<8x20xf32>
    %230 = arith.addf %228, %229 : vector<8x20xf32>
    %231 = math.tanh %230 : vector<8x20xf32>
    %232 = arith.index_cast %226 : i32 to index
    %c0_141 = arith.constant 0 : index
    %233 = vector.load %arg8[%232, %c0_141] : memref<64x20xf32, #tpu.memory_space<vmem>>, vector<8x20xf32>
    tpu.vector_store %arg8[%232, %c0_141], %231 {strides = array<i32>} : memref<64x20xf32, #tpu.memory_space<vmem>>, vector<8x20xf32>,
    %c6_i32_142 = arith.constant 6 : i32
    %c8_i32_143 = arith.constant 8 : i32
    %234 = arith.muli %c6_i32_142, %c8_i32_143 : i32
    %235 = tpu.assume_multiple %234, 8 : i32
    %236 = arith.index_cast %235 : i32 to index
    %c0_144 = arith.constant 0 : index
    %237 = vector.load %arg8[%236, %c0_144] : memref<64x20xf32, #tpu.memory_space<vmem>>, vector<8x20xf32>
    %cst_145 = arith.constant dense<0.000000e+00> : vector<8x20xf32>
    %238 = tpu.matmul %231, %169, %cst_145 {dimension_numbers = #tpu.dot_dimension_numbers<[1], [0], [0], [1], [0, 0, 1, 1], [], []>} : vector<8x20xf32>, vector<20x20xf32>, vector<8x20xf32> -> vector<8x20xf32>
    %239 = arith.addf %237, %238 : vector<8x20xf32>
    %240 = math.tanh %239 : vector<8x20xf32>
    %241 = arith.index_cast %235 : i32 to index
    %c0_146 = arith.constant 0 : index
    %242 = vector.load %arg8[%241, %c0_146] : memref<64x20xf32, #tpu.memory_space<vmem>>, vector<8x20xf32>
    tpu.vector_store %arg8[%241, %c0_146], %240 {strides = array<i32>} : memref<64x20xf32, #tpu.memory_space<vmem>>, vector<8x20xf32>,
    %c7_i32_147 = arith.constant 7 : i32
    %c8_i32_148 = arith.constant 8 : i32
    %243 = arith.muli %c7_i32_147, %c8_i32_148 : i32
    %244 = tpu.assume_multiple %243, 8 : i32
    %245 = arith.index_cast %244 : i32 to index
    %c0_149 = arith.constant 0 : index
    %246 = vector.load %arg8[%245, %c0_149] : memref<64x20xf32, #tpu.memory_space<vmem>>, vector<8x20xf32>
    %cst_150 = arith.constant dense<0.000000e+00> : vector<8x20xf32>
    %247 = tpu.matmul %240, %169, %cst_150 {dimension_numbers = #tpu.dot_dimension_numbers<[1], [0], [0], [1], [0, 0, 1, 1], [], []>} : vector<8x20xf32>, vector<20x20xf32>, vector<8x20xf32> -> vector<8x20xf32>
    %248 = arith.addf %246, %247 : vector<8x20xf32>
    %249 = math.tanh %248 : vector<8x20xf32>
    %250 = arith.index_cast %244 : i32 to index
    %c0_151 = arith.constant 0 : index
    %251 = vector.load %arg8[%250, %c0_151] : memref<64x20xf32, #tpu.memory_space<vmem>>, vector<8x20xf32>
    tpu.vector_store %arg8[%250, %c0_151], %249 {strides = array<i32>} : memref<64x20xf32, #tpu.memory_space<vmem>>, vector<8x20xf32>,
    %c8_i32_152 = arith.constant 8 : i32
    %c3 = arith.constant 3 : index
    %c0_153 = arith.constant 0 : index
    %c0_154 = arith.constant 0 : index
    %252 = vector.load %arg3[%c3, %c0_153, %c0_154] : memref<5x20x20xf32, #tpu.memory_space<vmem>>, vector<1x20x20xf32>
    %253 = vector.shape_cast %252 : vector<1x20x20xf32> to vector<20x20xf32>
    %c0_155 = arith.constant 0 : index
    %c0_156 = arith.constant 0 : index
    %254 = vector.load %arg8[%c0_155, %c0_156] : memref<64x20xf32, #tpu.memory_space<vmem>>, vector<64x20xf32>
    %c2_157 = arith.constant 2 : index
    %c0_158 = arith.constant 0 : index
    %c0_159 = arith.constant 0 : index
    %255 = vector.load %arg2[%c2_157, %c0_158, %c0_159] : memref<4x20x20xf32, #tpu.memory_space<vmem>>, vector<1x20x20xf32>
    %256 = vector.shape_cast %255 : vector<1x20x20xf32> to vector<20x20xf32>
    %cst_160 = arith.constant dense<0.000000e+00> : vector<64x20xf32>
    %257 = tpu.matmul %254, %256, %cst_160 {dimension_numbers = #tpu.dot_dimension_numbers<[1], [0], [0], [1], [0, 0, 1, 1], [], []>} : vector<64x20xf32>, vector<20x20xf32>, vector<64x20xf32> -> vector<64x20xf32>
    %c3_161 = arith.constant 3 : index
    %c0_162 = arith.constant 0 : index
    %c0_163 = arith.constant 0 : index
    %258 = vector.load %arg4[%c3_161, %c0_162, %c0_163] : memref<5x1x20xf32, #tpu.memory_space<vmem>>, vector<1x1x20xf32>
    %259 = vector.shape_cast %258 : vector<1x1x20xf32> to vector<1x20xf32>
    %260 = vector.broadcast %259 : vector<1x20xf32> to vector<64x20xf32>
    %261 = arith.addf %257, %260 : vector<64x20xf32>
    %c0_164 = arith.constant 0 : index
    %c0_165 = arith.constant 0 : index
    %262 = vector.load %arg8[%c0_164, %c0_165] : memref<64x20xf32, #tpu.memory_space<vmem>>, vector<64x20xf32>
    tpu.vector_store %arg8[%c0_164, %c0_165], %261 {strides = array<i32>} : memref<64x20xf32, #tpu.memory_space<vmem>>, vector<64x20xf32>,
    %cst_166 = arith.constant 0.000000e+00 : f32
    %263 = vector.broadcast %cst_166 : f32 to vector<8x20xf32>
    %c0_i32_167 = arith.constant 0 : i32
    %c8_i32_168 = arith.constant 8 : i32
    %264 = arith.muli %c0_i32_167, %c8_i32_168 : i32
    %265 = tpu.assume_multiple %264, 8 : i32
    %266 = arith.index_cast %265 : i32 to index
    %c0_169 = arith.constant 0 : index
    %267 = vector.load %arg8[%266, %c0_169] : memref<64x20xf32, #tpu.memory_space<vmem>>, vector<8x20xf32>
    %cst_170 = arith.constant dense<0.000000e+00> : vector<8x20xf32>
    %268 = tpu.matmul %263, %253, %cst_170 {dimension_numbers = #tpu.dot_dimension_numbers<[1], [0], [0], [1], [0, 0, 1, 1], [], []>} : vector<8x20xf32>, vector<20x20xf32>, vector<8x20xf32> -> vector<8x20xf32>
    %269 = arith.addf %267, %268 : vector<8x20xf32>
    %270 = math.tanh %269 : vector<8x20xf32>
    %271 = arith.index_cast %265 : i32 to index
    %c0_171 = arith.constant 0 : index
    %272 = vector.load %arg8[%271, %c0_171] : memref<64x20xf32, #tpu.memory_space<vmem>>, vector<8x20xf32>
    tpu.vector_store %arg8[%271, %c0_171], %270 {strides = array<i32>} : memref<64x20xf32, #tpu.memory_space<vmem>>, vector<8x20xf32>,
    %c1_i32_172 = arith.constant 1 : i32
    %c8_i32_173 = arith.constant 8 : i32
    %273 = arith.muli %c1_i32_172, %c8_i32_173 : i32
    %274 = tpu.assume_multiple %273, 8 : i32
    %275 = arith.index_cast %274 : i32 to index
    %c0_174 = arith.constant 0 : index
    %276 = vector.load %arg8[%275, %c0_174] : memref<64x20xf32, #tpu.memory_space<vmem>>, vector<8x20xf32>
    %cst_175 = arith.constant dense<0.000000e+00> : vector<8x20xf32>
    %277 = tpu.matmul %270, %253, %cst_175 {dimension_numbers = #tpu.dot_dimension_numbers<[1], [0], [0], [1], [0, 0, 1, 1], [], []>} : vector<8x20xf32>, vector<20x20xf32>, vector<8x20xf32> -> vector<8x20xf32>
    %278 = arith.addf %276, %277 : vector<8x20xf32>
    %279 = math.tanh %278 : vector<8x20xf32>
    %280 = arith.index_cast %274 : i32 to index
    %c0_176 = arith.constant 0 : index
    %281 = vector.load %arg8[%280, %c0_176] : memref<64x20xf32, #tpu.memory_space<vmem>>, vector<8x20xf32>
    tpu.vector_store %arg8[%280, %c0_176], %279 {strides = array<i32>} : memref<64x20xf32, #tpu.memory_space<vmem>>, vector<8x20xf32>,
    %c2_i32_177 = arith.constant 2 : i32
    %c8_i32_178 = arith.constant 8 : i32
    %282 = arith.muli %c2_i32_177, %c8_i32_178 : i32
    %283 = tpu.assume_multiple %282, 8 : i32
    %284 = arith.index_cast %283 : i32 to index
    %c0_179 = arith.constant 0 : index
    %285 = vector.load %arg8[%284, %c0_179] : memref<64x20xf32, #tpu.memory_space<vmem>>, vector<8x20xf32>
    %cst_180 = arith.constant dense<0.000000e+00> : vector<8x20xf32>
    %286 = tpu.matmul %279, %253, %cst_180 {dimension_numbers = #tpu.dot_dimension_numbers<[1], [0], [0], [1], [0, 0, 1, 1], [], []>} : vector<8x20xf32>, vector<20x20xf32>, vector<8x20xf32> -> vector<8x20xf32>
    %287 = arith.addf %285, %286 : vector<8x20xf32>
    %288 = math.tanh %287 : vector<8x20xf32>
    %289 = arith.index_cast %283 : i32 to index
    %c0_181 = arith.constant 0 : index
    %290 = vector.load %arg8[%289, %c0_181] : memref<64x20xf32, #tpu.memory_space<vmem>>, vector<8x20xf32>
    tpu.vector_store %arg8[%289, %c0_181], %288 {strides = array<i32>} : memref<64x20xf32, #tpu.memory_space<vmem>>, vector<8x20xf32>,
    %c3_i32_182 = arith.constant 3 : i32
    %c8_i32_183 = arith.constant 8 : i32
    %291 = arith.muli %c3_i32_182, %c8_i32_183 : i32
    %292 = tpu.assume_multiple %291, 8 : i32
    %293 = arith.index_cast %292 : i32 to index
    %c0_184 = arith.constant 0 : index
    %294 = vector.load %arg8[%293, %c0_184] : memref<64x20xf32, #tpu.memory_space<vmem>>, vector<8x20xf32>
    %cst_185 = arith.constant dense<0.000000e+00> : vector<8x20xf32>
    %295 = tpu.matmul %288, %253, %cst_185 {dimension_numbers = #tpu.dot_dimension_numbers<[1], [0], [0], [1], [0, 0, 1, 1], [], []>} : vector<8x20xf32>, vector<20x20xf32>, vector<8x20xf32> -> vector<8x20xf32>
    %296 = arith.addf %294, %295 : vector<8x20xf32>
    %297 = math.tanh %296 : vector<8x20xf32>
    %298 = arith.index_cast %292 : i32 to index
    %c0_186 = arith.constant 0 : index
    %299 = vector.load %arg8[%298, %c0_186] : memref<64x20xf32, #tpu.memory_space<vmem>>, vector<8x20xf32>
    tpu.vector_store %arg8[%298, %c0_186], %297 {strides = array<i32>} : memref<64x20xf32, #tpu.memory_space<vmem>>, vector<8x20xf32>,
    %c4_i32_187 = arith.constant 4 : i32
    %c8_i32_188 = arith.constant 8 : i32
    %300 = arith.muli %c4_i32_187, %c8_i32_188 : i32
    %301 = tpu.assume_multiple %300, 8 : i32
    %302 = arith.index_cast %301 : i32 to index
    %c0_189 = arith.constant 0 : index
    %303 = vector.load %arg8[%302, %c0_189] : memref<64x20xf32, #tpu.memory_space<vmem>>, vector<8x20xf32>
    %cst_190 = arith.constant dense<0.000000e+00> : vector<8x20xf32>
    %304 = tpu.matmul %297, %253, %cst_190 {dimension_numbers = #tpu.dot_dimension_numbers<[1], [0], [0], [1], [0, 0, 1, 1], [], []>} : vector<8x20xf32>, vector<20x20xf32>, vector<8x20xf32> -> vector<8x20xf32>
    %305 = arith.addf %303, %304 : vector<8x20xf32>
    %306 = math.tanh %305 : vector<8x20xf32>
    %307 = arith.index_cast %301 : i32 to index
    %c0_191 = arith.constant 0 : index
    %308 = vector.load %arg8[%307, %c0_191] : memref<64x20xf32, #tpu.memory_space<vmem>>, vector<8x20xf32>
    tpu.vector_store %arg8[%307, %c0_191], %306 {strides = array<i32>} : memref<64x20xf32, #tpu.memory_space<vmem>>, vector<8x20xf32>,
    %c5_i32_192 = arith.constant 5 : i32
    %c8_i32_193 = arith.constant 8 : i32
    %309 = arith.muli %c5_i32_192, %c8_i32_193 : i32
    %310 = tpu.assume_multiple %309, 8 : i32
    %311 = arith.index_cast %310 : i32 to index
    %c0_194 = arith.constant 0 : index
    %312 = vector.load %arg8[%311, %c0_194] : memref<64x20xf32, #tpu.memory_space<vmem>>, vector<8x20xf32>
    %cst_195 = arith.constant dense<0.000000e+00> : vector<8x20xf32>
    %313 = tpu.matmul %306, %253, %cst_195 {dimension_numbers = #tpu.dot_dimension_numbers<[1], [0], [0], [1], [0, 0, 1, 1], [], []>} : vector<8x20xf32>, vector<20x20xf32>, vector<8x20xf32> -> vector<8x20xf32>
    %314 = arith.addf %312, %313 : vector<8x20xf32>
    %315 = math.tanh %314 : vector<8x20xf32>
    %316 = arith.index_cast %310 : i32 to index
    %c0_196 = arith.constant 0 : index
    %317 = vector.load %arg8[%316, %c0_196] : memref<64x20xf32, #tpu.memory_space<vmem>>, vector<8x20xf32>
    tpu.vector_store %arg8[%316, %c0_196], %315 {strides = array<i32>} : memref<64x20xf32, #tpu.memory_space<vmem>>, vector<8x20xf32>,
    %c6_i32_197 = arith.constant 6 : i32
    %c8_i32_198 = arith.constant 8 : i32
    %318 = arith.muli %c6_i32_197, %c8_i32_198 : i32
    %319 = tpu.assume_multiple %318, 8 : i32
    %320 = arith.index_cast %319 : i32 to index
    %c0_199 = arith.constant 0 : index
    %321 = vector.load %arg8[%320, %c0_199] : memref<64x20xf32, #tpu.memory_space<vmem>>, vector<8x20xf32>
    %cst_200 = arith.constant dense<0.000000e+00> : vector<8x20xf32>
    %322 = tpu.matmul %315, %253, %cst_200 {dimension_numbers = #tpu.dot_dimension_numbers<[1], [0], [0], [1], [0, 0, 1, 1], [], []>} : vector<8x20xf32>, vector<20x20xf32>, vector<8x20xf32> -> vector<8x20xf32>
    %323 = arith.addf %321, %322 : vector<8x20xf32>
    %324 = math.tanh %323 : vector<8x20xf32>
    %325 = arith.index_cast %319 : i32 to index
    %c0_201 = arith.constant 0 : index
    %326 = vector.load %arg8[%325, %c0_201] : memref<64x20xf32, #tpu.memory_space<vmem>>, vector<8x20xf32>
    tpu.vector_store %arg8[%325, %c0_201], %324 {strides = array<i32>} : memref<64x20xf32, #tpu.memory_space<vmem>>, vector<8x20xf32>,
    %c7_i32_202 = arith.constant 7 : i32
    %c8_i32_203 = arith.constant 8 : i32
    %327 = arith.muli %c7_i32_202, %c8_i32_203 : i32
    %328 = tpu.assume_multiple %327, 8 : i32
    %329 = arith.index_cast %328 : i32 to index
    %c0_204 = arith.constant 0 : index
    %330 = vector.load %arg8[%329, %c0_204] : memref<64x20xf32, #tpu.memory_space<vmem>>, vector<8x20xf32>
    %cst_205 = arith.constant dense<0.000000e+00> : vector<8x20xf32>
    %331 = tpu.matmul %324, %253, %cst_205 {dimension_numbers = #tpu.dot_dimension_numbers<[1], [0], [0], [1], [0, 0, 1, 1], [], []>} : vector<8x20xf32>, vector<20x20xf32>, vector<8x20xf32> -> vector<8x20xf32>
    %332 = arith.addf %330, %331 : vector<8x20xf32>
    %333 = math.tanh %332 : vector<8x20xf32>
    %334 = arith.index_cast %328 : i32 to index
    %c0_206 = arith.constant 0 : index
    %335 = vector.load %arg8[%334, %c0_206] : memref<64x20xf32, #tpu.memory_space<vmem>>, vector<8x20xf32>
    tpu.vector_store %arg8[%334, %c0_206], %333 {strides = array<i32>} : memref<64x20xf32, #tpu.memory_space<vmem>>, vector<8x20xf32>,
    %c8_i32_207 = arith.constant 8 : i32
    %c4 = arith.constant 4 : index
    %c0_208 = arith.constant 0 : index
    %c0_209 = arith.constant 0 : index
    %336 = vector.load %arg3[%c4, %c0_208, %c0_209] : memref<5x20x20xf32, #tpu.memory_space<vmem>>, vector<1x20x20xf32>
    %337 = vector.shape_cast %336 : vector<1x20x20xf32> to vector<20x20xf32>
    %c0_210 = arith.constant 0 : index
    %c0_211 = arith.constant 0 : index
    %338 = vector.load %arg8[%c0_210, %c0_211] : memref<64x20xf32, #tpu.memory_space<vmem>>, vector<64x20xf32>
    %c3_212 = arith.constant 3 : index
    %c0_213 = arith.constant 0 : index
    %c0_214 = arith.constant 0 : index
    %339 = vector.load %arg2[%c3_212, %c0_213, %c0_214] : memref<4x20x20xf32, #tpu.memory_space<vmem>>, vector<1x20x20xf32>
    %340 = vector.shape_cast %339 : vector<1x20x20xf32> to vector<20x20xf32>
    %cst_215 = arith.constant dense<0.000000e+00> : vector<64x20xf32>
    %341 = tpu.matmul %338, %340, %cst_215 {dimension_numbers = #tpu.dot_dimension_numbers<[1], [0], [0], [1], [0, 0, 1, 1], [], []>} : vector<64x20xf32>, vector<20x20xf32>, vector<64x20xf32> -> vector<64x20xf32>
    %c4_216 = arith.constant 4 : index
    %c0_217 = arith.constant 0 : index
    %c0_218 = arith.constant 0 : index
    %342 = vector.load %arg4[%c4_216, %c0_217, %c0_218] : memref<5x1x20xf32, #tpu.memory_space<vmem>>, vector<1x1x20xf32>
    %343 = vector.shape_cast %342 : vector<1x1x20xf32> to vector<1x20xf32>
    %344 = vector.broadcast %343 : vector<1x20xf32> to vector<64x20xf32>
    %345 = arith.addf %341, %344 : vector<64x20xf32>
    %c0_219 = arith.constant 0 : index
    %c0_220 = arith.constant 0 : index
    %346 = vector.load %arg8[%c0_219, %c0_220] : memref<64x20xf32, #tpu.memory_space<vmem>>, vector<64x20xf32>
    tpu.vector_store %arg8[%c0_219, %c0_220], %345 {strides = array<i32>} : memref<64x20xf32, #tpu.memory_space<vmem>>, vector<64x20xf32>,
    %cst_221 = arith.constant 0.000000e+00 : f32
    %347 = vector.broadcast %cst_221 : f32 to vector<8x20xf32>
    %c0_i32_222 = arith.constant 0 : i32
    %c8_i32_223 = arith.constant 8 : i32
    %348 = arith.muli %c0_i32_222, %c8_i32_223 : i32
    %349 = tpu.assume_multiple %348, 8 : i32
    %350 = arith.index_cast %349 : i32 to index
    %c0_224 = arith.constant 0 : index
    %351 = vector.load %arg8[%350, %c0_224] : memref<64x20xf32, #tpu.memory_space<vmem>>, vector<8x20xf32>
    %cst_225 = arith.constant dense<0.000000e+00> : vector<8x20xf32>
    %352 = tpu.matmul %347, %337, %cst_225 {dimension_numbers = #tpu.dot_dimension_numbers<[1], [0], [0], [1], [0, 0, 1, 1], [], []>} : vector<8x20xf32>, vector<20x20xf32>, vector<8x20xf32> -> vector<8x20xf32>
    %353 = arith.addf %351, %352 : vector<8x20xf32>
    %354 = math.tanh %353 : vector<8x20xf32>
    %355 = arith.index_cast %349 : i32 to index
    %c0_226 = arith.constant 0 : index
    %356 = vector.load %arg8[%355, %c0_226] : memref<64x20xf32, #tpu.memory_space<vmem>>, vector<8x20xf32>
    tpu.vector_store %arg8[%355, %c0_226], %354 {strides = array<i32>} : memref<64x20xf32, #tpu.memory_space<vmem>>, vector<8x20xf32>,
    %c1_i32_227 = arith.constant 1 : i32
    %c8_i32_228 = arith.constant 8 : i32
    %357 = arith.muli %c1_i32_227, %c8_i32_228 : i32
    %358 = tpu.assume_multiple %357, 8 : i32
    %359 = arith.index_cast %358 : i32 to index
    %c0_229 = arith.constant 0 : index
    %360 = vector.load %arg8[%359, %c0_229] : memref<64x20xf32, #tpu.memory_space<vmem>>, vector<8x20xf32>
    %cst_230 = arith.constant dense<0.000000e+00> : vector<8x20xf32>
    %361 = tpu.matmul %354, %337, %cst_230 {dimension_numbers = #tpu.dot_dimension_numbers<[1], [0], [0], [1], [0, 0, 1, 1], [], []>} : vector<8x20xf32>, vector<20x20xf32>, vector<8x20xf32> -> vector<8x20xf32>
    %362 = arith.addf %360, %361 : vector<8x20xf32>
    %363 = math.tanh %362 : vector<8x20xf32>
    %364 = arith.index_cast %358 : i32 to index
    %c0_231 = arith.constant 0 : index
    %365 = vector.load %arg8[%364, %c0_231] : memref<64x20xf32, #tpu.memory_space<vmem>>, vector<8x20xf32>
    tpu.vector_store %arg8[%364, %c0_231], %363 {strides = array<i32>} : memref<64x20xf32, #tpu.memory_space<vmem>>, vector<8x20xf32>,
    %c2_i32_232 = arith.constant 2 : i32
    %c8_i32_233 = arith.constant 8 : i32
    %366 = arith.muli %c2_i32_232, %c8_i32_233 : i32
    %367 = tpu.assume_multiple %366, 8 : i32
    %368 = arith.index_cast %367 : i32 to index
    %c0_234 = arith.constant 0 : index
    %369 = vector.load %arg8[%368, %c0_234] : memref<64x20xf32, #tpu.memory_space<vmem>>, vector<8x20xf32>
    %cst_235 = arith.constant dense<0.000000e+00> : vector<8x20xf32>
    %370 = tpu.matmul %363, %337, %cst_235 {dimension_numbers = #tpu.dot_dimension_numbers<[1], [0], [0], [1], [0, 0, 1, 1], [], []>} : vector<8x20xf32>, vector<20x20xf32>, vector<8x20xf32> -> vector<8x20xf32>
    %371 = arith.addf %369, %370 : vector<8x20xf32>
    %372 = math.tanh %371 : vector<8x20xf32>
    %373 = arith.index_cast %367 : i32 to index
    %c0_236 = arith.constant 0 : index
    %374 = vector.load %arg8[%373, %c0_236] : memref<64x20xf32, #tpu.memory_space<vmem>>, vector<8x20xf32>
    tpu.vector_store %arg8[%373, %c0_236], %372 {strides = array<i32>} : memref<64x20xf32, #tpu.memory_space<vmem>>, vector<8x20xf32>,
    %c3_i32_237 = arith.constant 3 : i32
    %c8_i32_238 = arith.constant 8 : i32
    %375 = arith.muli %c3_i32_237, %c8_i32_238 : i32
    %376 = tpu.assume_multiple %375, 8 : i32
    %377 = arith.index_cast %376 : i32 to index
    %c0_239 = arith.constant 0 : index
    %378 = vector.load %arg8[%377, %c0_239] : memref<64x20xf32, #tpu.memory_space<vmem>>, vector<8x20xf32>
    %cst_240 = arith.constant dense<0.000000e+00> : vector<8x20xf32>
    %379 = tpu.matmul %372, %337, %cst_240 {dimension_numbers = #tpu.dot_dimension_numbers<[1], [0], [0], [1], [0, 0, 1, 1], [], []>} : vector<8x20xf32>, vector<20x20xf32>, vector<8x20xf32> -> vector<8x20xf32>
    %380 = arith.addf %378, %379 : vector<8x20xf32>
    %381 = math.tanh %380 : vector<8x20xf32>
    %382 = arith.index_cast %376 : i32 to index
    %c0_241 = arith.constant 0 : index
    %383 = vector.load %arg8[%382, %c0_241] : memref<64x20xf32, #tpu.memory_space<vmem>>, vector<8x20xf32>
    tpu.vector_store %arg8[%382, %c0_241], %381 {strides = array<i32>} : memref<64x20xf32, #tpu.memory_space<vmem>>, vector<8x20xf32>,
    %c4_i32_242 = arith.constant 4 : i32
    %c8_i32_243 = arith.constant 8 : i32
    %384 = arith.muli %c4_i32_242, %c8_i32_243 : i32
    %385 = tpu.assume_multiple %384, 8 : i32
    %386 = arith.index_cast %385 : i32 to index
    %c0_244 = arith.constant 0 : index
    %387 = vector.load %arg8[%386, %c0_244] : memref<64x20xf32, #tpu.memory_space<vmem>>, vector<8x20xf32>
    %cst_245 = arith.constant dense<0.000000e+00> : vector<8x20xf32>
    %388 = tpu.matmul %381, %337, %cst_245 {dimension_numbers = #tpu.dot_dimension_numbers<[1], [0], [0], [1], [0, 0, 1, 1], [], []>} : vector<8x20xf32>, vector<20x20xf32>, vector<8x20xf32> -> vector<8x20xf32>
    %389 = arith.addf %387, %388 : vector<8x20xf32>
    %390 = math.tanh %389 : vector<8x20xf32>
    %391 = arith.index_cast %385 : i32 to index
    %c0_246 = arith.constant 0 : index
    %392 = vector.load %arg8[%391, %c0_246] : memref<64x20xf32, #tpu.memory_space<vmem>>, vector<8x20xf32>
    tpu.vector_store %arg8[%391, %c0_246], %390 {strides = array<i32>} : memref<64x20xf32, #tpu.memory_space<vmem>>, vector<8x20xf32>,
    %c5_i32_247 = arith.constant 5 : i32
    %c8_i32_248 = arith.constant 8 : i32
    %393 = arith.muli %c5_i32_247, %c8_i32_248 : i32
    %394 = tpu.assume_multiple %393, 8 : i32
    %395 = arith.index_cast %394 : i32 to index
    %c0_249 = arith.constant 0 : index
    %396 = vector.load %arg8[%395, %c0_249] : memref<64x20xf32, #tpu.memory_space<vmem>>, vector<8x20xf32>
    %cst_250 = arith.constant dense<0.000000e+00> : vector<8x20xf32>
    %397 = tpu.matmul %390, %337, %cst_250 {dimension_numbers = #tpu.dot_dimension_numbers<[1], [0], [0], [1], [0, 0, 1, 1], [], []>} : vector<8x20xf32>, vector<20x20xf32>, vector<8x20xf32> -> vector<8x20xf32>
    %398 = arith.addf %396, %397 : vector<8x20xf32>
    %399 = math.tanh %398 : vector<8x20xf32>
    %400 = arith.index_cast %394 : i32 to index
    %c0_251 = arith.constant 0 : index
    %401 = vector.load %arg8[%400, %c0_251] : memref<64x20xf32, #tpu.memory_space<vmem>>, vector<8x20xf32>
    tpu.vector_store %arg8[%400, %c0_251], %399 {strides = array<i32>} : memref<64x20xf32, #tpu.memory_space<vmem>>, vector<8x20xf32>,
    %c6_i32_252 = arith.constant 6 : i32
    %c8_i32_253 = arith.constant 8 : i32
    %402 = arith.muli %c6_i32_252, %c8_i32_253 : i32
    %403 = tpu.assume_multiple %402, 8 : i32
    %404 = arith.index_cast %403 : i32 to index
    %c0_254 = arith.constant 0 : index
    %405 = vector.load %arg8[%404, %c0_254] : memref<64x20xf32, #tpu.memory_space<vmem>>, vector<8x20xf32>
    %cst_255 = arith.constant dense<0.000000e+00> : vector<8x20xf32>
    %406 = tpu.matmul %399, %337, %cst_255 {dimension_numbers = #tpu.dot_dimension_numbers<[1], [0], [0], [1], [0, 0, 1, 1], [], []>} : vector<8x20xf32>, vector<20x20xf32>, vector<8x20xf32> -> vector<8x20xf32>
    %407 = arith.addf %405, %406 : vector<8x20xf32>
    %408 = math.tanh %407 : vector<8x20xf32>
    %409 = arith.index_cast %403 : i32 to index
    %c0_256 = arith.constant 0 : index
    %410 = vector.load %arg8[%409, %c0_256] : memref<64x20xf32, #tpu.memory_space<vmem>>, vector<8x20xf32>
    tpu.vector_store %arg8[%409, %c0_256], %408 {strides = array<i32>} : memref<64x20xf32, #tpu.memory_space<vmem>>, vector<8x20xf32>,
    %c7_i32_257 = arith.constant 7 : i32
    %c8_i32_258 = arith.constant 8 : i32
    %411 = arith.muli %c7_i32_257, %c8_i32_258 : i32
    %412 = tpu.assume_multiple %411, 8 : i32
    %413 = arith.index_cast %412 : i32 to index
    %c0_259 = arith.constant 0 : index
    %414 = vector.load %arg8[%413, %c0_259] : memref<64x20xf32, #tpu.memory_space<vmem>>, vector<8x20xf32>
    %cst_260 = arith.constant dense<0.000000e+00> : vector<8x20xf32>
    %415 = tpu.matmul %408, %337, %cst_260 {dimension_numbers = #tpu.dot_dimension_numbers<[1], [0], [0], [1], [0, 0, 1, 1], [], []>} : vector<8x20xf32>, vector<20x20xf32>, vector<8x20xf32> -> vector<8x20xf32>
    %416 = arith.addf %414, %415 : vector<8x20xf32>
    %417 = math.tanh %416 : vector<8x20xf32>
    %418 = arith.index_cast %412 : i32 to index
    %c0_261 = arith.constant 0 : index
    %419 = vector.load %arg8[%418, %c0_261] : memref<64x20xf32, #tpu.memory_space<vmem>>, vector<8x20xf32>
    tpu.vector_store %arg8[%418, %c0_261], %417 {strides = array<i32>} : memref<64x20xf32, #tpu.memory_space<vmem>>, vector<8x20xf32>,
    %c8_i32_262 = arith.constant 8 : i32
    %c56 = arith.constant 56 : index
    %c0_263 = arith.constant 0 : index
    %420 = vector.load %arg8[%c56, %c0_263] : memref<64x20xf32, #tpu.memory_space<vmem>>, vector<8x20xf32>
    %c0_264 = arith.constant 0 : index
    %c0_265 = arith.constant 0 : index
    %421 = vector.load %arg5[%c0_264, %c0_265] : memref<20x128xf32, #tpu.memory_space<vmem>>, vector<20x128xf32>
    %cst_266 = arith.constant dense<0.000000e+00> : vector<8x128xf32>
    %422 = tpu.matmul %420, %421, %cst_266 {dimension_numbers = #tpu.dot_dimension_numbers<[1], [0], [0], [1], [0, 0, 1, 1], [], []>} : vector<8x20xf32>, vector<20x128xf32>, vector<8x128xf32> -> vector<8x128xf32>
    %c0_267 = arith.constant 0 : index
    %c0_268 = arith.constant 0 : index
    %423 = vector.load %arg6[%c0_267, %c0_268] : memref<1x128xf32, #tpu.memory_space<vmem>>, vector<1x128xf32>
    %424 = vector.broadcast %423 : vector<1x128xf32> to vector<8x128xf32>
    %425 = arith.addf %422, %424 : vector<8x128xf32>
    %c0_269 = arith.constant 0 : index
    %c0_270 = arith.constant 0 : index
    %426 = vector.load %arg7[%c0_269, %c0_270] : memref<8x128xf32, #tpu.memory_space<vmem>>, vector<8x128xf32>
    tpu.vector_store %arg7[%c0_269, %c0_270], %425 {strides = array<i32>} : memref<8x128xf32, #tpu.memory_space<vmem>>, vector<8x128xf32>,
    return
  }
}

</mosaic_0001>

<llo_original>
// kernel: tpu_custom_call.1
$region0: #{tpu_custom_call.1}
  #allocation0 [shape = 'u32[]', space=smem, size = 0x4, offset = 0x4, fixed_abs, tag = 'smem constant byte address 0x4 - core index']
  #allocation1 [shape = 'u32[144,128]{1,0:T(1,128)}', space=vmem, size = 0x12000, scoped, tag = 'internal scratch']
  #allocation2 [shape = 'f32[64,20]{1,0:T(8,128)}', space=vmem, size = 0x8000, scoped, tag = 'scratch operand']
  %s0 = inlined_call_operand.vmem [shape: f32[64,20], index: 0, kind: input, shape index: {}]
  %s1 = inlined_call_operand.vmem [shape: f32[1,20], index: 1, kind: input, shape index: {}]
  %s2 = inlined_call_operand.vmem [shape: f32[4,20,20], index: 2, kind: input, shape index: {}]
  %s3 = inlined_call_operand.vmem [shape: f32[5,20,20], index: 3, kind: input, shape index: {}]
  %s4 = inlined_call_operand.vmem [shape: f32[5,1,20], index: 4, kind: input, shape index: {}]
  %s5 = inlined_call_operand.vmem [shape: f32[20,128], index: 5, kind: input, shape index: {}]
  %s6 = inlined_call_operand.vmem [shape: f32[1,128], index: 6, kind: input, shape index: {}]
  %s7 = inlined_call_operand.hbm [shape: f32[8,128], index: 7, kind: output, shape index: {}]
  %s8 = sld [smem:[#allocation0]]
  $region38: #{tpu_custom_call.1} parent=0
    _
  %s10 = ssub.s32 1, %s8
  %s11 = scalar_select 0, %s10, %s8
  $region1: #{tpu_custom_call.1} parent=0
    #allocation3 [shape = 'u8[4096]{0}', space=vmem, size = 0x1000, scoped, tag = 'output window, operand 0, single buffered']
    #allocation4 [shape = 's32[1]{0}', space=sflag, size = 0x4, scoped, tag = 'scoped memory for tpu_custom_call.1']
    %12 = vsyncpa [#allocation4], 0
    // Predicated region
    $region2: #{tpu_custom_call.1} parent=1 // pred_check
      _
    $region3: #{tpu_custom_call.1} parent=1 // pred_check_branch
      %14 = sbr.rel (0) target = $region5
    $region4: #{tpu_custom_call.1} parent=1 // pred_region
      _
    $region5: #{tpu_custom_call.1} parent=1 // pred_fallthru
      _
    // Predicated region
    $region6: #{tpu_custom_call.1} parent=1 // pred_check
      _
    $region7: #{tpu_custom_call.1} parent=1 // pred_check_branch
      %16 = sbr.rel (0) target = $region9
    $region8: #{tpu_custom_call.1} parent=1 // pred_region
      _
    $region9: #{tpu_custom_call.1} parent=1 // pred_fallthru
      _
    // Predicated region
    $region10: #{tpu_custom_call.1} parent=1 // pred_check
      _
    $region11: #{tpu_custom_call.1} parent=1 // pred_check_branch
      %18 = sbr.rel (0) target = $region13
    $region12: #{tpu_custom_call.1} parent=1 // pred_region
      _
    $region13: #{tpu_custom_call.1} parent=1 // pred_fallthru
      _
    // Predicated region
    $region14: #{tpu_custom_call.1} parent=1 // pred_check
      _
    $region15: #{tpu_custom_call.1} parent=1 // pred_check_branch
      %20 = sbr.rel (0) target = $region17
    $region16: #{tpu_custom_call.1} parent=1 // pred_region
      _
    $region17: #{tpu_custom_call.1} parent=1 // pred_fallthru
      _
    // Predicated region
    $region18: #{tpu_custom_call.1} parent=1 // pred_check
      _
    $region19: #{tpu_custom_call.1} parent=1 // pred_check_branch
      %22 = sbr.rel (0) target = $region21
    $region20: #{tpu_custom_call.1} parent=1 // pred_region
      _
    $region21: #{tpu_custom_call.1} parent=1 // pred_fallthru
      _
    // Predicated region
    $region22: #{tpu_custom_call.1} parent=1 // pred_check
      _
    $region23: #{tpu_custom_call.1} parent=1 // pred_check_branch
      %24 = sbr.rel (0) target = $region25
    $region24: #{tpu_custom_call.1} parent=1 // pred_region
      _
    $region25: #{tpu_custom_call.1} parent=1 // pred_fallthru
      _
    // Predicated region
    $region26: #{tpu_custom_call.1} parent=1 // pred_check
      _
    $region27: #{tpu_custom_call.1} parent=1 // pred_check_branch
      %26 = sbr.rel (0) target = $region29
    $region28: #{tpu_custom_call.1} parent=1 // pred_region
      _
    $region29: #{tpu_custom_call.1} parent=1 // pred_fallthru
      _
    %v27 = vld [vmem:[%s0] sm:$0xff]
    %v28 = vld [vmem:[%s0 + $0x8] sm:$0xff]
    %v29 = vld [vmem:[%s0 + $0x10] sm:$0xff]
    %v30 = vld [vmem:[%s0 + $0x18] sm:$0xff]
    %v31 = vld [vmem:[%s0 + $0x20] sm:$0xff]
    %v32 = vld [vmem:[%s0 + $0x28] sm:$0xff]
    %v33 = vld [vmem:[%s0 + $0x30] sm:$0xff]
    %v34 = vld [vmem:[%s0 + $0x38] sm:$0xff]
    %v35 = vld [vmem:[%s1] sm:$0x1]
    %v37 = vlaneseq
    %v38 = vshrl.u32 %v37, 7
    %v39 = vsub.s32 0, %v38
    %v40 = vrot.slane %v35, %v39
    %v42 = vmul.f32 %v27, %v40
    %v43 = vmul.f32 %v28, %v40
    %v44 = vmul.f32 %v29, %v40
    %v45 = vmul.f32 %v30, %v40
    %v46 = vmul.f32 %v31, %v40
    %v47 = vmul.f32 %v32, %v40
    %v48 = vmul.f32 %v33, %v40
    %v49 = vmul.f32 %v34, %v40
    %v50 = vld [vmem:[%s4] sm:$0x1]
    %v52 = vlaneseq
    %v53 = vshrl.u32 %v52, 7
    %v54 = vsub.s32 0, %v53
    %v55 = vrot.slane %v50, %v54
    %v57 = vadd.f32 %v42, %v55
    %v58 = vadd.f32 %v43, %v55
    %v59 = vadd.f32 %v44, %v55
    %v60 = vadd.f32 %v45, %v55
    %v61 = vadd.f32 %v46, %v55
    %v62 = vadd.f32 %v47, %v55
    %v63 = vadd.f32 %v48, %v55
    %v64 = vadd.f32 %v49, %v55
    %vm65 = vcmask 162816
    %66 = vst.msk [vmem:[#allocation2] sm:$0xff] %vm65, %v57
    %67 = vst.msk [vmem:[#allocation2 + $0x8] sm:$0xff] %vm65, %v58
    %68 = vst.msk [vmem:[#allocation2 + $0x10] sm:$0xff] %vm65, %v59
    %69 = vst.msk [vmem:[#allocation2 + $0x18] sm:$0xff] %vm65, %v60
    %70 = vst.msk [vmem:[#allocation2 + $0x20] sm:$0xff] %vm65, %v61
    %71 = vst.msk [vmem:[#allocation2 + $0x28] sm:$0xff] %vm65, %v62
    %72 = vst.msk [vmem:[#allocation2 + $0x30] sm:$0xff] %vm65, %v63
    %73 = vst.msk [vmem:[#allocation2 + $0x38] sm:$0xff] %vm65, %v64
    %v74 = vld [vmem:[%s3] sm:$0xff]
    %v75 = vld [vmem:[%s3 + $0x8] sm:$0xff]
    %v76 = vld [vmem:[%s3 + $0x10] sm:$0xf]
    %v77 = vld [vmem:[#allocation2] sm:$0xff]
    %v79 = vsel %vm65, 0.0, 0
    %vm81 = vcmask 1043456
    %v83 = vsel %vm81, %v76, 0
    %85 = vmatprep.subr.mxu0 0.0
    %86 = vmatpush1.msra.mxu0 %v74
    %87 = vmatprep.subr.mxu0 0.0
    %88 = vmatpush1.msra.mxu0 %v75
    %89 = vmatprep.subr.mxu0 0.0
    %90 = vmatpush1.msra.mxu0 %v83
    %91 = vmatprep.subr.mxu0 0.0
    %92 = vmatpush1.msra.mxu0 0.0
    %93 = vmatprep.subr.mxu0 0.0
    %94 = vmatpush1.msra.mxu0 0.0
    %95 = vmatprep.subr.mxu0 0.0
    %96 = vmatpush1.msra.mxu0 0.0
    %97 = vmatprep.subr.mxu0 0.0
    %98 = vmatpush1.msra.mxu0 0.0
    %99 = vmatprep.subr.mxu0 0.0
    %100 = vmatpush1.msra.mxu0 0.0
    %101 = vmatprep.subr.mxu0 0.0
    %102 = vmatpush1.msra.mxu0 0.0
    %103 = vmatprep.subr.mxu0 0.0
    %104 = vmatpush1.msra.mxu0 0.0
    %105 = vmatprep.subr.mxu0 0.0
    %106 = vmatpush1.msra.mxu0 0.0
    %107 = vmatprep.subr.mxu0 0.0
    %108 = vmatpush1.msra.mxu0 0.0
    %109 = vmatprep.subr.mxu0 0.0
    %110 = vmatpush1.msra.mxu0 0.0
    %111 = vmatprep.subr.mxu0 0.0
    %112 = vmatpush1.msra.mxu0 0.0
    %113 = vmatprep.subr.mxu0 0.0
    %114 = vmatpush1.msra.mxu0 0.0
    %115 = vmatprep.subr.mxu0 0.0
    %116 = vmatpush1.msra.mxu0 0.0
    %117 = vmatprep.subr.mxu0 0.0
    %118 = vmatpush1.msra.mxu0 0.0
    %119 = vmatprep.subr.mxu0 0.0
    %120 = vmatpush1.msra.mxu0 0.0
    %121 = vmatprep.subr.mxu0 0.0
    %122 = vmatpush1.msra.mxu0 0.0
    %123 = vmatprep.subr.mxu0 0.0
    %124 = vmatpush1.msra.mxu0 0.0
    %125 = vmatprep.subr.mxu0 0.0
    %126 = vmatpush1.msra.mxu0 0.0
    %127 = vmatprep.subr.mxu0 0.0
    %128 = vmatpush1.msra.mxu0 0.0
    %129 = vmatprep.subr.mxu0 0.0
    %130 = vmatpush1.msra.mxu0 0.0
    %131 = vmatprep.subr.mxu0 0.0
    %132 = vmatpush1.msra.mxu0 0.0
    %133 = vmatprep.subr.mxu0 0.0
    %134 = vmatpush1.msra.mxu0 0.0
    %135 = vmatprep.subr.mxu0 0.0
    %136 = vmatpush1.msra.mxu0 0.0
    %137 = vmatprep.subr.mxu0 0.0
    %138 = vmatpush1.msra.mxu0 0.0
    %139 = vmatprep.subr.mxu0 0.0
    %140 = vmatpush1.msra.mxu0 0.0
    %141 = vmatprep.subr.mxu0 0.0
    %142 = vmatpush1.msra.mxu0 0.0
    %143 = vmatprep.subr.mxu0 0.0
    %144 = vmatpush1.msra.mxu0 0.0
    %145 = vmatprep.subr.mxu0 0.0
    %146 = vmatpush1.msra.mxu0 0.0
    %147 = vmatprep.subr.mxu0 0.0
    %148 = vmatpush1.msra.mxu0 0.0
    %149 = vmatprep.mubr.f32.mxu0 0.0
    %150 = vmatmul.mubr.f32.gmra.mrb[0].mxu0 %v79
    %v151 = vpop.f32.mrb[0].mxu0
    %v152 = vadd.f32 0.0, %v151
    %v153 = vpop.f32.mrb[0].mxu0
    %154 = vdwg.mxu0
    %v155 = vadd.f32 %v77, %v152
    %v156 = vtanh.pop %v155
    %157 = vst.msk [vmem:[#allocation2] sm:$0xff] %vm65, %v156
    %s158 = scalar_lea.vmem [#allocation2], 8
    %v159 = vld [vmem:[%s158] sm:$0xff]
    %v161 = vsel %vm65, %v156, 0
    %163 = vmatprep.subr.mxu0 0.0
    %164 = vmatpush1.msra.mxu0 %v74
    %165 = vmatprep.subr.mxu0 0.0
    %166 = vmatpush1.msra.mxu0 %v75
    %167 = vmatprep.subr.mxu0 0.0
    %168 = vmatpush1.msra.mxu0 %v83
    %169 = vmatprep.subr.mxu0 0.0
    %170 = vmatpush1.msra.mxu0 0.0
    %171 = vmatprep.subr.mxu0 0.0
    %172 = vmatpush1.msra.mxu0 0.0
    %173 = vmatprep.subr.mxu0 0.0
    %174 = vmatpush1.msra.mxu0 0.0
    %175 = vmatprep.subr.mxu0 0.0
    %176 = vmatpush1.msra.mxu0 0.0
    %177 = vmatprep.subr.mxu0 0.0
    %178 = vmatpush1.msra.mxu0 0.0
    %179 = vmatprep.subr.mxu0 0.0
    %180 = vmatpush1.msra.mxu0 0.0
    %181 = vmatprep.subr.mxu0 0.0
    %182 = vmatpush1.msra.mxu0 0.0
    %183 = vmatprep.subr.mxu0 0.0
    %184 = vmatpush1.msra.mxu0 0.0
    %185 = vmatprep.subr.mxu0 0.0
    %186 = vmatpush1.msra.mxu0 0.0
    %187 = vmatprep.subr.mxu0 0.0
    %188 = vmatpush1.msra.mxu0 0.0
    %189 = vmatprep.subr.mxu0 0.0
    %190 = vmatpush1.msra.mxu0 0.0
    %191 = vmatprep.subr.mxu0 0.0
    %192 = vmatpush1.msra.mxu0 0.0
    %193 = vmatprep.subr.mxu0 0.0
    %194 = vmatpush1.msra.mxu0 0.0
    %195 = vmatprep.subr.mxu0 0.0
    %196 = vmatpush1.msra.mxu0 0.0
    %197 = vmatprep.subr.mxu0 0.0
    %198 = vmatpush1.msra.mxu0 0.0
    %199 = vmatprep.subr.mxu0 0.0
    %200 = vmatpush1.msra.mxu0 0.0
    %201 = vmatprep.subr.mxu0 0.0
    %202 = vmatpush1.msra.mxu0 0.0
    %203 = vmatprep.subr.mxu0 0.0
    %204 = vmatpush1.msra.mxu0 0.0
    %205 = vmatprep.subr.mxu0 0.0
    %206 = vmatpush1.msra.mxu0 0.0
    %207 = vmatprep.subr.mxu0 0.0
    %208 = vmatpush1.msra.mxu0 0.0
    %209 = vmatprep.subr.mxu0 0.0
    %210 = vmatpush1.msra.mxu0 0.0
    %211 = vmatprep.subr.mxu0 0.0
    %212 = vmatpush1.msra.mxu0 0.0
    %213 = vmatprep.subr.mxu0 0.0
    %214 = vmatpush1.msra.mxu0 0.0
    %215 = vmatprep.subr.mxu0 0.0
    %216 = vmatpush1.msra.mxu0 0.0
    %217 = vmatprep.subr.mxu0 0.0
    %218 = vmatpush1.msra.mxu0 0.0
    %219 = vmatprep.subr.mxu0 0.0
    %220 = vmatpush1.msra.mxu0 0.0
    %221 = vmatprep.subr.mxu0 0.0
    %222 = vmatpush1.msra.mxu0 0.0
    %223 = vmatprep.subr.mxu0 0.0
    %224 = vmatpush1.msra.mxu0 0.0
    %225 = vmatprep.subr.mxu0 0.0
    %226 = vmatpush1.msra.mxu0 0.0
    %227 = vmatprep.mubr.f32.mxu0 0.0
    %228 = vmatmul.mubr.f32.gmra.mrb[0].mxu0 %v161
    %v229 = vpop.f32.mrb[0].mxu0
    %v230 = vadd.f32 0.0, %v229
    %v231 = vpop.f32.mrb[0].mxu0
    %232 = vdwg.mxu0
    %v233 = vadd.f32 %v159, %v230
    %v234 = vtanh.pop %v233
    %235 = vst.msk [vmem:[%s158] sm:$0xff] %vm65, %v234
    %s236 = scalar_lea.vmem [#allocation2], 16
    %v237 = vld [vmem:[%s236] sm:$0xff]
    %v239 = vsel %vm65, %v234, 0
    %241 = vmatprep.subr.mxu0 0.0
    %242 = vmatpush1.msra.mxu0 %v74
    %243 = vmatprep.subr.mxu0 0.0
    %244 = vmatpush1.msra.mxu0 %v75
    %245 = vmatprep.subr.mxu0 0.0
    %246 = vmatpush1.msra.mxu0 %v83
    %247 = vmatprep.subr.mxu0 0.0
    %248 = vmatpush1.msra.mxu0 0.0
    %249 = vmatprep.subr.mxu0 0.0
    %250 = vmatpush1.msra.mxu0 0.0
    %251 = vmatprep.subr.mxu0 0.0
    %252 = vmatpush1.msra.mxu0 0.0
    %253 = vmatprep.subr.mxu0 0.0
    %254 = vmatpush1.msra.mxu0 0.0
    %255 = vmatprep.subr.mxu0 0.0
    %256 = vmatpush1.msra.mxu0 0.0
    %257 = vmatprep.subr.mxu0 0.0
    %258 = vmatpush1.msra.mxu0 0.0
    %259 = vmatprep.subr.mxu0 0.0
    %260 = vmatpush1.msra.mxu0 0.0
    %261 = vmatprep.subr.mxu0 0.0
    %262 = vmatpush1.msra.mxu0 0.0
    %263 = vmatprep.subr.mxu0 0.0
    %264 = vmatpush1.msra.mxu0 0.0
    %265 = vmatprep.subr.mxu0 0.0
    %266 = vmatpush1.msra.mxu0 0.0
    %267 = vmatprep.subr.mxu0 0.0
    %268 = vmatpush1.msra.mxu0 0.0
    %269 = vmatprep.subr.mxu0 0.0
    %270 = vmatpush1.msra.mxu0 0.0
    %271 = vmatprep.subr.mxu0 0.0
    %272 = vmatpush1.msra.mxu0 0.0
    %273 = vmatprep.subr.mxu0 0.0
    %274 = vmatpush1.msra.mxu0 0.0
    %275 = vmatprep.subr.mxu0 0.0
    %276 = vmatpush1.msra.mxu0 0.0
    %277 = vmatprep.subr.mxu0 0.0
    %278 = vmatpush1.msra.mxu0 0.0
    %279 = vmatprep.subr.mxu0 0.0
    %280 = vmatpush1.msra.mxu0 0.0
    %281 = vmatprep.subr.mxu0 0.0
    %282 = vmatpush1.msra.mxu0 0.0
    %283 = vmatprep.subr.mxu0 0.0
    %284 = vmatpush1.msra.mxu0 0.0
    %285 = vmatprep.subr.mxu0 0.0
    %286 = vmatpush1.msra.mxu0 0.0
    %287 = vmatprep.subr.mxu0 0.0
    %288 = vmatpush1.msra.mxu0 0.0
    %289 = vmatprep.subr.mxu0 0.0
    %290 = vmatpush1.msra.mxu0 0.0
    %291 = vmatprep.subr.mxu0 0.0
    %292 = vmatpush1.msra.mxu0 0.0
    %293 = vmatprep.subr.mxu0 0.0
    %294 = vmatpush1.msra.mxu0 0.0
    %295 = vmatprep.subr.mxu0 0.0
    %296 = vmatpush1.msra.mxu0 0.0
    %297 = vmatprep.subr.mxu0 0.0
    %298 = vmatpush1.msra.mxu0 0.0
    %299 = vmatprep.subr.mxu0 0.0
    %300 = vmatpush1.msra.mxu0 0.0
    %301 = vmatprep.subr.mxu0 0.0
    %302 = vmatpush1.msra.mxu0 0.0
    %303 = vmatprep.subr.mxu0 0.0
    %304 = vmatpush1.msra.mxu0 0.0
    %305 = vmatprep.mubr.f32.mxu0 0.0
    %306 = vmatmul.mubr.f32.gmra.mrb[0].mxu0 %v239
    %v307 = vpop.f32.mrb[0].mxu0
    %v308 = vadd.f32 0.0, %v307
    %v309 = vpop.f32.mrb[0].mxu0
    %310 = vdwg.mxu0
    %v311 = vadd.f32 %v237, %v308
    %v312 = vtanh.pop %v311
    %313 = vst.msk [vmem:[%s236] sm:$0xff] %vm65, %v312
    %s314 = scalar_lea.vmem [#allocation2], 24
    %v315 = vld [vmem:[%s314] sm:$0xff]
    %v317 = vsel %vm65, %v312, 0
    %319 = vmatprep.subr.mxu0 0.0
    %320 = vmatpush1.msra.mxu0 %v74
    %321 = vmatprep.subr.mxu0 0.0
    %322 = vmatpush1.msra.mxu0 %v75
    %323 = vmatprep.subr.mxu0 0.0
    %324 = vmatpush1.msra.mxu0 %v83
    %325 = vmatprep.subr.mxu0 0.0
    %326 = vmatpush1.msra.mxu0 0.0
    %327 = vmatprep.subr.mxu0 0.0
    %328 = vmatpush1.msra.mxu0 0.0
    %329 = vmatprep.subr.mxu0 0.0
    %330 = vmatpush1.msra.mxu0 0.0
    %331 = vmatprep.subr.mxu0 0.0
    %332 = vmatpush1.msra.mxu0 0.0
    %333 = vmatprep.subr.mxu0 0.0
    %334 = vmatpush1.msra.mxu0 0.0
    %335 = vmatprep.subr.mxu0 0.0
    %336 = vmatpush1.msra.mxu0 0.0
    %337 = vmatprep.subr.mxu0 0.0
    %338 = vmatpush1.msra.mxu0 0.0
    %339 = vmatprep.subr.mxu0 0.0
    %340 = vmatpush1.msra.mxu0 0.0
    %341 = vmatprep.subr.mxu0 0.0
    %342 = vmatpush1.msra.mxu0 0.0
    %343 = vmatprep.subr.mxu0 0.0
    %344 = vmatpush1.msra.mxu0 0.0
    %345 = vmatprep.subr.mxu0 0.0
    %346 = vmatpush1.msra.mxu0 0.0
    %347 = vmatprep.subr.mxu0 0.0
    %348 = vmatpush1.msra.mxu0 0.0
    %349 = vmatprep.subr.mxu0 0.0
    %350 = vmatpush1.msra.mxu0 0.0
    %351 = vmatprep.subr.mxu0 0.0
    %352 = vmatpush1.msra.mxu0 0.0
    %353 = vmatprep.subr.mxu0 0.0
    %354 = vmatpush1.msra.mxu0 0.0
    %355 = vmatprep.subr.mxu0 0.0
    %356 = vmatpush1.msra.mxu0 0.0
    %357 = vmatprep.subr.mxu0 0.0
    %358 = vmatpush1.msra.mxu0 0.0
    %359 = vmatprep.subr.mxu0 0.0
    %360 = vmatpush1.msra.mxu0 0.0
    %361 = vmatprep.subr.mxu0 0.0
    %362 = vmatpush1.msra.mxu0 0.0
    %363 = vmatprep.subr.mxu0 0.0
    %364 = vmatpush1.msra.mxu0 0.0
    %365 = vmatprep.subr.mxu0 0.0
    %366 = vmatpush1.msra.mxu0 0.0
    %367 = vmatprep.subr.mxu0 0.0
    %368 = vmatpush1.msra.mxu0 0.0
    %369 = vmatprep.subr.mxu0 0.0
    %370 = vmatpush1.msra.mxu0 0.0
    %371 = vmatprep.subr.mxu0 0.0
    %372 = vmatpush1.msra.mxu0 0.0
    %373 = vmatprep.subr.mxu0 0.0
    %374 = vmatpush1.msra.mxu0 0.0
    %375 = vmatprep.subr.mxu0 0.0
    %376 = vmatpush1.msra.mxu0 0.0
    %377 = vmatprep.subr.mxu0 0.0
    %378 = vmatpush1.msra.mxu0 0.0
    %379 = vmatprep.subr.mxu0 0.0
    %380 = vmatpush1.msra.mxu0 0.0
    %381 = vmatprep.subr.mxu0 0.0
    %382 = vmatpush1.msra.mxu0 0.0
    %383 = vmatprep.mubr.f32.mxu0 0.0
    %384 = vmatmul.mubr.f32.gmra.mrb[0].mxu0 %v317
    %v385 = vpop.f32.mrb[0].mxu0
    %v386 = vadd.f32 0.0, %v385
    %v387 = vpop.f32.mrb[0].mxu0
    %388 = vdwg.mxu0
    %v389 = vadd.f32 %v315, %v386
    %v390 = vtanh.pop %v389
    %391 = vst.msk [vmem:[%s314] sm:$0xff] %vm65, %v390
    %s392 = scalar_lea.vmem [#allocation2], 32
    %v393 = vld [vmem:[%s392] sm:$0xff]
    %v395 = vsel %vm65, %v390, 0
    %397 = vmatprep.subr.mxu0 0.0
    %398 = vmatpush1.msra.mxu0 %v74
    %399 = vmatprep.subr.mxu0 0.0
    %400 = vmatpush1.msra.mxu0 %v75
    %401 = vmatprep.subr.mxu0 0.0
    %402 = vmatpush1.msra.mxu0 %v83
    %403 = vmatprep.subr.mxu0 0.0
    %404 = vmatpush1.msra.mxu0 0.0
    %405 = vmatprep.subr.mxu0 0.0
    %406 = vmatpush1.msra.mxu0 0.0
    %407 = vmatprep.subr.mxu0 0.0
    %408 = vmatpush1.msra.mxu0 0.0
    %409 = vmatprep.subr.mxu0 0.0
    %410 = vmatpush1.msra.mxu0 0.0
    %411 = vmatprep.subr.mxu0 0.0
    %412 = vmatpush1.msra.mxu0 0.0
    %413 = vmatprep.subr.mxu0 0.0
    %414 = vmatpush1.msra.mxu0 0.0
    %415 = vmatprep.subr.mxu0 0.0
    %416 = vmatpush1.msra.mxu0 0.0
    %417 = vmatprep.subr.mxu0 0.0
    %418 = vmatpush1.msra.mxu0 0.0
    %419 = vmatprep.subr.mxu0 0.0
    %420 = vmatpush1.msra.mxu0 0.0
    %421 = vmatprep.subr.mxu0 0.0
    %422 = vmatpush1.msra.mxu0 0.0
    %423 = vmatprep.subr.mxu0 0.0
    %424 = vmatpush1.msra.mxu0 0.0
    %425 = vmatprep.subr.mxu0 0.0
    %426 = vmatpush1.msra.mxu0 0.0
    %427 = vmatprep.subr.mxu0 0.0
    %428 = vmatpush1.msra.mxu0 0.0
    %429 = vmatprep.subr.mxu0 0.0
    %430 = vmatpush1.msra.mxu0 0.0
    %431 = vmatprep.subr.mxu0 0.0
    %432 = vmatpush1.msra.mxu0 0.0
    %433 = vmatprep.subr.mxu0 0.0
    %434 = vmatpush1.msra.mxu0 0.0
    %435 = vmatprep.subr.mxu0 0.0
    %436 = vmatpush1.msra.mxu0 0.0
    %437 = vmatprep.subr.mxu0 0.0
    %438 = vmatpush1.msra.mxu0 0.0
    %439 = vmatprep.subr.mxu0 0.0
    %440 = vmatpush1.msra.mxu0 0.0
    %441 = vmatprep.subr.mxu0 0.0
    %442 = vmatpush1.msra.mxu0 0.0
    %443 = vmatprep.subr.mxu0 0.0
    %444 = vmatpush1.msra.mxu0 0.0
    %445 = vmatprep.subr.mxu0 0.0
    %446 = vmatpush1.msra.mxu0 0.0
    %447 = vmatprep.subr.mxu0 0.0
    %448 = vmatpush1.msra.mxu0 0.0
    %449 = vmatprep.subr.mxu0 0.0
    %450 = vmatpush1.msra.mxu0 0.0
    %451 = vmatprep.subr.mxu0 0.0
    %452 = vmatpush1.msra.mxu0 0.0
    %453 = vmatprep.subr.mxu0 0.0
    %454 = vmatpush1.msra.mxu0 0.0
    %455 = vmatprep.subr.mxu0 0.0
    %456 = vmatpush1.msra.mxu0 0.0
    %457 = vmatprep.subr.mxu0 0.0
    %458 = vmatpush1.msra.mxu0 0.0
    %459 = vmatprep.subr.mxu0 0.0
    %460 = vmatpush1.msra.mxu0 0.0
    %461 = vmatprep.mubr.f32.mxu0 0.0
    %462 = vmatmul.mubr.f32.gmra.mrb[0].mxu0 %v395
    %v463 = vpop.f32.mrb[0].mxu0
    %v464 = vadd.f32 0.0, %v463
    %v465 = vpop.f32.mrb[0].mxu0
    %466 = vdwg.mxu0
    %v467 = vadd.f32 %v393, %v464
    %v468 = vtanh.pop %v467
    %469 = vst.msk [vmem:[%s392] sm:$0xff] %vm65, %v468
    %s470 = scalar_lea.vmem [#allocation2], 40
    %v471 = vld [vmem:[%s470] sm:$0xff]
    %v473 = vsel %vm65, %v468, 0
    %475 = vmatprep.subr.mxu0 0.0
    %476 = vmatpush1.msra.mxu0 %v74
    %477 = vmatprep.subr.mxu0 0.0
    %478 = vmatpush1.msra.mxu0 %v75
    %479 = vmatprep.subr.mxu0 0.0
    %480 = vmatpush1.msra.mxu0 %v83
    %481 = vmatprep.subr.mxu0 0.0
    %482 = vmatpush1.msra.mxu0 0.0
    %483 = vmatprep.subr.mxu0 0.0
    %484 = vmatpush1.msra.mxu0 0.0
    %485 = vmatprep.subr.mxu0 0.0
    %486 = vmatpush1.msra.mxu0 0.0
    %487 = vmatprep.subr.mxu0 0.0
    %488 = vmatpush1.msra.mxu0 0.0
    %489 = vmatprep.subr.mxu0 0.0
    %490 = vmatpush1.msra.mxu0 0.0
    %491 = vmatprep.subr.mxu0 0.0
    %492 = vmatpush1.msra.mxu0 0.0
    %493 = vmatprep.subr.mxu0 0.0
    %494 = vmatpush1.msra.mxu0 0.0
    %495 = vmatprep.subr.mxu0 0.0
    %496 = vmatpush1.msra.mxu0 0.0
    %497 = vmatprep.subr.mxu0 0.0
    %498 = vmatpush1.msra.mxu0 0.0
    %499 = vmatprep.subr.mxu0 0.0
    %500 = vmatpush1.msra.mxu0 0.0
    %501 = vmatprep.subr.mxu0 0.0
    %502 = vmatpush1.msra.mxu0 0.0
    %503 = vmatprep.subr.mxu0 0.0
    %504 = vmatpush1.msra.mxu0 0.0
    %505 = vmatprep.subr.mxu0 0.0
    %506 = vmatpush1.msra.mxu0 0.0
    %507 = vmatprep.subr.mxu0 0.0
    %508 = vmatpush1.msra.mxu0 0.0
    %509 = vmatprep.subr.mxu0 0.0
    %510 = vmatpush1.msra.mxu0 0.0
    %511 = vmatprep.subr.mxu0 0.0
    %512 = vmatpush1.msra.mxu0 0.0
    %513 = vmatprep.subr.mxu0 0.0
    %514 = vmatpush1.msra.mxu0 0.0
    %515 = vmatprep.subr.mxu0 0.0
    %516 = vmatpush1.msra.mxu0 0.0
    %517 = vmatprep.subr.mxu0 0.0
    %518 = vmatpush1.msra.mxu0 0.0
    %519 = vmatprep.subr.mxu0 0.0
    %520 = vmatpush1.msra.mxu0 0.0
    %521 = vmatprep.subr.mxu0 0.0
    %522 = vmatpush1.msra.mxu0 0.0
    %523 = vmatprep.subr.mxu0 0.0
    %524 = vmatpush1.msra.mxu0 0.0
    %525 = vmatprep.subr.mxu0 0.0
    %526 = vmatpush1.msra.mxu0 0.0
    %527 = vmatprep.subr.mxu0 0.0
    %528 = vmatpush1.msra.mxu0 0.0
    %529 = vmatprep.subr.mxu0 0.0
    %530 = vmatpush1.msra.mxu0 0.0
    %531 = vmatprep.subr.mxu0 0.0
    %532 = vmatpush1.msra.mxu0 0.0
    %533 = vmatprep.subr.mxu0 0.0
    %534 = vmatpush1.msra.mxu0 0.0
    %535 = vmatprep.subr.mxu0 0.0
    %536 = vmatpush1.msra.mxu0 0.0
    %537 = vmatprep.subr.mxu0 0.0
    %538 = vmatpush1.msra.mxu0 0.0
    %539 = vmatprep.mubr.f32.mxu0 0.0
    %540 = vmatmul.mubr.f32.gmra.mrb[0].mxu0 %v473
    %v541 = vpop.f32.mrb[0].mxu0
    %v542 = vadd.f32 0.0, %v541
    %v543 = vpop.f32.mrb[0].mxu0
    %544 = vdwg.mxu0
    %v545 = vadd.f32 %v471, %v542
    %v546 = vtanh.pop %v545
    %547 = vst.msk [vmem:[%s470] sm:$0xff] %vm65, %v546
    %s548 = scalar_lea.vmem [#allocation2], 48
    %v549 = vld [vmem:[%s548] sm:$0xff]
    %v551 = vsel %vm65, %v546, 0
    %553 = vmatprep.subr.mxu0 0.0
    %554 = vmatpush1.msra.mxu0 %v74
    %555 = vmatprep.subr.mxu0 0.0
    %556 = vmatpush1.msra.mxu0 %v75
    %557 = vmatprep.subr.mxu0 0.0
    %558 = vmatpush1.msra.mxu0 %v83
    %559 = vmatprep.subr.mxu0 0.0
    %560 = vmatpush1.msra.mxu0 0.0
    %561 = vmatprep.subr.mxu0 0.0
    %562 = vmatpush1.msra.mxu0 0.0
    %563 = vmatprep.subr.mxu0 0.0
    %564 = vmatpush1.msra.mxu0 0.0
    %565 = vmatprep.subr.mxu0 0.0
    %566 = vmatpush1.msra.mxu0 0.0
    %567 = vmatprep.subr.mxu0 0.0
    %568 = vmatpush1.msra.mxu0 0.0
    %569 = vmatprep.subr.mxu0 0.0
    %570 = vmatpush1.msra.mxu0 0.0
    %571 = vmatprep.subr.mxu0 0.0
    %572 = vmatpush1.msra.mxu0 0.0
    %573 = vmatprep.subr.mxu0 0.0
    %574 = vmatpush1.msra.mxu0 0.0
    %575 = vmatprep.subr.mxu0 0.0
    %576 = vmatpush1.msra.mxu0 0.0
    %577 = vmatprep.subr.mxu0 0.0
    %578 = vmatpush1.msra.mxu0 0.0
    %579 = vmatprep.subr.mxu0 0.0
    %580 = vmatpush1.msra.mxu0 0.0
    %581 = vmatprep.subr.mxu0 0.0
    %582 = vmatpush1.msra.mxu0 0.0
    %583 = vmatprep.subr.mxu0 0.0
    %584 = vmatpush1.msra.mxu0 0.0
    %585 = vmatprep.subr.mxu0 0.0
    %586 = vmatpush1.msra.mxu0 0.0
    %587 = vmatprep.subr.mxu0 0.0
    %588 = vmatpush1.msra.mxu0 0.0
    %589 = vmatprep.subr.mxu0 0.0
    %590 = vmatpush1.msra.mxu0 0.0
    %591 = vmatprep.subr.mxu0 0.0
    %592 = vmatpush1.msra.mxu0 0.0
    %593 = vmatprep.subr.mxu0 0.0
    %594 = vmatpush1.msra.mxu0 0.0
    %595 = vmatprep.subr.mxu0 0.0
    %596 = vmatpush1.msra.mxu0 0.0
    %597 = vmatprep.subr.mxu0 0.0
    %598 = vmatpush1.msra.mxu0 0.0
    %599 = vmatprep.subr.mxu0 0.0
    %600 = vmatpush1.msra.mxu0 0.0
    %601 = vmatprep.subr.mxu0 0.0
    %602 = vmatpush1.msra.mxu0 0.0
    %603 = vmatprep.subr.mxu0 0.0
    %604 = vmatpush1.msra.mxu0 0.0
    %605 = vmatprep.subr.mxu0 0.0
    %606 = vmatpush1.msra.mxu0 0.0
    %607 = vmatprep.subr.mxu0 0.0
    %608 = vmatpush1.msra.mxu0 0.0
    %609 = vmatprep.subr.mxu0 0.0
    %610 = vmatpush1.msra.mxu0 0.0
    %611 = vmatprep.subr.mxu0 0.0
    %612 = vmatpush1.msra.mxu0 0.0
    %613 = vmatprep.subr.mxu0 0.0
    %614 = vmatpush1.msra.mxu0 0.0
    %615 = vmatprep.subr.mxu0 0.0
    %616 = vmatpush1.msra.mxu0 0.0
    %617 = vmatprep.mubr.f32.mxu0 0.0
    %618 = vmatmul.mubr.f32.gmra.mrb[0].mxu0 %v551
    %v619 = vpop.f32.mrb[0].mxu0
    %v620 = vadd.f32 0.0, %v619
    %v621 = vpop.f32.mrb[0].mxu0
    %622 = vdwg.mxu0
    %v623 = vadd.f32 %v549, %v620
    %v624 = vtanh.pop %v623
    %625 = vst.msk [vmem:[%s548] sm:$0xff] %vm65, %v624
    %s626 = scalar_lea.vmem [#allocation2], 56
    %v627 = vld [vmem:[%s626] sm:$0xff]
    %v629 = vsel %vm65, %v624, 0
    %631 = vmatprep.subr.mxu0 0.0
    %632 = vmatpush1.msra.mxu0 %v74
    %633 = vmatprep.subr.mxu0 0.0
    %634 = vmatpush1.msra.mxu0 %v75
    %635 = vmatprep.subr.mxu0 0.0
    %636 = vmatpush1.msra.mxu0 %v83
    %637 = vmatprep.subr.mxu0 0.0
    %638 = vmatpush1.msra.mxu0 0.0
    %639 = vmatprep.subr.mxu0 0.0
    %640 = vmatpush1.msra.mxu0 0.0
    %641 = vmatprep.subr.mxu0 0.0
    %642 = vmatpush1.msra.mxu0 0.0
    %643 = vmatprep.subr.mxu0 0.0
    %644 = vmatpush1.msra.mxu0 0.0
    %645 = vmatprep.subr.mxu0 0.0
    %646 = vmatpush1.msra.mxu0 0.0
    %647 = vmatprep.subr.mxu0 0.0
    %648 = vmatpush1.msra.mxu0 0.0
    %649 = vmatprep.subr.mxu0 0.0
    %650 = vmatpush1.msra.mxu0 0.0
    %651 = vmatprep.subr.mxu0 0.0
    %652 = vmatpush1.msra.mxu0 0.0
    %653 = vmatprep.subr.mxu0 0.0
    %654 = vmatpush1.msra.mxu0 0.0
    %655 = vmatprep.subr.mxu0 0.0
    %656 = vmatpush1.msra.mxu0 0.0
    %657 = vmatprep.subr.mxu0 0.0
    %658 = vmatpush1.msra.mxu0 0.0
    %659 = vmatprep.subr.mxu0 0.0
    %660 = vmatpush1.msra.mxu0 0.0
    %661 = vmatprep.subr.mxu0 0.0
    %662 = vmatpush1.msra.mxu0 0.0
    %663 = vmatprep.subr.mxu0 0.0
    %664 = vmatpush1.msra.mxu0 0.0
    %665 = vmatprep.subr.mxu0 0.0
    %666 = vmatpush1.msra.mxu0 0.0
    %667 = vmatprep.subr.mxu0 0.0
    %668 = vmatpush1.msra.mxu0 0.0
    %669 = vmatprep.subr.mxu0 0.0
    %670 = vmatpush1.msra.mxu0 0.0
    %671 = vmatprep.subr.mxu0 0.0
    %672 = vmatpush1.msra.mxu0 0.0
    %673 = vmatprep.subr.mxu0 0.0
    %674 = vmatpush1.msra.mxu0 0.0
    %675 = vmatprep.subr.mxu0 0.0
    %676 = vmatpush1.msra.mxu0 0.0
    %677 = vmatprep.subr.mxu0 0.0
    %678 = vmatpush1.msra.mxu0 0.0
    %679 = vmatprep.subr.mxu0 0.0
    %680 = vmatpush1.msra.mxu0 0.0
    %681 = vmatprep.subr.mxu0 0.0
    %682 = vmatpush1.msra.mxu0 0.0
    %683 = vmatprep.subr.mxu0 0.0
    %684 = vmatpush1.msra.mxu0 0.0
    %685 = vmatprep.subr.mxu0 0.0
    %686 = vmatpush1.msra.mxu0 0.0
    %687 = vmatprep.subr.mxu0 0.0
    %688 = vmatpush1.msra.mxu0 0.0
    %689 = vmatprep.subr.mxu0 0.0
    %690 = vmatpush1.msra.mxu0 0.0
    %691 = vmatprep.subr.mxu0 0.0
    %692 = vmatpush1.msra.mxu0 0.0
    %693 = vmatprep.subr.mxu0 0.0
    %694 = vmatpush1.msra.mxu0 0.0
    %695 = vmatprep.mubr.f32.mxu0 0.0
    %696 = vmatmul.mubr.f32.gmra.mrb[0].mxu0 %v629
    %v697 = vpop.f32.mrb[0].mxu0
    %v698 = vadd.f32 0.0, %v697
    %v699 = vpop.f32.mrb[0].mxu0
    %700 = vdwg.mxu0
    %v701 = vadd.f32 %v627, %v698
    %v702 = vtanh.pop %v701
    %703 = vst.msk [vmem:[%s626] sm:$0xff] %vm65, %v702
    %s704 = scalar_lea.vmem %s3, 24
    %v705 = vld [vmem:[%s704] sm:$0xff]
    %v706 = vld [vmem:[%s704 + $0x8] sm:$0xff]
    %v707 = vld [vmem:[%s704 + $0x10] sm:$0xf]
    %v708 = vld [vmem:[#allocation2] sm:$0xff]
    %v709 = vld [vmem:[#allocation2 + $0x8] sm:$0xff]
    %v710 = vld [vmem:[#allocation2 + $0x10] sm:$0xff]
    %v711 = vld [vmem:[#allocation2 + $0x18] sm:$0xff]
    %v712 = vld [vmem:[#allocation2 + $0x20] sm:$0xff]
    %v713 = vld [vmem:[#allocation2 + $0x28] sm:$0xff]
    %v714 = vld [vmem:[#allocation2 + $0x30] sm:$0xff]
    %v715 = vld [vmem:[#allocation2 + $0x38] sm:$0xff]
    %v716 = vld [vmem:[%s2] sm:$0xff]
    %v717 = vld [vmem:[%s2 + $0x8] sm:$0xff]
    %v718 = vld [vmem:[%s2 + $0x10] sm:$0xf]
    %s719 = scalar_lea.vmem %s4, 1
    %v720 = vld [vmem:[%s719] sm:$0x1]
    %v722 = vlaneseq
    %v723 = vshrl.u32 %v722, 7
    %v724 = vsub.s32 0, %v723
    %v725 = vrot.slane %v720, %v724
    %v728 = vsel %vm65, %v708, 0
    %v731 = vsel %vm65, %v709, 0
    %v734 = vsel %vm65, %v710, 0
    %v737 = vsel %vm65, %v711, 0
    %v740 = vsel %vm65, %v712, 0
    %v743 = vsel %vm65, %v713, 0
    %v746 = vsel %vm65, %v714, 0
    %v749 = vsel %vm65, %v715, 0
    %v752 = vsel %vm81, %v718, 0
    %754 = vmatprep.subr.mxu0 0.0
    %755 = vmatpush1.msra.mxu0 %v716
    %756 = vmatprep.subr.mxu0 0.0
    %757 = vmatpush1.msra.mxu0 %v717
    %758 = vmatprep.subr.mxu0 0.0
    %759 = vmatpush1.msra.mxu0 %v752
    %760 = vmatprep.subr.mxu0 0.0
    %761 = vmatpush1.msra.mxu0 0.0
    %762 = vmatprep.subr.mxu0 0.0
    %763 = vmatpush1.msra.mxu0 0.0
    %764 = vmatprep.subr.mxu0 0.0
    %765 = vmatpush1.msra.mxu0 0.0
    %766 = vmatprep.subr.mxu0 0.0
    %767 = vmatpush1.msra.mxu0 0.0
    %768 = vmatprep.subr.mxu0 0.0
    %769 = vmatpush1.msra.mxu0 0.0
    %770 = vmatprep.subr.mxu0 0.0
    %771 = vmatpush1.msra.mxu0 0.0
    %772 = vmatprep.subr.mxu0 0.0
    %773 = vmatpush1.msra.mxu0 0.0
    %774 = vmatprep.subr.mxu0 0.0
    %775 = vmatpush1.msra.mxu0 0.0
    %776 = vmatprep.subr.mxu0 0.0
    %777 = vmatpush1.msra.mxu0 0.0
    %778 = vmatprep.subr.mxu0 0.0
    %779 = vmatpush1.msra.mxu0 0.0
    %780 = vmatprep.subr.mxu0 0.0
    %781 = vmatpush1.msra.mxu0 0.0
    %782 = vmatprep.subr.mxu0 0.0
    %783 = vmatpush1.msra.mxu0 0.0
    %784 = vmatprep.subr.mxu0 0.0
    %785 = vmatpush1.msra.mxu0 0.0
    %786 = vmatprep.subr.mxu0 0.0
    %787 = vmatpush1.msra.mxu0 0.0
    %788 = vmatprep.subr.mxu0 0.0
    %789 = vmatpush1.msra.mxu0 0.0
    %790 = vmatprep.subr.mxu0 0.0
    %791 = vmatpush1.msra.mxu0 0.0
    %792 = vmatprep.subr.mxu0 0.0
    %793 = vmatpush1.msra.mxu0 0.0
    %794 = vmatprep.subr.mxu0 0.0
    %795 = vmatpush1.msra.mxu0 0.0
    %796 = vmatprep.subr.mxu0 0.0
    %797 = vmatpush1.msra.mxu0 0.0
    %798 = vmatprep.subr.mxu0 0.0
    %799 = vmatpush1.msra.mxu0 0.0
    %800 = vmatprep.subr.mxu0 0.0
    %801 = vmatpush1.msra.mxu0 0.0
    %802 = vmatprep.subr.mxu0 0.0
    %803 = vmatpush1.msra.mxu0 0.0
    %804 = vmatprep.subr.mxu0 0.0
    %805 = vmatpush1.msra.mxu0 0.0
    %806 = vmatprep.subr.mxu0 0.0
    %807 = vmatpush1.msra.mxu0 0.0
    %808 = vmatprep.subr.mxu0 0.0
    %809 = vmatpush1.msra.mxu0 0.0
    %810 = vmatprep.subr.mxu0 0.0
    %811 = vmatpush1.msra.mxu0 0.0
    %812 = vmatprep.subr.mxu0 0.0
    %813 = vmatpush1.msra.mxu0 0.0
    %814 = vmatprep.subr.mxu0 0.0
    %815 = vmatpush1.msra.mxu0 0.0
    %816 = vmatprep.subr.mxu0 0.0
    %817 = vmatpush1.msra.mxu0 0.0
    %818 = vmatprep.mubr.f32.mxu0 0.0
    %819 = vmatmul.mubr.f32.gmra.mrb[0].mxu0 %v728
    %v820 = vpop.f32.mrb[0].mxu0
    %v821 = vadd.f32 %v725, %v820
    %v822 = vpop.f32.mrb[0].mxu0
    %823 = vmatprep.mubr.f32.mxu0 0.0
    %824 = vmatmul.mubr.f32.gmra.mrb[0].mxu0 %v731
    %v825 = vpop.f32.mrb[0].mxu0
    %v826 = vadd.f32 %v725, %v825
    %v827 = vpop.f32.mrb[0].mxu0
    %828 = vmatprep.mubr.f32.mxu0 0.0
    %829 = vmatmul.mubr.f32.gmra.mrb[0].mxu0 %v734
    %v830 = vpop.f32.mrb[0].mxu0
    %v831 = vadd.f32 %v725, %v830
    %v832 = vpop.f32.mrb[0].mxu0
    %833 = vmatprep.mubr.f32.mxu0 0.0
    %834 = vmatmul.mubr.f32.gmra.mrb[0].mxu0 %v737
    %v835 = vpop.f32.mrb[0].mxu0
    %v836 = vadd.f32 %v725, %v835
    %v837 = vpop.f32.mrb[0].mxu0
    %838 = vmatprep.mubr.f32.mxu0 0.0
    %839 = vmatmul.mubr.f32.gmra.mrb[0].mxu0 %v740
    %v840 = vpop.f32.mrb[0].mxu0
    %v841 = vadd.f32 %v725, %v840
    %v842 = vpop.f32.mrb[0].mxu0
    %843 = vmatprep.mubr.f32.mxu0 0.0
    %844 = vmatmul.mubr.f32.gmra.mrb[0].mxu0 %v743
    %v845 = vpop.f32.mrb[0].mxu0
    %v846 = vadd.f32 %v725, %v845
    %v847 = vpop.f32.mrb[0].mxu0
    %848 = vmatprep.mubr.f32.mxu0 0.0
    %849 = vmatmul.mubr.f32.gmra.mrb[0].mxu0 %v746
    %v850 = vpop.f32.mrb[0].mxu0
    %v851 = vadd.f32 %v725, %v850
    %v852 = vpop.f32.mrb[0].mxu0
    %853 = vmatprep.mubr.f32.mxu0 0.0
    %854 = vmatmul.mubr.f32.gmra.mrb[0].mxu0 %v749
    %v855 = vpop.f32.mrb[0].mxu0
    %v856 = vadd.f32 %v725, %v855
    %v857 = vpop.f32.mrb[0].mxu0
    %858 = vdwg.mxu0
    %859 = vst.msk [vmem:[#allocation2] sm:$0xff] %vm65, %v821
    %860 = vst.msk [vmem:[#allocation2 + $0x8] sm:$0xff] %vm65, %v826
    %861 = vst.msk [vmem:[#allocation2 + $0x10] sm:$0xff] %vm65, %v831
    %862 = vst.msk [vmem:[#allocation2 + $0x18] sm:$0xff] %vm65, %v836
    %863 = vst.msk [vmem:[#allocation2 + $0x20] sm:$0xff] %vm65, %v841
    %864 = vst.msk [vmem:[#allocation2 + $0x28] sm:$0xff] %vm65, %v846
    %865 = vst.msk [vmem:[#allocation2 + $0x30] sm:$0xff] %vm65, %v851
    %866 = vst.msk [vmem:[#allocation2 + $0x38] sm:$0xff] %vm65, %v856
    %v867 = vld [vmem:[#allocation2] sm:$0xff]
    %v869 = vsel %vm81, %v707, 0
    %871 = vmatprep.subr.mxu0 0.0
    %872 = vmatpush1.msra.mxu0 %v705
    %873 = vmatprep.subr.mxu0 0.0
    %874 = vmatpush1.msra.mxu0 %v706
    %875 = vmatprep.subr.mxu0 0.0
    %876 = vmatpush1.msra.mxu0 %v869
    %877 = vmatprep.subr.mxu0 0.0
    %878 = vmatpush1.msra.mxu0 0.0
    %879 = vmatprep.subr.mxu0 0.0
    %880 = vmatpush1.msra.mxu0 0.0
    %881 = vmatprep.subr.mxu0 0.0
    %882 = vmatpush1.msra.mxu0 0.0
    %883 = vmatprep.subr.mxu0 0.0
    %884 = vmatpush1.msra.mxu0 0.0
    %885 = vmatprep.subr.mxu0 0.0
    %886 = vmatpush1.msra.mxu0 0.0
    %887 = vmatprep.subr.mxu0 0.0
    %888 = vmatpush1.msra.mxu0 0.0
    %889 = vmatprep.subr.mxu0 0.0
    %890 = vmatpush1.msra.mxu0 0.0
    %891 = vmatprep.subr.mxu0 0.0
    %892 = vmatpush1.msra.mxu0 0.0
    %893 = vmatprep.subr.mxu0 0.0
    %894 = vmatpush1.msra.mxu0 0.0
    %895 = vmatprep.subr.mxu0 0.0
    %896 = vmatpush1.msra.mxu0 0.0
    %897 = vmatprep.subr.mxu0 0.0
    %898 = vmatpush1.msra.mxu0 0.0
    %899 = vmatprep.subr.mxu0 0.0
    %900 = vmatpush1.msra.mxu0 0.0
    %901 = vmatprep.subr.mxu0 0.0
    %902 = vmatpush1.msra.mxu0 0.0
    %903 = vmatprep.subr.mxu0 0.0
    %904 = vmatpush1.msra.mxu0 0.0
    %905 = vmatprep.subr.mxu0 0.0
    %906 = vmatpush1.msra.mxu0 0.0
    %907 = vmatprep.subr.mxu0 0.0
    %908 = vmatpush1.msra.mxu0 0.0
    %909 = vmatprep.subr.mxu0 0.0
    %910 = vmatpush1.msra.mxu0 0.0
    %911 = vmatprep.subr.mxu0 0.0
    %912 = vmatpush1.msra.mxu0 0.0
    %913 = vmatprep.subr.mxu0 0.0
    %914 = vmatpush1.msra.mxu0 0.0
    %915 = vmatprep.subr.mxu0 0.0
    %916 = vmatpush1.msra.mxu0 0.0
    %917 = vmatprep.subr.mxu0 0.0
    %918 = vmatpush1.msra.mxu0 0.0
    %919 = vmatprep.subr.mxu0 0.0
    %920 = vmatpush1.msra.mxu0 0.0
    %921 = vmatprep.subr.mxu0 0.0
    %922 = vmatpush1.msra.mxu0 0.0
    %923 = vmatprep.subr.mxu0 0.0
    %924 = vmatpush1.msra.mxu0 0.0
    %925 = vmatprep.subr.mxu0 0.0
    %926 = vmatpush1.msra.mxu0 0.0
    %927 = vmatprep.subr.mxu0 0.0
    %928 = vmatpush1.msra.mxu0 0.0
    %929 = vmatprep.subr.mxu0 0.0
    %930 = vmatpush1.msra.mxu0 0.0
    %931 = vmatprep.subr.mxu0 0.0
    %932 = vmatpush1.msra.mxu0 0.0
    %933 = vmatprep.subr.mxu0 0.0
    %934 = vmatpush1.msra.mxu0 0.0
    %935 = vmatprep.mubr.f32.mxu0 0.0
    %936 = vmatmul.mubr.f32.gmra.mrb[0].mxu0 %v79
    %v937 = vpop.f32.mrb[0].mxu0
    %v938 = vadd.f32 0.0, %v937
    %v939 = vpop.f32.mrb[0].mxu0
    %940 = vdwg.mxu0
    %v941 = vadd.f32 %v867, %v938
    %v942 = vtanh.pop %v941
    %943 = vst.msk [vmem:[#allocation2] sm:$0xff] %vm65, %v942
    %v944 = vld [vmem:[%s158] sm:$0xff]
    %v946 = vsel %vm65, %v942, 0
    %948 = vmatprep.subr.mxu0 0.0
    %949 = vmatpush1.msra.mxu0 %v705
    %950 = vmatprep.subr.mxu0 0.0
    %951 = vmatpush1.msra.mxu0 %v706
    %952 = vmatprep.subr.mxu0 0.0
    %953 = vmatpush1.msra.mxu0 %v869
    %954 = vmatprep.subr.mxu0 0.0
    %955 = vmatpush1.msra.mxu0 0.0
    %956 = vmatprep.subr.mxu0 0.0
    %957 = vmatpush1.msra.mxu0 0.0
    %958 = vmatprep.subr.mxu0 0.0
    %959 = vmatpush1.msra.mxu0 0.0
    %960 = vmatprep.subr.mxu0 0.0
    %961 = vmatpush1.msra.mxu0 0.0
    %962 = vmatprep.subr.mxu0 0.0
    %963 = vmatpush1.msra.mxu0 0.0
    %964 = vmatprep.subr.mxu0 0.0
    %965 = vmatpush1.msra.mxu0 0.0
    %966 = vmatprep.subr.mxu0 0.0
    %967 = vmatpush1.msra.mxu0 0.0
    %968 = vmatprep.subr.mxu0 0.0
    %969 = vmatpush1.msra.mxu0 0.0
    %970 = vmatprep.subr.mxu0 0.0
    %971 = vmatpush1.msra.mxu0 0.0
    %972 = vmatprep.subr.mxu0 0.0
    %973 = vmatpush1.msra.mxu0 0.0
    %974 = vmatprep.subr.mxu0 0.0
    %975 = vmatpush1.msra.mxu0 0.0
    %976 = vmatprep.subr.mxu0 0.0
    %977 = vmatpush1.msra.mxu0 0.0
    %978 = vmatprep.subr.mxu0 0.0
    %979 = vmatpush1.msra.mxu0 0.0
    %980 = vmatprep.subr.mxu0 0.0
    %981 = vmatpush1.msra.mxu0 0.0
    %982 = vmatprep.subr.mxu0 0.0
    %983 = vmatpush1.msra.mxu0 0.0
    %984 = vmatprep.subr.mxu0 0.0
    %985 = vmatpush1.msra.mxu0 0.0
    %986 = vmatprep.subr.mxu0 0.0
    %987 = vmatpush1.msra.mxu0 0.0
    %988 = vmatprep.subr.mxu0 0.0
    %989 = vmatpush1.msra.mxu0 0.0
    %990 = vmatprep.subr.mxu0 0.0
    %991 = vmatpush1.msra.mxu0 0.0
    %992 = vmatprep.subr.mxu0 0.0
    %993 = vmatpush1.msra.mxu0 0.0
    %994 = vmatprep.subr.mxu0 0.0
    %995 = vmatpush1.msra.mxu0 0.0
    %996 = vmatprep.subr.mxu0 0.0
    %997 = vmatpush1.msra.mxu0 0.0
    %998 = vmatprep.subr.mxu0 0.0
    %999 = vmatpush1.msra.mxu0 0.0
    %1000 = vmatprep.subr.mxu0 0.0
    %1001 = vmatpush1.msra.mxu0 0.0
    %1002 = vmatprep.subr.mxu0 0.0
    %1003 = vmatpush1.msra.mxu0 0.0
    %1004 = vmatprep.subr.mxu0 0.0
    %1005 = vmatpush1.msra.mxu0 0.0
    %1006 = vmatprep.subr.mxu0 0.0
    %1007 = vmatpush1.msra.mxu0 0.0
    %1008 = vmatprep.subr.mxu0 0.0
    %1009 = vmatpush1.msra.mxu0 0.0
    %1010 = vmatprep.subr.mxu0 0.0
    %1011 = vmatpush1.msra.mxu0 0.0
    %1012 = vmatprep.mubr.f32.mxu0 0.0
    %1013 = vmatmul.mubr.f32.gmra.mrb[0].mxu0 %v946
    %v1014 = vpop.f32.mrb[0].mxu0
    %v1015 = vadd.f32 0.0, %v1014
    %v1016 = vpop.f32.mrb[0].mxu0
    %1017 = vdwg.mxu0
    %v1018 = vadd.f32 %v944, %v1015
    %v1019 = vtanh.pop %v1018
    %1020 = vst.msk [vmem:[%s158] sm:$0xff] %vm65, %v1019
    %v1021 = vld [vmem:[%s236] sm:$0xff]
    %v1023 = vsel %vm65, %v1019, 0
    %1025 = vmatprep.subr.mxu0 0.0
    %1026 = vmatpush1.msra.mxu0 %v705
    %1027 = vmatprep.subr.mxu0 0.0
    %1028 = vmatpush1.msra.mxu0 %v706
    %1029 = vmatprep.subr.mxu0 0.0
    %1030 = vmatpush1.msra.mxu0 %v869
    %1031 = vmatprep.subr.mxu0 0.0
    %1032 = vmatpush1.msra.mxu0 0.0
    %1033 = vmatprep.subr.mxu0 0.0
    %1034 = vmatpush1.msra.mxu0 0.0
    %1035 = vmatprep.subr.mxu0 0.0
    %1036 = vmatpush1.msra.mxu0 0.0
    %1037 = vmatprep.subr.mxu0 0.0
    %1038 = vmatpush1.msra.mxu0 0.0
    %1039 = vmatprep.subr.mxu0 0.0
    %1040 = vmatpush1.msra.mxu0 0.0
    %1041 = vmatprep.subr.mxu0 0.0
    %1042 = vmatpush1.msra.mxu0 0.0
    %1043 = vmatprep.subr.mxu0 0.0
    %1044 = vmatpush1.msra.mxu0 0.0
    %1045 = vmatprep.subr.mxu0 0.0
    %1046 = vmatpush1.msra.mxu0 0.0
    %1047 = vmatprep.subr.mxu0 0.0
    %1048 = vmatpush1.msra.mxu0 0.0
    %1049 = vmatprep.subr.mxu0 0.0
    %1050 = vmatpush1.msra.mxu0 0.0
    %1051 = vmatprep.subr.mxu0 0.0
    %1052 = vmatpush1.msra.mxu0 0.0
    %1053 = vmatprep.subr.mxu0 0.0
    %1054 = vmatpush1.msra.mxu0 0.0
    %1055 = vmatprep.subr.mxu0 0.0
    %1056 = vmatpush1.msra.mxu0 0.0
    %1057 = vmatprep.subr.mxu0 0.0
    %1058 = vmatpush1.msra.mxu0 0.0
    %1059 = vmatprep.subr.mxu0 0.0
    %1060 = vmatpush1.msra.mxu0 0.0
    %1061 = vmatprep.subr.mxu0 0.0
    %1062 = vmatpush1.msra.mxu0 0.0
    %1063 = vmatprep.subr.mxu0 0.0
    %1064 = vmatpush1.msra.mxu0 0.0
    %1065 = vmatprep.subr.mxu0 0.0
    %1066 = vmatpush1.msra.mxu0 0.0
    %1067 = vmatprep.subr.mxu0 0.0
    %1068 = vmatpush1.msra.mxu0 0.0
    %1069 = vmatprep.subr.mxu0 0.0
    %1070 = vmatpush1.msra.mxu0 0.0
    %1071 = vmatprep.subr.mxu0 0.0
    %1072 = vmatpush1.msra.mxu0 0.0
    %1073 = vmatprep.subr.mxu0 0.0
    %1074 = vmatpush1.msra.mxu0 0.0
    %1075 = vmatprep.subr.mxu0 0.0
    %1076 = vmatpush1.msra.mxu0 0.0
    %1077 = vmatprep.subr.mxu0 0.0
    %1078 = vmatpush1.msra.mxu0 0.0
    %1079 = vmatprep.subr.mxu0 0.0
    %1080 = vmatpush1.msra.mxu0 0.0
    %1081 = vmatprep.subr.mxu0 0.0
    %1082 = vmatpush1.msra.mxu0 0.0
    %1083 = vmatprep.subr.mxu0 0.0
    %1084 = vmatpush1.msra.mxu0 0.0
    %1085 = vmatprep.subr.mxu0 0.0
    %1086 = vmatpush1.msra.mxu0 0.0
    %1087 = vmatprep.subr.mxu0 0.0
    %1088 = vmatpush1.msra.mxu0 0.0
    %1089 = vmatprep.mubr.f32.mxu0 0.0
    %1090 = vmatmul.mubr.f32.gmra.mrb[0].mxu0 %v1023
    %v1091 = vpop.f32.mrb[0].mxu0
    %v1092 = vadd.f32 0.0, %v1091
    %v1093 = vpop.f32.mrb[0].mxu0
    %1094 = vdwg.mxu0
    %v1095 = vadd.f32 %v1021, %v1092
    %v1096 = vtanh.pop %v1095
    %1097 = vst.msk [vmem:[%s236] sm:$0xff] %vm65, %v1096
    %v1098 = vld [vmem:[%s314] sm:$0xff]
    %v1100 = vsel %vm65, %v1096, 0
    %1102 = vmatprep.subr.mxu0 0.0
    %1103 = vmatpush1.msra.mxu0 %v705
    %1104 = vmatprep.subr.mxu0 0.0
    %1105 = vmatpush1.msra.mxu0 %v706
    %1106 = vmatprep.subr.mxu0 0.0
    %1107 = vmatpush1.msra.mxu0 %v869
    %1108 = vmatprep.subr.mxu0 0.0
    %1109 = vmatpush1.msra.mxu0 0.0
    %1110 = vmatprep.subr.mxu0 0.0
    %1111 = vmatpush1.msra.mxu0 0.0
    %1112 = vmatprep.subr.mxu0 0.0
    %1113 = vmatpush1.msra.mxu0 0.0
    %1114 = vmatprep.subr.mxu0 0.0
    %1115 = vmatpush1.msra.mxu0 0.0
    %1116 = vmatprep.subr.mxu0 0.0
    %1117 = vmatpush1.msra.mxu0 0.0
    %1118 = vmatprep.subr.mxu0 0.0
    %1119 = vmatpush1.msra.mxu0 0.0
    %1120 = vmatprep.subr.mxu0 0.0
    %1121 = vmatpush1.msra.mxu0 0.0
    %1122 = vmatprep.subr.mxu0 0.0
    %1123 = vmatpush1.msra.mxu0 0.0
    %1124 = vmatprep.subr.mxu0 0.0
    %1125 = vmatpush1.msra.mxu0 0.0
    %1126 = vmatprep.subr.mxu0 0.0
    %1127 = vmatpush1.msra.mxu0 0.0
    %1128 = vmatprep.subr.mxu0 0.0
    %1129 = vmatpush1.msra.mxu0 0.0
    %1130 = vmatprep.subr.mxu0 0.0
    %1131 = vmatpush1.msra.mxu0 0.0
    %1132 = vmatprep.subr.mxu0 0.0
    %1133 = vmatpush1.msra.mxu0 0.0
    %1134 = vmatprep.subr.mxu0 0.0
    %1135 = vmatpush1.msra.mxu0 0.0
    %1136 = vmatprep.subr.mxu0 0.0
    %1137 = vmatpush1.msra.mxu0 0.0
    %1138 = vmatprep.subr.mxu0 0.0
    %1139 = vmatpush1.msra.mxu0 0.0
    %1140 = vmatprep.subr.mxu0 0.0
    %1141 = vmatpush1.msra.mxu0 0.0
    %1142 = vmatprep.subr.mxu0 0.0
    %1143 = vmatpush1.msra.mxu0 0.0
    %1144 = vmatprep.subr.mxu0 0.0
    %1145 = vmatpush1.msra.mxu0 0.0
    %1146 = vmatprep.subr.mxu0 0.0
    %1147 = vmatpush1.msra.mxu0 0.0
    %1148 = vmatprep.subr.mxu0 0.0
    %1149 = vmatpush1.msra.mxu0 0.0
    %1150 = vmatprep.subr.mxu0 0.0
    %1151 = vmatpush1.msra.mxu0 0.0
    %1152 = vmatprep.subr.mxu0 0.0
    %1153 = vmatpush1.msra.mxu0 0.0
    %1154 = vmatprep.subr.mxu0 0.0
    %1155 = vmatpush1.msra.mxu0 0.0
    %1156 = vmatprep.subr.mxu0 0.0
    %1157 = vmatpush1.msra.mxu0 0.0
    %1158 = vmatprep.subr.mxu0 0.0
    %1159 = vmatpush1.msra.mxu0 0.0
    %1160 = vmatprep.subr.mxu0 0.0
    %1161 = vmatpush1.msra.mxu0 0.0
    %1162 = vmatprep.subr.mxu0 0.0
    %1163 = vmatpush1.msra.mxu0 0.0
    %1164 = vmatprep.subr.mxu0 0.0
    %1165 = vmatpush1.msra.mxu0 0.0
    %1166 = vmatprep.mubr.f32.mxu0 0.0
    %1167 = vmatmul.mubr.f32.gmra.mrb[0].mxu0 %v1100
    %v1168 = vpop.f32.mrb[0].mxu0
    %v1169 = vadd.f32 0.0, %v1168
    %v1170 = vpop.f32.mrb[0].mxu0
    %1171 = vdwg.mxu0
    %v1172 = vadd.f32 %v1098, %v1169
    %v1173 = vtanh.pop %v1172
    %1174 = vst.msk [vmem:[%s314] sm:$0xff] %vm65, %v1173
    %v1175 = vld [vmem:[%s392] sm:$0xff]
    %v1177 = vsel %vm65, %v1173, 0
    %1179 = vmatprep.subr.mxu0 0.0
    %1180 = vmatpush1.msra.mxu0 %v705
    %1181 = vmatprep.subr.mxu0 0.0
    %1182 = vmatpush1.msra.mxu0 %v706
    %1183 = vmatprep.subr.mxu0 0.0
    %1184 = vmatpush1.msra.mxu0 %v869
    %1185 = vmatprep.subr.mxu0 0.0
    %1186 = vmatpush1.msra.mxu0 0.0
    %1187 = vmatprep.subr.mxu0 0.0
    %1188 = vmatpush1.msra.mxu0 0.0
    %1189 = vmatprep.subr.mxu0 0.0
    %1190 = vmatpush1.msra.mxu0 0.0
    %1191 = vmatprep.subr.mxu0 0.0
    %1192 = vmatpush1.msra.mxu0 0.0
    %1193 = vmatprep.subr.mxu0 0.0
    %1194 = vmatpush1.msra.mxu0 0.0
    %1195 = vmatprep.subr.mxu0 0.0
    %1196 = vmatpush1.msra.mxu0 0.0
    %1197 = vmatprep.subr.mxu0 0.0
    %1198 = vmatpush1.msra.mxu0 0.0
    %1199 = vmatprep.subr.mxu0 0.0
    %1200 = vmatpush1.msra.mxu0 0.0
    %1201 = vmatprep.subr.mxu0 0.0
    %1202 = vmatpush1.msra.mxu0 0.0
    %1203 = vmatprep.subr.mxu0 0.0
    %1204 = vmatpush1.msra.mxu0 0.0
    %1205 = vmatprep.subr.mxu0 0.0
    %1206 = vmatpush1.msra.mxu0 0.0
    %1207 = vmatprep.subr.mxu0 0.0
    %1208 = vmatpush1.msra.mxu0 0.0
    %1209 = vmatprep.subr.mxu0 0.0
    %1210 = vmatpush1.msra.mxu0 0.0
    %1211 = vmatprep.subr.mxu0 0.0
    %1212 = vmatpush1.msra.mxu0 0.0
    %1213 = vmatprep.subr.mxu0 0.0
    %1214 = vmatpush1.msra.mxu0 0.0
    %1215 = vmatprep.subr.mxu0 0.0
    %1216 = vmatpush1.msra.mxu0 0.0
    %1217 = vmatprep.subr.mxu0 0.0
    %1218 = vmatpush1.msra.mxu0 0.0
    %1219 = vmatprep.subr.mxu0 0.0
    %1220 = vmatpush1.msra.mxu0 0.0
    %1221 = vmatprep.subr.mxu0 0.0
    %1222 = vmatpush1.msra.mxu0 0.0
    %1223 = vmatprep.subr.mxu0 0.0
    %1224 = vmatpush1.msra.mxu0 0.0
    %1225 = vmatprep.subr.mxu0 0.0
    %1226 = vmatpush1.msra.mxu0 0.0
    %1227 = vmatprep.subr.mxu0 0.0
    %1228 = vmatpush1.msra.mxu0 0.0
    %1229 = vmatprep.subr.mxu0 0.0
    %1230 = vmatpush1.msra.mxu0 0.0
    %1231 = vmatprep.subr.mxu0 0.0
    %1232 = vmatpush1.msra.mxu0 0.0
    %1233 = vmatprep.subr.mxu0 0.0
    %1234 = vmatpush1.msra.mxu0 0.0
    %1235 = vmatprep.subr.mxu0 0.0
    %1236 = vmatpush1.msra.mxu0 0.0
    %1237 = vmatprep.subr.mxu0 0.0
    %1238 = vmatpush1.msra.mxu0 0.0
    %1239 = vmatprep.subr.mxu0 0.0
    %1240 = vmatpush1.msra.mxu0 0.0
    %1241 = vmatprep.subr.mxu0 0.0
    %1242 = vmatpush1.msra.mxu0 0.0
    %1243 = vmatprep.mubr.f32.mxu0 0.0
    %1244 = vmatmul.mubr.f32.gmra.mrb[0].mxu0 %v1177
    %v1245 = vpop.f32.mrb[0].mxu0
    %v1246 = vadd.f32 0.0, %v1245
    %v1247 = vpop.f32.mrb[0].mxu0
    %1248 = vdwg.mxu0
    %v1249 = vadd.f32 %v1175, %v1246
    %v1250 = vtanh.pop %v1249
    %1251 = vst.msk [vmem:[%s392] sm:$0xff] %vm65, %v1250
    %v1252 = vld [vmem:[%s470] sm:$0xff]
    %v1254 = vsel %vm65, %v1250, 0
    %1256 = vmatprep.subr.mxu0 0.0
    %1257 = vmatpush1.msra.mxu0 %v705
    %1258 = vmatprep.subr.mxu0 0.0
    %1259 = vmatpush1.msra.mxu0 %v706
    %1260 = vmatprep.subr.mxu0 0.0
    %1261 = vmatpush1.msra.mxu0 %v869
    %1262 = vmatprep.subr.mxu0 0.0
    %1263 = vmatpush1.msra.mxu0 0.0
    %1264 = vmatprep.subr.mxu0 0.0
    %1265 = vmatpush1.msra.mxu0 0.0
    %1266 = vmatprep.subr.mxu0 0.0
    %1267 = vmatpush1.msra.mxu0 0.0
    %1268 = vmatprep.subr.mxu0 0.0
    %1269 = vmatpush1.msra.mxu0 0.0
    %1270 = vmatprep.subr.mxu0 0.0
    %1271 = vmatpush1.msra.mxu0 0.0
    %1272 = vmatprep.subr.mxu0 0.0
    %1273 = vmatpush1.msra.mxu0 0.0
    %1274 = vmatprep.subr.mxu0 0.0
    %1275 = vmatpush1.msra.mxu0 0.0
    %1276 = vmatprep.subr.mxu0 0.0
    %1277 = vmatpush1.msra.mxu0 0.0
    %1278 = vmatprep.subr.mxu0 0.0
    %1279 = vmatpush1.msra.mxu0 0.0
    %1280 = vmatprep.subr.mxu0 0.0
    %1281 = vmatpush1.msra.mxu0 0.0
    %1282 = vmatprep.subr.mxu0 0.0
    %1283 = vmatpush1.msra.mxu0 0.0
    %1284 = vmatprep.subr.mxu0 0.0
    %1285 = vmatpush1.msra.mxu0 0.0
    %1286 = vmatprep.subr.mxu0 0.0
    %1287 = vmatpush1.msra.mxu0 0.0
    %1288 = vmatprep.subr.mxu0 0.0
    %1289 = vmatpush1.msra.mxu0 0.0
    %1290 = vmatprep.subr.mxu0 0.0
    %1291 = vmatpush1.msra.mxu0 0.0
    %1292 = vmatprep.subr.mxu0 0.0
    %1293 = vmatpush1.msra.mxu0 0.0
    %1294 = vmatprep.subr.mxu0 0.0
    %1295 = vmatpush1.msra.mxu0 0.0
    %1296 = vmatprep.subr.mxu0 0.0
    %1297 = vmatpush1.msra.mxu0 0.0
    %1298 = vmatprep.subr.mxu0 0.0
    %1299 = vmatpush1.msra.mxu0 0.0
    %1300 = vmatprep.subr.mxu0 0.0
    %1301 = vmatpush1.msra.mxu0 0.0
    %1302 = vmatprep.subr.mxu0 0.0
    %1303 = vmatpush1.msra.mxu0 0.0
    %1304 = vmatprep.subr.mxu0 0.0
    %1305 = vmatpush1.msra.mxu0 0.0
    %1306 = vmatprep.subr.mxu0 0.0
    %1307 = vmatpush1.msra.mxu0 0.0
    %1308 = vmatprep.subr.mxu0 0.0
    %1309 = vmatpush1.msra.mxu0 0.0
    %1310 = vmatprep.subr.mxu0 0.0
    %1311 = vmatpush1.msra.mxu0 0.0
    %1312 = vmatprep.subr.mxu0 0.0
    %1313 = vmatpush1.msra.mxu0 0.0
    %1314 = vmatprep.subr.mxu0 0.0
    %1315 = vmatpush1.msra.mxu0 0.0
    %1316 = vmatprep.subr.mxu0 0.0
    %1317 = vmatpush1.msra.mxu0 0.0
    %1318 = vmatprep.subr.mxu0 0.0
    %1319 = vmatpush1.msra.mxu0 0.0
    %1320 = vmatprep.mubr.f32.mxu0 0.0
    %1321 = vmatmul.mubr.f32.gmra.mrb[0].mxu0 %v1254
    %v1322 = vpop.f32.mrb[0].mxu0
    %v1323 = vadd.f32 0.0, %v1322
    %v1324 = vpop.f32.mrb[0].mxu0
    %1325 = vdwg.mxu0
    %v1326 = vadd.f32 %v1252, %v1323
    %v1327 = vtanh.pop %v1326
    %1328 = vst.msk [vmem:[%s470] sm:$0xff] %vm65, %v1327
    %v1329 = vld [vmem:[%s548] sm:$0xff]
    %v1331 = vsel %vm65, %v1327, 0
    %1333 = vmatprep.subr.mxu0 0.0
    %1334 = vmatpush1.msra.mxu0 %v705
    %1335 = vmatprep.subr.mxu0 0.0
    %1336 = vmatpush1.msra.mxu0 %v706
    %1337 = vmatprep.subr.mxu0 0.0
    %1338 = vmatpush1.msra.mxu0 %v869
    %1339 = vmatprep.subr.mxu0 0.0
    %1340 = vmatpush1.msra.mxu0 0.0
    %1341 = vmatprep.subr.mxu0 0.0
    %1342 = vmatpush1.msra.mxu0 0.0
    %1343 = vmatprep.subr.mxu0 0.0
    %1344 = vmatpush1.msra.mxu0 0.0
    %1345 = vmatprep.subr.mxu0 0.0
    %1346 = vmatpush1.msra.mxu0 0.0
    %1347 = vmatprep.subr.mxu0 0.0
    %1348 = vmatpush1.msra.mxu0 0.0
    %1349 = vmatprep.subr.mxu0 0.0
    %1350 = vmatpush1.msra.mxu0 0.0
    %1351 = vmatprep.subr.mxu0 0.0
    %1352 = vmatpush1.msra.mxu0 0.0
    %1353 = vmatprep.subr.mxu0 0.0
    %1354 = vmatpush1.msra.mxu0 0.0
    %1355 = vmatprep.subr.mxu0 0.0
    %1356 = vmatpush1.msra.mxu0 0.0
    %1357 = vmatprep.subr.mxu0 0.0
    %1358 = vmatpush1.msra.mxu0 0.0
    %1359 = vmatprep.subr.mxu0 0.0
    %1360 = vmatpush1.msra.mxu0 0.0
    %1361 = vmatprep.subr.mxu0 0.0
    %1362 = vmatpush1.msra.mxu0 0.0
    %1363 = vmatprep.subr.mxu0 0.0
    %1364 = vmatpush1.msra.mxu0 0.0
    %1365 = vmatprep.subr.mxu0 0.0
    %1366 = vmatpush1.msra.mxu0 0.0
    %1367 = vmatprep.subr.mxu0 0.0
    %1368 = vmatpush1.msra.mxu0 0.0
    %1369 = vmatprep.subr.mxu0 0.0
    %1370 = vmatpush1.msra.mxu0 0.0
    %1371 = vmatprep.subr.mxu0 0.0
    %1372 = vmatpush1.msra.mxu0 0.0
    %1373 = vmatprep.subr.mxu0 0.0
    %1374 = vmatpush1.msra.mxu0 0.0
    %1375 = vmatprep.subr.mxu0 0.0
    %1376 = vmatpush1.msra.mxu0 0.0
    %1377 = vmatprep.subr.mxu0 0.0
    %1378 = vmatpush1.msra.mxu0 0.0
    %1379 = vmatprep.subr.mxu0 0.0
    %1380 = vmatpush1.msra.mxu0 0.0
    %1381 = vmatprep.subr.mxu0 0.0
    %1382 = vmatpush1.msra.mxu0 0.0
    %1383 = vmatprep.subr.mxu0 0.0
    %1384 = vmatpush1.msra.mxu0 0.0
    %1385 = vmatprep.subr.mxu0 0.0
    %1386 = vmatpush1.msra.mxu0 0.0
    %1387 = vmatprep.subr.mxu0 0.0
    %1388 = vmatpush1.msra.mxu0 0.0
    %1389 = vmatprep.subr.mxu0 0.0
    %1390 = vmatpush1.msra.mxu0 0.0
    %1391 = vmatprep.subr.mxu0 0.0
    %1392 = vmatpush1.msra.mxu0 0.0
    %1393 = vmatprep.subr.mxu0 0.0
    %1394 = vmatpush1.msra.mxu0 0.0
    %1395 = vmatprep.subr.mxu0 0.0
    %1396 = vmatpush1.msra.mxu0 0.0
    %1397 = vmatprep.mubr.f32.mxu0 0.0
    %1398 = vmatmul.mubr.f32.gmra.mrb[0].mxu0 %v1331
    %v1399 = vpop.f32.mrb[0].mxu0
    %v1400 = vadd.f32 0.0, %v1399
    %v1401 = vpop.f32.mrb[0].mxu0
    %1402 = vdwg.mxu0
    %v1403 = vadd.f32 %v1329, %v1400
    %v1404 = vtanh.pop %v1403
    %1405 = vst.msk [vmem:[%s548] sm:$0xff] %vm65, %v1404
    %v1406 = vld [vmem:[%s626] sm:$0xff]
    %v1408 = vsel %vm65, %v1404, 0
    %1410 = vmatprep.subr.mxu0 0.0
    %1411 = vmatpush1.msra.mxu0 %v705
    %1412 = vmatprep.subr.mxu0 0.0
    %1413 = vmatpush1.msra.mxu0 %v706
    %1414 = vmatprep.subr.mxu0 0.0
    %1415 = vmatpush1.msra.mxu0 %v869
    %1416 = vmatprep.subr.mxu0 0.0
    %1417 = vmatpush1.msra.mxu0 0.0
    %1418 = vmatprep.subr.mxu0 0.0
    %1419 = vmatpush1.msra.mxu0 0.0
    %1420 = vmatprep.subr.mxu0 0.0
    %1421 = vmatpush1.msra.mxu0 0.0
    %1422 = vmatprep.subr.mxu0 0.0
    %1423 = vmatpush1.msra.mxu0 0.0
    %1424 = vmatprep.subr.mxu0 0.0
    %1425 = vmatpush1.msra.mxu0 0.0
    %1426 = vmatprep.subr.mxu0 0.0
    %1427 = vmatpush1.msra.mxu0 0.0
    %1428 = vmatprep.subr.mxu0 0.0
    %1429 = vmatpush1.msra.mxu0 0.0
    %1430 = vmatprep.subr.mxu0 0.0
    %1431 = vmatpush1.msra.mxu0 0.0
    %1432 = vmatprep.subr.mxu0 0.0
    %1433 = vmatpush1.msra.mxu0 0.0
    %1434 = vmatprep.subr.mxu0 0.0
    %1435 = vmatpush1.msra.mxu0 0.0
    %1436 = vmatprep.subr.mxu0 0.0
    %1437 = vmatpush1.msra.mxu0 0.0
    %1438 = vmatprep.subr.mxu0 0.0
    %1439 = vmatpush1.msra.mxu0 0.0
    %1440 = vmatprep.subr.mxu0 0.0
    %1441 = vmatpush1.msra.mxu0 0.0
    %1442 = vmatprep.subr.mxu0 0.0
    %1443 = vmatpush1.msra.mxu0 0.0
    %1444 = vmatprep.subr.mxu0 0.0
    %1445 = vmatpush1.msra.mxu0 0.0
    %1446 = vmatprep.subr.mxu0 0.0
    %1447 = vmatpush1.msra.mxu0 0.0
    %1448 = vmatprep.subr.mxu0 0.0
    %1449 = vmatpush1.msra.mxu0 0.0
    %1450 = vmatprep.subr.mxu0 0.0
    %1451 = vmatpush1.msra.mxu0 0.0
    %1452 = vmatprep.subr.mxu0 0.0
    %1453 = vmatpush1.msra.mxu0 0.0
    %1454 = vmatprep.subr.mxu0 0.0
    %1455 = vmatpush1.msra.mxu0 0.0
    %1456 = vmatprep.subr.mxu0 0.0
    %1457 = vmatpush1.msra.mxu0 0.0
    %1458 = vmatprep.subr.mxu0 0.0
    %1459 = vmatpush1.msra.mxu0 0.0
    %1460 = vmatprep.subr.mxu0 0.0
    %1461 = vmatpush1.msra.mxu0 0.0
    %1462 = vmatprep.subr.mxu0 0.0
    %1463 = vmatpush1.msra.mxu0 0.0
    %1464 = vmatprep.subr.mxu0 0.0
    %1465 = vmatpush1.msra.mxu0 0.0
    %1466 = vmatprep.subr.mxu0 0.0
    %1467 = vmatpush1.msra.mxu0 0.0
    %1468 = vmatprep.subr.mxu0 0.0
    %1469 = vmatpush1.msra.mxu0 0.0
    %1470 = vmatprep.subr.mxu0 0.0
    %1471 = vmatpush1.msra.mxu0 0.0
    %1472 = vmatprep.subr.mxu0 0.0
    %1473 = vmatpush1.msra.mxu0 0.0
    %1474 = vmatprep.mubr.f32.mxu0 0.0
    %1475 = vmatmul.mubr.f32.gmra.mrb[0].mxu0 %v1408
    %v1476 = vpop.f32.mrb[0].mxu0
    %v1477 = vadd.f32 0.0, %v1476
    %v1478 = vpop.f32.mrb[0].mxu0
    %1479 = vdwg.mxu0
    %v1480 = vadd.f32 %v1406, %v1477
    %v1481 = vtanh.pop %v1480
    %1482 = vst.msk [vmem:[%s626] sm:$0xff] %vm65, %v1481
    %s1483 = scalar_lea.vmem %s3, 48
    %v1484 = vld [vmem:[%s1483] sm:$0xff]
    %v1485 = vld [vmem:[%s1483 + $0x8] sm:$0xff]
    %v1486 = vld [vmem:[%s1483 + $0x10] sm:$0xf]
    %v1487 = vld [vmem:[#allocation2] sm:$0xff]
    %v1488 = vld [vmem:[#allocation2 + $0x8] sm:$0xff]
    %v1489 = vld [vmem:[#allocation2 + $0x10] sm:$0xff]
    %v1490 = vld [vmem:[#allocation2 + $0x18] sm:$0xff]
    %v1491 = vld [vmem:[#allocation2 + $0x20] sm:$0xff]
    %v1492 = vld [vmem:[#allocation2 + $0x28] sm:$0xff]
    %v1493 = vld [vmem:[#allocation2 + $0x30] sm:$0xff]
    %v1494 = vld [vmem:[#allocation2 + $0x38] sm:$0xff]
    %s1495 = scalar_lea.vmem %s2, 24
    %v1496 = vld [vmem:[%s1495] sm:$0xff]
    %v1497 = vld [vmem:[%s1495 + $0x8] sm:$0xff]
    %v1498 = vld [vmem:[%s1495 + $0x10] sm:$0xf]
    %s1499 = scalar_lea.vmem %s4, 2
    %v1500 = vld [vmem:[%s1499] sm:$0x1]
    %v1502 = vlaneseq
    %v1503 = vshrl.u32 %v1502, 7
    %v1504 = vsub.s32 0, %v1503
    %v1505 = vrot.slane %v1500, %v1504
    %v1508 = vsel %vm65, %v1487, 0
    %v1511 = vsel %vm65, %v1488, 0
    %v1514 = vsel %vm65, %v1489, 0
    %v1517 = vsel %vm65, %v1490, 0
    %v1520 = vsel %vm65, %v1491, 0
    %v1523 = vsel %vm65, %v1492, 0
    %v1526 = vsel %vm65, %v1493, 0
    %v1529 = vsel %vm65, %v1494, 0
    %v1532 = vsel %vm81, %v1498, 0
    %1534 = vmatprep.subr.mxu0 0.0
    %1535 = vmatpush1.msra.mxu0 %v1496
    %1536 = vmatprep.subr.mxu0 0.0
    %1537 = vmatpush1.msra.mxu0 %v1497
    %1538 = vmatprep.subr.mxu0 0.0
    %1539 = vmatpush1.msra.mxu0 %v1532
    %1540 = vmatprep.subr.mxu0 0.0
    %1541 = vmatpush1.msra.mxu0 0.0
    %1542 = vmatprep.subr.mxu0 0.0
    %1543 = vmatpush1.msra.mxu0 0.0
    %1544 = vmatprep.subr.mxu0 0.0
    %1545 = vmatpush1.msra.mxu0 0.0
    %1546 = vmatprep.subr.mxu0 0.0
    %1547 = vmatpush1.msra.mxu0 0.0
    %1548 = vmatprep.subr.mxu0 0.0
    %1549 = vmatpush1.msra.mxu0 0.0
    %1550 = vmatprep.subr.mxu0 0.0
    %1551 = vmatpush1.msra.mxu0 0.0
    %1552 = vmatprep.subr.mxu0 0.0
    %1553 = vmatpush1.msra.mxu0 0.0
    %1554 = vmatprep.subr.mxu0 0.0
    %1555 = vmatpush1.msra.mxu0 0.0
    %1556 = vmatprep.subr.mxu0 0.0
    %1557 = vmatpush1.msra.mxu0 0.0
    %1558 = vmatprep.subr.mxu0 0.0
    %1559 = vmatpush1.msra.mxu0 0.0
    %1560 = vmatprep.subr.mxu0 0.0
    %1561 = vmatpush1.msra.mxu0 0.0
    %1562 = vmatprep.subr.mxu0 0.0
    %1563 = vmatpush1.msra.mxu0 0.0
    %1564 = vmatprep.subr.mxu0 0.0
    %1565 = vmatpush1.msra.mxu0 0.0
    %1566 = vmatprep.subr.mxu0 0.0
    %1567 = vmatpush1.msra.mxu0 0.0
    %1568 = vmatprep.subr.mxu0 0.0
    %1569 = vmatpush1.msra.mxu0 0.0
    %1570 = vmatprep.subr.mxu0 0.0
    %1571 = vmatpush1.msra.mxu0 0.0
    %1572 = vmatprep.subr.mxu0 0.0
    %1573 = vmatpush1.msra.mxu0 0.0
    %1574 = vmatprep.subr.mxu0 0.0
    %1575 = vmatpush1.msra.mxu0 0.0
    %1576 = vmatprep.subr.mxu0 0.0
    %1577 = vmatpush1.msra.mxu0 0.0
    %1578 = vmatprep.subr.mxu0 0.0
    %1579 = vmatpush1.msra.mxu0 0.0
    %1580 = vmatprep.subr.mxu0 0.0
    %1581 = vmatpush1.msra.mxu0 0.0
    %1582 = vmatprep.subr.mxu0 0.0
    %1583 = vmatpush1.msra.mxu0 0.0
    %1584 = vmatprep.subr.mxu0 0.0
    %1585 = vmatpush1.msra.mxu0 0.0
    %1586 = vmatprep.subr.mxu0 0.0
    %1587 = vmatpush1.msra.mxu0 0.0
    %1588 = vmatprep.subr.mxu0 0.0
    %1589 = vmatpush1.msra.mxu0 0.0
    %1590 = vmatprep.subr.mxu0 0.0
    %1591 = vmatpush1.msra.mxu0 0.0
    %1592 = vmatprep.subr.mxu0 0.0
    %1593 = vmatpush1.msra.mxu0 0.0
    %1594 = vmatprep.subr.mxu0 0.0
    %1595 = vmatpush1.msra.mxu0 0.0
    %1596 = vmatprep.subr.mxu0 0.0
    %1597 = vmatpush1.msra.mxu0 0.0
    %1598 = vmatprep.mubr.f32.mxu0 0.0
    %1599 = vmatmul.mubr.f32.gmra.mrb[0].mxu0 %v1508
    %v1600 = vpop.f32.mrb[0].mxu0
    %v1601 = vadd.f32 %v1505, %v1600
    %v1602 = vpop.f32.mrb[0].mxu0
    %1603 = vmatprep.mubr.f32.mxu0 0.0
    %1604 = vmatmul.mubr.f32.gmra.mrb[0].mxu0 %v1511
    %v1605 = vpop.f32.mrb[0].mxu0
    %v1606 = vadd.f32 %v1505, %v1605
    %v1607 = vpop.f32.mrb[0].mxu0
    %1608 = vmatprep.mubr.f32.mxu0 0.0
    %1609 = vmatmul.mubr.f32.gmra.mrb[0].mxu0 %v1514
    %v1610 = vpop.f32.mrb[0].mxu0
    %v1611 = vadd.f32 %v1505, %v1610
    %v1612 = vpop.f32.mrb[0].mxu0
    %1613 = vmatprep.mubr.f32.mxu0 0.0
    %1614 = vmatmul.mubr.f32.gmra.mrb[0].mxu0 %v1517
    %v1615 = vpop.f32.mrb[0].mxu0
    %v1616 = vadd.f32 %v1505, %v1615
    %v1617 = vpop.f32.mrb[0].mxu0
    %1618 = vmatprep.mubr.f32.mxu0 0.0
    %1619 = vmatmul.mubr.f32.gmra.mrb[0].mxu0 %v1520
    %v1620 = vpop.f32.mrb[0].mxu0
    %v1621 = vadd.f32 %v1505, %v1620
    %v1622 = vpop.f32.mrb[0].mxu0
    %1623 = vmatprep.mubr.f32.mxu0 0.0
    %1624 = vmatmul.mubr.f32.gmra.mrb[0].mxu0 %v1523
    %v1625 = vpop.f32.mrb[0].mxu0
    %v1626 = vadd.f32 %v1505, %v1625
    %v1627 = vpop.f32.mrb[0].mxu0
    %1628 = vmatprep.mubr.f32.mxu0 0.0
    %1629 = vmatmul.mubr.f32.gmra.mrb[0].mxu0 %v1526
    %v1630 = vpop.f32.mrb[0].mxu0
    %v1631 = vadd.f32 %v1505, %v1630
    %v1632 = vpop.f32.mrb[0].mxu0
    %1633 = vmatprep.mubr.f32.mxu0 0.0
    %1634 = vmatmul.mubr.f32.gmra.mrb[0].mxu0 %v1529
    %v1635 = vpop.f32.mrb[0].mxu0
    %v1636 = vadd.f32 %v1505, %v1635
    %v1637 = vpop.f32.mrb[0].mxu0
    %1638 = vdwg.mxu0
    %1639 = vst.msk [vmem:[#allocation2] sm:$0xff] %vm65, %v1601
    %1640 = vst.msk [vmem:[#allocation2 + $0x8] sm:$0xff] %vm65, %v1606
    %1641 = vst.msk [vmem:[#allocation2 + $0x10] sm:$0xff] %vm65, %v1611
    %1642 = vst.msk [vmem:[#allocation2 + $0x18] sm:$0xff] %vm65, %v1616
    %1643 = vst.msk [vmem:[#allocation2 + $0x20] sm:$0xff] %vm65, %v1621
    %1644 = vst.msk [vmem:[#allocation2 + $0x28] sm:$0xff] %vm65, %v1626
    %1645 = vst.msk [vmem:[#allocation2 + $0x30] sm:$0xff] %vm65, %v1631
    %1646 = vst.msk [vmem:[#allocation2 + $0x38] sm:$0xff] %vm65, %v1636
    %v1647 = vld [vmem:[#allocation2] sm:$0xff]
    %v1649 = vsel %vm81, %v1486, 0
    %1651 = vmatprep.subr.mxu0 0.0
    %1652 = vmatpush1.msra.mxu0 %v1484
    %1653 = vmatprep.subr.mxu0 0.0
    %1654 = vmatpush1.msra.mxu0 %v1485
    %1655 = vmatprep.subr.mxu0 0.0
    %1656 = vmatpush1.msra.mxu0 %v1649
    %1657 = vmatprep.subr.mxu0 0.0
    %1658 = vmatpush1.msra.mxu0 0.0
    %1659 = vmatprep.subr.mxu0 0.0
    %1660 = vmatpush1.msra.mxu0 0.0
    %1661 = vmatprep.subr.mxu0 0.0
    %1662 = vmatpush1.msra.mxu0 0.0
    %1663 = vmatprep.subr.mxu0 0.0
    %1664 = vmatpush1.msra.mxu0 0.0
    %1665 = vmatprep.subr.mxu0 0.0
    %1666 = vmatpush1.msra.mxu0 0.0
    %1667 = vmatprep.subr.mxu0 0.0
    %1668 = vmatpush1.msra.mxu0 0.0
    %1669 = vmatprep.subr.mxu0 0.0
    %1670 = vmatpush1.msra.mxu0 0.0
    %1671 = vmatprep.subr.mxu0 0.0
    %1672 = vmatpush1.msra.mxu0 0.0
    %1673 = vmatprep.subr.mxu0 0.0
    %1674 = vmatpush1.msra.mxu0 0.0
    %1675 = vmatprep.subr.mxu0 0.0
    %1676 = vmatpush1.msra.mxu0 0.0
    %1677 = vmatprep.subr.mxu0 0.0
    %1678 = vmatpush1.msra.mxu0 0.0
    %1679 = vmatprep.subr.mxu0 0.0
    %1680 = vmatpush1.msra.mxu0 0.0
    %1681 = vmatprep.subr.mxu0 0.0
    %1682 = vmatpush1.msra.mxu0 0.0
    %1683 = vmatprep.subr.mxu0 0.0
    %1684 = vmatpush1.msra.mxu0 0.0
    %1685 = vmatprep.subr.mxu0 0.0
    %1686 = vmatpush1.msra.mxu0 0.0
    %1687 = vmatprep.subr.mxu0 0.0
    %1688 = vmatpush1.msra.mxu0 0.0
    %1689 = vmatprep.subr.mxu0 0.0
    %1690 = vmatpush1.msra.mxu0 0.0
    %1691 = vmatprep.subr.mxu0 0.0
    %1692 = vmatpush1.msra.mxu0 0.0
    %1693 = vmatprep.subr.mxu0 0.0
    %1694 = vmatpush1.msra.mxu0 0.0
    %1695 = vmatprep.subr.mxu0 0.0
    %1696 = vmatpush1.msra.mxu0 0.0
    %1697 = vmatprep.subr.mxu0 0.0
    %1698 = vmatpush1.msra.mxu0 0.0
    %1699 = vmatprep.subr.mxu0 0.0
    %1700 = vmatpush1.msra.mxu0 0.0
    %1701 = vmatprep.subr.mxu0 0.0
    %1702 = vmatpush1.msra.mxu0 0.0
    %1703 = vmatprep.subr.mxu0 0.0
    %1704 = vmatpush1.msra.mxu0 0.0
    %1705 = vmatprep.subr.mxu0 0.0
    %1706 = vmatpush1.msra.mxu0 0.0
    %1707 = vmatprep.subr.mxu0 0.0
    %1708 = vmatpush1.msra.mxu0 0.0
    %1709 = vmatprep.subr.mxu0 0.0
    %1710 = vmatpush1.msra.mxu0 0.0
    %1711 = vmatprep.subr.mxu0 0.0
    %1712 = vmatpush1.msra.mxu0 0.0
    %1713 = vmatprep.subr.mxu0 0.0
    %1714 = vmatpush1.msra.mxu0 0.0
    %1715 = vmatprep.mubr.f32.mxu0 0.0
    %1716 = vmatmul.mubr.f32.gmra.mrb[0].mxu0 %v79
    %v1717 = vpop.f32.mrb[0].mxu0
    %v1718 = vadd.f32 0.0, %v1717
    %v1719 = vpop.f32.mrb[0].mxu0
    %1720 = vdwg.mxu0
    %v1721 = vadd.f32 %v1647, %v1718
    %v1722 = vtanh.pop %v1721
    %1723 = vst.msk [vmem:[#allocation2] sm:$0xff] %vm65, %v1722
    %v1724 = vld [vmem:[%s158] sm:$0xff]
    %v1726 = vsel %vm65, %v1722, 0
    %1728 = vmatprep.subr.mxu0 0.0
    %1729 = vmatpush1.msra.mxu0 %v1484
    %1730 = vmatprep.subr.mxu0 0.0
    %1731 = vmatpush1.msra.mxu0 %v1485
    %1732 = vmatprep.subr.mxu0 0.0
    %1733 = vmatpush1.msra.mxu0 %v1649
    %1734 = vmatprep.subr.mxu0 0.0
    %1735 = vmatpush1.msra.mxu0 0.0
    %1736 = vmatprep.subr.mxu0 0.0
    %1737 = vmatpush1.msra.mxu0 0.0
    %1738 = vmatprep.subr.mxu0 0.0
    %1739 = vmatpush1.msra.mxu0 0.0
    %1740 = vmatprep.subr.mxu0 0.0
    %1741 = vmatpush1.msra.mxu0 0.0
    %1742 = vmatprep.subr.mxu0 0.0
    %1743 = vmatpush1.msra.mxu0 0.0
    %1744 = vmatprep.subr.mxu0 0.0
    %1745 = vmatpush1.msra.mxu0 0.0
    %1746 = vmatprep.subr.mxu0 0.0
    %1747 = vmatpush1.msra.mxu0 0.0
    %1748 = vmatprep.subr.mxu0 0.0
    %1749 = vmatpush1.msra.mxu0 0.0
    %1750 = vmatprep.subr.mxu0 0.0
    %1751 = vmatpush1.msra.mxu0 0.0
    %1752 = vmatprep.subr.mxu0 0.0
    %1753 = vmatpush1.msra.mxu0 0.0
    %1754 = vmatprep.subr.mxu0 0.0
    %1755 = vmatpush1.msra.mxu0 0.0
    %1756 = vmatprep.subr.mxu0 0.0
    %1757 = vmatpush1.msra.mxu0 0.0
    %1758 = vmatprep.subr.mxu0 0.0
    %1759 = vmatpush1.msra.mxu0 0.0
    %1760 = vmatprep.subr.mxu0 0.0
    %1761 = vmatpush1.msra.mxu0 0.0
    %1762 = vmatprep.subr.mxu0 0.0
    %1763 = vmatpush1.msra.mxu0 0.0
    %1764 = vmatprep.subr.mxu0 0.0
    %1765 = vmatpush1.msra.mxu0 0.0
    %1766 = vmatprep.subr.mxu0 0.0
    %1767 = vmatpush1.msra.mxu0 0.0
    %1768 = vmatprep.subr.mxu0 0.0
    %1769 = vmatpush1.msra.mxu0 0.0
    %1770 = vmatprep.subr.mxu0 0.0
    %1771 = vmatpush1.msra.mxu0 0.0
    %1772 = vmatprep.subr.mxu0 0.0
    %1773 = vmatpush1.msra.mxu0 0.0
    %1774 = vmatprep.subr.mxu0 0.0
    %1775 = vmatpush1.msra.mxu0 0.0
    %1776 = vmatprep.subr.mxu0 0.0
    %1777 = vmatpush1.msra.mxu0 0.0
    %1778 = vmatprep.subr.mxu0 0.0
    %1779 = vmatpush1.msra.mxu0 0.0
    %1780 = vmatprep.subr.mxu0 0.0
    %1781 = vmatpush1.msra.mxu0 0.0
    %1782 = vmatprep.subr.mxu0 0.0
    %1783 = vmatpush1.msra.mxu0 0.0
    %1784 = vmatprep.subr.mxu0 0.0
    %1785 = vmatpush1.msra.mxu0 0.0
    %1786 = vmatprep.subr.mxu0 0.0
    %1787 = vmatpush1.msra.mxu0 0.0
    %1788 = vmatprep.subr.mxu0 0.0
    %1789 = vmatpush1.msra.mxu0 0.0
    %1790 = vmatprep.subr.mxu0 0.0
    %1791 = vmatpush1.msra.mxu0 0.0
    %1792 = vmatprep.mubr.f32.mxu0 0.0
    %1793 = vmatmul.mubr.f32.gmra.mrb[0].mxu0 %v1726
    %v1794 = vpop.f32.mrb[0].mxu0
    %v1795 = vadd.f32 0.0, %v1794
    %v1796 = vpop.f32.mrb[0].mxu0
    %1797 = vdwg.mxu0
    %v1798 = vadd.f32 %v1724, %v1795
    %v1799 = vtanh.pop %v1798
    %1800 = vst.msk [vmem:[%s158] sm:$0xff] %vm65, %v1799
    %v1801 = vld [vmem:[%s236] sm:$0xff]
    %v1803 = vsel %vm65, %v1799, 0
    %1805 = vmatprep.subr.mxu0 0.0
    %1806 = vmatpush1.msra.mxu0 %v1484
    %1807 = vmatprep.subr.mxu0 0.0
    %1808 = vmatpush1.msra.mxu0 %v1485
    %1809 = vmatprep.subr.mxu0 0.0
    %1810 = vmatpush1.msra.mxu0 %v1649
    %1811 = vmatprep.subr.mxu0 0.0
    %1812 = vmatpush1.msra.mxu0 0.0
    %1813 = vmatprep.subr.mxu0 0.0
    %1814 = vmatpush1.msra.mxu0 0.0
    %1815 = vmatprep.subr.mxu0 0.0
    %1816 = vmatpush1.msra.mxu0 0.0
    %1817 = vmatprep.subr.mxu0 0.0
    %1818 = vmatpush1.msra.mxu0 0.0
    %1819 = vmatprep.subr.mxu0 0.0
    %1820 = vmatpush1.msra.mxu0 0.0
    %1821 = vmatprep.subr.mxu0 0.0
    %1822 = vmatpush1.msra.mxu0 0.0
    %1823 = vmatprep.subr.mxu0 0.0
    %1824 = vmatpush1.msra.mxu0 0.0
    %1825 = vmatprep.subr.mxu0 0.0
    %1826 = vmatpush1.msra.mxu0 0.0
    %1827 = vmatprep.subr.mxu0 0.0
    %1828 = vmatpush1.msra.mxu0 0.0
    %1829 = vmatprep.subr.mxu0 0.0
    %1830 = vmatpush1.msra.mxu0 0.0
    %1831 = vmatprep.subr.mxu0 0.0
    %1832 = vmatpush1.msra.mxu0 0.0
    %1833 = vmatprep.subr.mxu0 0.0
    %1834 = vmatpush1.msra.mxu0 0.0
    %1835 = vmatprep.subr.mxu0 0.0
    %1836 = vmatpush1.msra.mxu0 0.0
    %1837 = vmatprep.subr.mxu0 0.0
    %1838 = vmatpush1.msra.mxu0 0.0
    %1839 = vmatprep.subr.mxu0 0.0
    %1840 = vmatpush1.msra.mxu0 0.0
    %1841 = vmatprep.subr.mxu0 0.0
    %1842 = vmatpush1.msra.mxu0 0.0
    %1843 = vmatprep.subr.mxu0 0.0
    %1844 = vmatpush1.msra.mxu0 0.0
    %1845 = vmatprep.subr.mxu0 0.0
    %1846 = vmatpush1.msra.mxu0 0.0
    %1847 = vmatprep.subr.mxu0 0.0
    %1848 = vmatpush1.msra.mxu0 0.0
    %1849 = vmatprep.subr.mxu0 0.0
    %1850 = vmatpush1.msra.mxu0 0.0
    %1851 = vmatprep.subr.mxu0 0.0
    %1852 = vmatpush1.msra.mxu0 0.0
    %1853 = vmatprep.subr.mxu0 0.0
    %1854 = vmatpush1.msra.mxu0 0.0
    %1855 = vmatprep.subr.mxu0 0.0
    %1856 = vmatpush1.msra.mxu0 0.0
    %1857 = vmatprep.subr.mxu0 0.0
    %1858 = vmatpush1.msra.mxu0 0.0
    %1859 = vmatprep.subr.mxu0 0.0
    %1860 = vmatpush1.msra.mxu0 0.0
    %1861 = vmatprep.subr.mxu0 0.0
    %1862 = vmatpush1.msra.mxu0 0.0
    %1863 = vmatprep.subr.mxu0 0.0
    %1864 = vmatpush1.msra.mxu0 0.0
    %1865 = vmatprep.subr.mxu0 0.0
    %1866 = vmatpush1.msra.mxu0 0.0
    %1867 = vmatprep.subr.mxu0 0.0
    %1868 = vmatpush1.msra.mxu0 0.0
    %1869 = vmatprep.mubr.f32.mxu0 0.0
    %1870 = vmatmul.mubr.f32.gmra.mrb[0].mxu0 %v1803
    %v1871 = vpop.f32.mrb[0].mxu0
    %v1872 = vadd.f32 0.0, %v1871
    %v1873 = vpop.f32.mrb[0].mxu0
    %1874 = vdwg.mxu0
    %v1875 = vadd.f32 %v1801, %v1872
    %v1876 = vtanh.pop %v1875
    %1877 = vst.msk [vmem:[%s236] sm:$0xff] %vm65, %v1876
    %v1878 = vld [vmem:[%s314] sm:$0xff]
    %v1880 = vsel %vm65, %v1876, 0
    %1882 = vmatprep.subr.mxu0 0.0
    %1883 = vmatpush1.msra.mxu0 %v1484
    %1884 = vmatprep.subr.mxu0 0.0
    %1885 = vmatpush1.msra.mxu0 %v1485
    %1886 = vmatprep.subr.mxu0 0.0
    %1887 = vmatpush1.msra.mxu0 %v1649
    %1888 = vmatprep.subr.mxu0 0.0
    %1889 = vmatpush1.msra.mxu0 0.0
    %1890 = vmatprep.subr.mxu0 0.0
    %1891 = vmatpush1.msra.mxu0 0.0
    %1892 = vmatprep.subr.mxu0 0.0
    %1893 = vmatpush1.msra.mxu0 0.0
    %1894 = vmatprep.subr.mxu0 0.0
    %1895 = vmatpush1.msra.mxu0 0.0
    %1896 = vmatprep.subr.mxu0 0.0
    %1897 = vmatpush1.msra.mxu0 0.0
    %1898 = vmatprep.subr.mxu0 0.0
    %1899 = vmatpush1.msra.mxu0 0.0
    %1900 = vmatprep.subr.mxu0 0.0
    %1901 = vmatpush1.msra.mxu0 0.0
    %1902 = vmatprep.subr.mxu0 0.0
    %1903 = vmatpush1.msra.mxu0 0.0
    %1904 = vmatprep.subr.mxu0 0.0
    %1905 = vmatpush1.msra.mxu0 0.0
    %1906 = vmatprep.subr.mxu0 0.0
    %1907 = vmatpush1.msra.mxu0 0.0
    %1908 = vmatprep.subr.mxu0 0.0
    %1909 = vmatpush1.msra.mxu0 0.0
    %1910 = vmatprep.subr.mxu0 0.0
    %1911 = vmatpush1.msra.mxu0 0.0
    %1912 = vmatprep.subr.mxu0 0.0
    %1913 = vmatpush1.msra.mxu0 0.0
    %1914 = vmatprep.subr.mxu0 0.0
    %1915 = vmatpush1.msra.mxu0 0.0
    %1916 = vmatprep.subr.mxu0 0.0
    %1917 = vmatpush1.msra.mxu0 0.0
    %1918 = vmatprep.subr.mxu0 0.0
    %1919 = vmatpush1.msra.mxu0 0.0
    %1920 = vmatprep.subr.mxu0 0.0
    %1921 = vmatpush1.msra.mxu0 0.0
    %1922 = vmatprep.subr.mxu0 0.0
    %1923 = vmatpush1.msra.mxu0 0.0
    %1924 = vmatprep.subr.mxu0 0.0
    %1925 = vmatpush1.msra.mxu0 0.0
    %1926 = vmatprep.subr.mxu0 0.0
    %1927 = vmatpush1.msra.mxu0 0.0
    %1928 = vmatprep.subr.mxu0 0.0
    %1929 = vmatpush1.msra.mxu0 0.0
    %1930 = vmatprep.subr.mxu0 0.0
    %1931 = vmatpush1.msra.mxu0 0.0
    %1932 = vmatprep.subr.mxu0 0.0
    %1933 = vmatpush1.msra.mxu0 0.0
    %1934 = vmatprep.subr.mxu0 0.0
    %1935 = vmatpush1.msra.mxu0 0.0
    %1936 = vmatprep.subr.mxu0 0.0
    %1937 = vmatpush1.msra.mxu0 0.0
    %1938 = vmatprep.subr.mxu0 0.0
    %1939 = vmatpush1.msra.mxu0 0.0
    %1940 = vmatprep.subr.mxu0 0.0
    %1941 = vmatpush1.msra.mxu0 0.0
    %1942 = vmatprep.subr.mxu0 0.0
    %1943 = vmatpush1.msra.mxu0 0.0
    %1944 = vmatprep.subr.mxu0 0.0
    %1945 = vmatpush1.msra.mxu0 0.0
    %1946 = vmatprep.mubr.f32.mxu0 0.0
    %1947 = vmatmul.mubr.f32.gmra.mrb[0].mxu0 %v1880
    %v1948 = vpop.f32.mrb[0].mxu0
    %v1949 = vadd.f32 0.0, %v1948
    %v1950 = vpop.f32.mrb[0].mxu0
    %1951 = vdwg.mxu0
    %v1952 = vadd.f32 %v1878, %v1949
    %v1953 = vtanh.pop %v1952
    %1954 = vst.msk [vmem:[%s314] sm:$0xff] %vm65, %v1953
    %v1955 = vld [vmem:[%s392] sm:$0xff]
    %v1957 = vsel %vm65, %v1953, 0
    %1959 = vmatprep.subr.mxu0 0.0
    %1960 = vmatpush1.msra.mxu0 %v1484
    %1961 = vmatprep.subr.mxu0 0.0
    %1962 = vmatpush1.msra.mxu0 %v1485
    %1963 = vmatprep.subr.mxu0 0.0
    %1964 = vmatpush1.msra.mxu0 %v1649
    %1965 = vmatprep.subr.mxu0 0.0
    %1966 = vmatpush1.msra.mxu0 0.0
    %1967 = vmatprep.subr.mxu0 0.0
    %1968 = vmatpush1.msra.mxu0 0.0
    %1969 = vmatprep.subr.mxu0 0.0
    %1970 = vmatpush1.msra.mxu0 0.0
    %1971 = vmatprep.subr.mxu0 0.0
    %1972 = vmatpush1.msra.mxu0 0.0
    %1973 = vmatprep.subr.mxu0 0.0
    %1974 = vmatpush1.msra.mxu0 0.0
    %1975 = vmatprep.subr.mxu0 0.0
    %1976 = vmatpush1.msra.mxu0 0.0
    %1977 = vmatprep.subr.mxu0 0.0
    %1978 = vmatpush1.msra.mxu0 0.0
    %1979 = vmatprep.subr.mxu0 0.0
    %1980 = vmatpush1.msra.mxu0 0.0
    %1981 = vmatprep.subr.mxu0 0.0
    %1982 = vmatpush1.msra.mxu0 0.0
    %1983 = vmatprep.subr.mxu0 0.0
    %1984 = vmatpush1.msra.mxu0 0.0
    %1985 = vmatprep.subr.mxu0 0.0
    %1986 = vmatpush1.msra.mxu0 0.0
    %1987 = vmatprep.subr.mxu0 0.0
    %1988 = vmatpush1.msra.mxu0 0.0
    %1989 = vmatprep.subr.mxu0 0.0
    %1990 = vmatpush1.msra.mxu0 0.0
    %1991 = vmatprep.subr.mxu0 0.0
    %1992 = vmatpush1.msra.mxu0 0.0
    %1993 = vmatprep.subr.mxu0 0.0
    %1994 = vmatpush1.msra.mxu0 0.0
    %1995 = vmatprep.subr.mxu0 0.0
    %1996 = vmatpush1.msra.mxu0 0.0
    %1997 = vmatprep.subr.mxu0 0.0
    %1998 = vmatpush1.msra.mxu0 0.0
    %1999 = vmatprep.subr.mxu0 0.0
    %2000 = vmatpush1.msra.mxu0 0.0
    %2001 = vmatprep.subr.mxu0 0.0
    %2002 = vmatpush1.msra.mxu0 0.0
    %2003 = vmatprep.subr.mxu0 0.0
    %2004 = vmatpush1.msra.mxu0 0.0
    %2005 = vmatprep.subr.mxu0 0.0
    %2006 = vmatpush1.msra.mxu0 0.0
    %2007 = vmatprep.subr.mxu0 0.0
    %2008 = vmatpush1.msra.mxu0 0.0
    %2009 = vmatprep.subr.mxu0 0.0
    %2010 = vmatpush1.msra.mxu0 0.0
    %2011 = vmatprep.subr.mxu0 0.0
    %2012 = vmatpush1.msra.mxu0 0.0
    %2013 = vmatprep.subr.mxu0 0.0
    %2014 = vmatpush1.msra.mxu0 0.0
    %2015 = vmatprep.subr.mxu0 0.0
    %2016 = vmatpush1.msra.mxu0 0.0
    %2017 = vmatprep.subr.mxu0 0.0
    %2018 = vmatpush1.msra.mxu0 0.0
    %2019 = vmatprep.subr.mxu0 0.0
    %2020 = vmatpush1.msra.mxu0 0.0
    %2021 = vmatprep.subr.mxu0 0.0
    %2022 = vmatpush1.msra.mxu0 0.0
    %2023 = vmatprep.mubr.f32.mxu0 0.0
    %2024 = vmatmul.mubr.f32.gmra.mrb[0].mxu0 %v1957
    %v2025 = vpop.f32.mrb[0].mxu0
    %v2026 = vadd.f32 0.0, %v2025
    %v2027 = vpop.f32.mrb[0].mxu0
    %2028 = vdwg.mxu0
    %v2029 = vadd.f32 %v1955, %v2026
    %v2030 = vtanh.pop %v2029
    %2031 = vst.msk [vmem:[%s392] sm:$0xff] %vm65, %v2030
    %v2032 = vld [vmem:[%s470] sm:$0xff]
    %v2034 = vsel %vm65, %v2030, 0
    %2036 = vmatprep.subr.mxu0 0.0
    %2037 = vmatpush1.msra.mxu0 %v1484
    %2038 = vmatprep.subr.mxu0 0.0
    %2039 = vmatpush1.msra.mxu0 %v1485
    %2040 = vmatprep.subr.mxu0 0.0
    %2041 = vmatpush1.msra.mxu0 %v1649
    %2042 = vmatprep.subr.mxu0 0.0
    %2043 = vmatpush1.msra.mxu0 0.0
    %2044 = vmatprep.subr.mxu0 0.0
    %2045 = vmatpush1.msra.mxu0 0.0
    %2046 = vmatprep.subr.mxu0 0.0
    %2047 = vmatpush1.msra.mxu0 0.0
    %2048 = vmatprep.subr.mxu0 0.0
    %2049 = vmatpush1.msra.mxu0 0.0
    %2050 = vmatprep.subr.mxu0 0.0
    %2051 = vmatpush1.msra.mxu0 0.0
    %2052 = vmatprep.subr.mxu0 0.0
    %2053 = vmatpush1.msra.mxu0 0.0
    %2054 = vmatprep.subr.mxu0 0.0
    %2055 = vmatpush1.msra.mxu0 0.0
    %2056 = vmatprep.subr.mxu0 0.0
    %2057 = vmatpush1.msra.mxu0 0.0
    %2058 = vmatprep.subr.mxu0 0.0
    %2059 = vmatpush1.msra.mxu0 0.0
    %2060 = vmatprep.subr.mxu0 0.0
    %2061 = vmatpush1.msra.mxu0 0.0
    %2062 = vmatprep.subr.mxu0 0.0
    %2063 = vmatpush1.msra.mxu0 0.0
    %2064 = vmatprep.subr.mxu0 0.0
    %2065 = vmatpush1.msra.mxu0 0.0
    %2066 = vmatprep.subr.mxu0 0.0
    %2067 = vmatpush1.msra.mxu0 0.0
    %2068 = vmatprep.subr.mxu0 0.0
    %2069 = vmatpush1.msra.mxu0 0.0
    %2070 = vmatprep.subr.mxu0 0.0
    %2071 = vmatpush1.msra.mxu0 0.0
    %2072 = vmatprep.subr.mxu0 0.0
    %2073 = vmatpush1.msra.mxu0 0.0
    %2074 = vmatprep.subr.mxu0 0.0
    %2075 = vmatpush1.msra.mxu0 0.0
    %2076 = vmatprep.subr.mxu0 0.0
    %2077 = vmatpush1.msra.mxu0 0.0
    %2078 = vmatprep.subr.mxu0 0.0
    %2079 = vmatpush1.msra.mxu0 0.0
    %2080 = vmatprep.subr.mxu0 0.0
    %2081 = vmatpush1.msra.mxu0 0.0
    %2082 = vmatprep.subr.mxu0 0.0
    %2083 = vmatpush1.msra.mxu0 0.0
    %2084 = vmatprep.subr.mxu0 0.0
    %2085 = vmatpush1.msra.mxu0 0.0
    %2086 = vmatprep.subr.mxu0 0.0
    %2087 = vmatpush1.msra.mxu0 0.0
    %2088 = vmatprep.subr.mxu0 0.0
    %2089 = vmatpush1.msra.mxu0 0.0
    %2090 = vmatprep.subr.mxu0 0.0
    %2091 = vmatpush1.msra.mxu0 0.0
    %2092 = vmatprep.subr.mxu0 0.0
    %2093 = vmatpush1.msra.mxu0 0.0
    %2094 = vmatprep.subr.mxu0 0.0
    %2095 = vmatpush1.msra.mxu0 0.0
    %2096 = vmatprep.subr.mxu0 0.0
    %2097 = vmatpush1.msra.mxu0 0.0
    %2098 = vmatprep.subr.mxu0 0.0
    %2099 = vmatpush1.msra.mxu0 0.0
    %2100 = vmatprep.mubr.f32.mxu0 0.0
    %2101 = vmatmul.mubr.f32.gmra.mrb[0].mxu0 %v2034
    %v2102 = vpop.f32.mrb[0].mxu0
    %v2103 = vadd.f32 0.0, %v2102
    %v2104 = vpop.f32.mrb[0].mxu0
    %2105 = vdwg.mxu0
    %v2106 = vadd.f32 %v2032, %v2103
    %v2107 = vtanh.pop %v2106
    %2108 = vst.msk [vmem:[%s470] sm:$0xff] %vm65, %v2107
    %v2109 = vld [vmem:[%s548] sm:$0xff]
    %v2111 = vsel %vm65, %v2107, 0
    %2113 = vmatprep.subr.mxu0 0.0
    %2114 = vmatpush1.msra.mxu0 %v1484
    %2115 = vmatprep.subr.mxu0 0.0
    %2116 = vmatpush1.msra.mxu0 %v1485
    %2117 = vmatprep.subr.mxu0 0.0
    %2118 = vmatpush1.msra.mxu0 %v1649
    %2119 = vmatprep.subr.mxu0 0.0
    %2120 = vmatpush1.msra.mxu0 0.0
    %2121 = vmatprep.subr.mxu0 0.0
    %2122 = vmatpush1.msra.mxu0 0.0
    %2123 = vmatprep.subr.mxu0 0.0
    %2124 = vmatpush1.msra.mxu0 0.0
    %2125 = vmatprep.subr.mxu0 0.0
    %2126 = vmatpush1.msra.mxu0 0.0
    %2127 = vmatprep.subr.mxu0 0.0
    %2128 = vmatpush1.msra.mxu0 0.0
    %2129 = vmatprep.subr.mxu0 0.0
    %2130 = vmatpush1.msra.mxu0 0.0
    %2131 = vmatprep.subr.mxu0 0.0
    %2132 = vmatpush1.msra.mxu0 0.0
    %2133 = vmatprep.subr.mxu0 0.0
    %2134 = vmatpush1.msra.mxu0 0.0
    %2135 = vmatprep.subr.mxu0 0.0
    %2136 = vmatpush1.msra.mxu0 0.0
    %2137 = vmatprep.subr.mxu0 0.0
    %2138 = vmatpush1.msra.mxu0 0.0
    %2139 = vmatprep.subr.mxu0 0.0
    %2140 = vmatpush1.msra.mxu0 0.0
    %2141 = vmatprep.subr.mxu0 0.0
    %2142 = vmatpush1.msra.mxu0 0.0
    %2143 = vmatprep.subr.mxu0 0.0
    %2144 = vmatpush1.msra.mxu0 0.0
    %2145 = vmatprep.subr.mxu0 0.0
    %2146 = vmatpush1.msra.mxu0 0.0
    %2147 = vmatprep.subr.mxu0 0.0
    %2148 = vmatpush1.msra.mxu0 0.0
    %2149 = vmatprep.subr.mxu0 0.0
    %2150 = vmatpush1.msra.mxu0 0.0
    %2151 = vmatprep.subr.mxu0 0.0
    %2152 = vmatpush1.msra.mxu0 0.0
    %2153 = vmatprep.subr.mxu0 0.0
    %2154 = vmatpush1.msra.mxu0 0.0
    %2155 = vmatprep.subr.mxu0 0.0
    %2156 = vmatpush1.msra.mxu0 0.0
    %2157 = vmatprep.subr.mxu0 0.0
    %2158 = vmatpush1.msra.mxu0 0.0
    %2159 = vmatprep.subr.mxu0 0.0
    %2160 = vmatpush1.msra.mxu0 0.0
    %2161 = vmatprep.subr.mxu0 0.0
    %2162 = vmatpush1.msra.mxu0 0.0
    %2163 = vmatprep.subr.mxu0 0.0
    %2164 = vmatpush1.msra.mxu0 0.0
    %2165 = vmatprep.subr.mxu0 0.0
    %2166 = vmatpush1.msra.mxu0 0.0
    %2167 = vmatprep.subr.mxu0 0.0
    %2168 = vmatpush1.msra.mxu0 0.0
    %2169 = vmatprep.subr.mxu0 0.0
    %2170 = vmatpush1.msra.mxu0 0.0
    %2171 = vmatprep.subr.mxu0 0.0
    %2172 = vmatpush1.msra.mxu0 0.0
    %2173 = vmatprep.subr.mxu0 0.0
    %2174 = vmatpush1.msra.mxu0 0.0
    %2175 = vmatprep.subr.mxu0 0.0
    %2176 = vmatpush1.msra.mxu0 0.0
    %2177 = vmatprep.mubr.f32.mxu0 0.0
    %2178 = vmatmul.mubr.f32.gmra.mrb[0].mxu0 %v2111
    %v2179 = vpop.f32.mrb[0].mxu0
    %v2180 = vadd.f32 0.0, %v2179
    %v2181 = vpop.f32.mrb[0].mxu0
    %2182 = vdwg.mxu0
    %v2183 = vadd.f32 %v2109, %v2180
    %v2184 = vtanh.pop %v2183
    %2185 = vst.msk [vmem:[%s548] sm:$0xff] %vm65, %v2184
    %v2186 = vld [vmem:[%s626] sm:$0xff]
    %v2188 = vsel %vm65, %v2184, 0
    %2190 = vmatprep.subr.mxu0 0.0
    %2191 = vmatpush1.msra.mxu0 %v1484
    %2192 = vmatprep.subr.mxu0 0.0
    %2193 = vmatpush1.msra.mxu0 %v1485
    %2194 = vmatprep.subr.mxu0 0.0
    %2195 = vmatpush1.msra.mxu0 %v1649
    %2196 = vmatprep.subr.mxu0 0.0
    %2197 = vmatpush1.msra.mxu0 0.0
    %2198 = vmatprep.subr.mxu0 0.0
    %2199 = vmatpush1.msra.mxu0 0.0
    %2200 = vmatprep.subr.mxu0 0.0
    %2201 = vmatpush1.msra.mxu0 0.0
    %2202 = vmatprep.subr.mxu0 0.0
    %2203 = vmatpush1.msra.mxu0 0.0
    %2204 = vmatprep.subr.mxu0 0.0
    %2205 = vmatpush1.msra.mxu0 0.0
    %2206 = vmatprep.subr.mxu0 0.0
    %2207 = vmatpush1.msra.mxu0 0.0
    %2208 = vmatprep.subr.mxu0 0.0
    %2209 = vmatpush1.msra.mxu0 0.0
    %2210 = vmatprep.subr.mxu0 0.0
    %2211 = vmatpush1.msra.mxu0 0.0
    %2212 = vmatprep.subr.mxu0 0.0
    %2213 = vmatpush1.msra.mxu0 0.0
    %2214 = vmatprep.subr.mxu0 0.0
    %2215 = vmatpush1.msra.mxu0 0.0
    %2216 = vmatprep.subr.mxu0 0.0
    %2217 = vmatpush1.msra.mxu0 0.0
    %2218 = vmatprep.subr.mxu0 0.0
    %2219 = vmatpush1.msra.mxu0 0.0
    %2220 = vmatprep.subr.mxu0 0.0
    %2221 = vmatpush1.msra.mxu0 0.0
    %2222 = vmatprep.subr.mxu0 0.0
    %2223 = vmatpush1.msra.mxu0 0.0
    %2224 = vmatprep.subr.mxu0 0.0
    %2225 = vmatpush1.msra.mxu0 0.0
    %2226 = vmatprep.subr.mxu0 0.0
    %2227 = vmatpush1.msra.mxu0 0.0
    %2228 = vmatprep.subr.mxu0 0.0
    %2229 = vmatpush1.msra.mxu0 0.0
    %2230 = vmatprep.subr.mxu0 0.0
    %2231 = vmatpush1.msra.mxu0 0.0
    %2232 = vmatprep.subr.mxu0 0.0
    %2233 = vmatpush1.msra.mxu0 0.0
    %2234 = vmatprep.subr.mxu0 0.0
    %2235 = vmatpush1.msra.mxu0 0.0
    %2236 = vmatprep.subr.mxu0 0.0
    %2237 = vmatpush1.msra.mxu0 0.0
    %2238 = vmatprep.subr.mxu0 0.0
    %2239 = vmatpush1.msra.mxu0 0.0
    %2240 = vmatprep.subr.mxu0 0.0
    %2241 = vmatpush1.msra.mxu0 0.0
    %2242 = vmatprep.subr.mxu0 0.0
    %2243 = vmatpush1.msra.mxu0 0.0
    %2244 = vmatprep.subr.mxu0 0.0
    %2245 = vmatpush1.msra.mxu0 0.0
    %2246 = vmatprep.subr.mxu0 0.0
    %2247 = vmatpush1.msra.mxu0 0.0
    %2248 = vmatprep.subr.mxu0 0.0
    %2249 = vmatpush1.msra.mxu0 0.0
    %2250 = vmatprep.subr.mxu0 0.0
    %2251 = vmatpush1.msra.mxu0 0.0
    %2252 = vmatprep.subr.mxu0 0.0
    %2253 = vmatpush1.msra.mxu0 0.0
    %2254 = vmatprep.mubr.f32.mxu0 0.0
    %2255 = vmatmul.mubr.f32.gmra.mrb[0].mxu0 %v2188
    %v2256 = vpop.f32.mrb[0].mxu0
    %v2257 = vadd.f32 0.0, %v2256
    %v2258 = vpop.f32.mrb[0].mxu0
    %2259 = vdwg.mxu0
    %v2260 = vadd.f32 %v2186, %v2257
    %v2261 = vtanh.pop %v2260
    %2262 = vst.msk [vmem:[%s626] sm:$0xff] %vm65, %v2261
    %s2263 = scalar_lea.vmem %s3, 72
    %v2264 = vld [vmem:[%s2263] sm:$0xff]
    %v2265 = vld [vmem:[%s2263 + $0x8] sm:$0xff]
    %v2266 = vld [vmem:[%s2263 + $0x10] sm:$0xf]
    %v2267 = vld [vmem:[#allocation2] sm:$0xff]
    %v2268 = vld [vmem:[#allocation2 + $0x8] sm:$0xff]
    %v2269 = vld [vmem:[#allocation2 + $0x10] sm:$0xff]
    %v2270 = vld [vmem:[#allocation2 + $0x18] sm:$0xff]
    %v2271 = vld [vmem:[#allocation2 + $0x20] sm:$0xff]
    %v2272 = vld [vmem:[#allocation2 + $0x28] sm:$0xff]
    %v2273 = vld [vmem:[#allocation2 + $0x30] sm:$0xff]
    %v2274 = vld [vmem:[#allocation2 + $0x38] sm:$0xff]
    %s2275 = scalar_lea.vmem %s2, 48
    %v2276 = vld [vmem:[%s2275] sm:$0xff]
    %v2277 = vld [vmem:[%s2275 + $0x8] sm:$0xff]
    %v2278 = vld [vmem:[%s2275 + $0x10] sm:$0xf]
    %s2279 = scalar_lea.vmem %s4, 3
    %v2280 = vld [vmem:[%s2279] sm:$0x1]
    %v2282 = vlaneseq
    %v2283 = vshrl.u32 %v2282, 7
    %v2284 = vsub.s32 0, %v2283
    %v2285 = vrot.slane %v2280, %v2284
    %v2288 = vsel %vm65, %v2267, 0
    %v2291 = vsel %vm65, %v2268, 0
    %v2294 = vsel %vm65, %v2269, 0
    %v2297 = vsel %vm65, %v2270, 0
    %v2300 = vsel %vm65, %v2271, 0
    %v2303 = vsel %vm65, %v2272, 0
    %v2306 = vsel %vm65, %v2273, 0
    %v2309 = vsel %vm65, %v2274, 0
    %v2312 = vsel %vm81, %v2278, 0
    %2314 = vmatprep.subr.mxu0 0.0
    %2315 = vmatpush1.msra.mxu0 %v2276
    %2316 = vmatprep.subr.mxu0 0.0
    %2317 = vmatpush1.msra.mxu0 %v2277
    %2318 = vmatprep.subr.mxu0 0.0
    %2319 = vmatpush1.msra.mxu0 %v2312
    %2320 = vmatprep.subr.mxu0 0.0
    %2321 = vmatpush1.msra.mxu0 0.0
    %2322 = vmatprep.subr.mxu0 0.0
    %2323 = vmatpush1.msra.mxu0 0.0
    %2324 = vmatprep.subr.mxu0 0.0
    %2325 = vmatpush1.msra.mxu0 0.0
    %2326 = vmatprep.subr.mxu0 0.0
    %2327 = vmatpush1.msra.mxu0 0.0
    %2328 = vmatprep.subr.mxu0 0.0
    %2329 = vmatpush1.msra.mxu0 0.0
    %2330 = vmatprep.subr.mxu0 0.0
    %2331 = vmatpush1.msra.mxu0 0.0
    %2332 = vmatprep.subr.mxu0 0.0
    %2333 = vmatpush1.msra.mxu0 0.0
    %2334 = vmatprep.subr.mxu0 0.0
    %2335 = vmatpush1.msra.mxu0 0.0
    %2336 = vmatprep.subr.mxu0 0.0
    %2337 = vmatpush1.msra.mxu0 0.0
    %2338 = vmatprep.subr.mxu0 0.0
    %2339 = vmatpush1.msra.mxu0 0.0
    %2340 = vmatprep.subr.mxu0 0.0
    %2341 = vmatpush1.msra.mxu0 0.0
    %2342 = vmatprep.subr.mxu0 0.0
    %2343 = vmatpush1.msra.mxu0 0.0
    %2344 = vmatprep.subr.mxu0 0.0
    %2345 = vmatpush1.msra.mxu0 0.0
    %2346 = vmatprep.subr.mxu0 0.0
    %2347 = vmatpush1.msra.mxu0 0.0
    %2348 = vmatprep.subr.mxu0 0.0
    %2349 = vmatpush1.msra.mxu0 0.0
    %2350 = vmatprep.subr.mxu0 0.0
    %2351 = vmatpush1.msra.mxu0 0.0
    %2352 = vmatprep.subr.mxu0 0.0
    %2353 = vmatpush1.msra.mxu0 0.0
    %2354 = vmatprep.subr.mxu0 0.0
    %2355 = vmatpush1.msra.mxu0 0.0
    %2356 = vmatprep.subr.mxu0 0.0
    %2357 = vmatpush1.msra.mxu0 0.0
    %2358 = vmatprep.subr.mxu0 0.0
    %2359 = vmatpush1.msra.mxu0 0.0
    %2360 = vmatprep.subr.mxu0 0.0
    %2361 = vmatpush1.msra.mxu0 0.0
    %2362 = vmatprep.subr.mxu0 0.0
    %2363 = vmatpush1.msra.mxu0 0.0
    %2364 = vmatprep.subr.mxu0 0.0
    %2365 = vmatpush1.msra.mxu0 0.0
    %2366 = vmatprep.subr.mxu0 0.0
    %2367 = vmatpush1.msra.mxu0 0.0
    %2368 = vmatprep.subr.mxu0 0.0
    %2369 = vmatpush1.msra.mxu0 0.0
    %2370 = vmatprep.subr.mxu0 0.0
    %2371 = vmatpush1.msra.mxu0 0.0
    %2372 = vmatprep.subr.mxu0 0.0
    %2373 = vmatpush1.msra.mxu0 0.0
    %2374 = vmatprep.subr.mxu0 0.0
    %2375 = vmatpush1.msra.mxu0 0.0
    %2376 = vmatprep.subr.mxu0 0.0
    %2377 = vmatpush1.msra.mxu0 0.0
    %2378 = vmatprep.mubr.f32.mxu0 0.0
    %2379 = vmatmul.mubr.f32.gmra.mrb[0].mxu0 %v2288
    %v2380 = vpop.f32.mrb[0].mxu0
    %v2381 = vadd.f32 %v2285, %v2380
    %v2382 = vpop.f32.mrb[0].mxu0
    %2383 = vmatprep.mubr.f32.mxu0 0.0
    %2384 = vmatmul.mubr.f32.gmra.mrb[0].mxu0 %v2291
    %v2385 = vpop.f32.mrb[0].mxu0
    %v2386 = vadd.f32 %v2285, %v2385
    %v2387 = vpop.f32.mrb[0].mxu0
    %2388 = vmatprep.mubr.f32.mxu0 0.0
    %2389 = vmatmul.mubr.f32.gmra.mrb[0].mxu0 %v2294
    %v2390 = vpop.f32.mrb[0].mxu0
    %v2391 = vadd.f32 %v2285, %v2390
    %v2392 = vpop.f32.mrb[0].mxu0
    %2393 = vmatprep.mubr.f32.mxu0 0.0
    %2394 = vmatmul.mubr.f32.gmra.mrb[0].mxu0 %v2297
    %v2395 = vpop.f32.mrb[0].mxu0
    %v2396 = vadd.f32 %v2285, %v2395
    %v2397 = vpop.f32.mrb[0].mxu0
    %2398 = vmatprep.mubr.f32.mxu0 0.0
    %2399 = vmatmul.mubr.f32.gmra.mrb[0].mxu0 %v2300
    %v2400 = vpop.f32.mrb[0].mxu0
    %v2401 = vadd.f32 %v2285, %v2400
    %v2402 = vpop.f32.mrb[0].mxu0
    %2403 = vmatprep.mubr.f32.mxu0 0.0
    %2404 = vmatmul.mubr.f32.gmra.mrb[0].mxu0 %v2303
    %v2405 = vpop.f32.mrb[0].mxu0
    %v2406 = vadd.f32 %v2285, %v2405
    %v2407 = vpop.f32.mrb[0].mxu0
    %2408 = vmatprep.mubr.f32.mxu0 0.0
    %2409 = vmatmul.mubr.f32.gmra.mrb[0].mxu0 %v2306
    %v2410 = vpop.f32.mrb[0].mxu0
    %v2411 = vadd.f32 %v2285, %v2410
    %v2412 = vpop.f32.mrb[0].mxu0
    %2413 = vmatprep.mubr.f32.mxu0 0.0
    %2414 = vmatmul.mubr.f32.gmra.mrb[0].mxu0 %v2309
    %v2415 = vpop.f32.mrb[0].mxu0
    %v2416 = vadd.f32 %v2285, %v2415
    %v2417 = vpop.f32.mrb[0].mxu0
    %2418 = vdwg.mxu0
    %2419 = vst.msk [vmem:[#allocation2] sm:$0xff] %vm65, %v2381
    %2420 = vst.msk [vmem:[#allocation2 + $0x8] sm:$0xff] %vm65, %v2386
    %2421 = vst.msk [vmem:[#allocation2 + $0x10] sm:$0xff] %vm65, %v2391
    %2422 = vst.msk [vmem:[#allocation2 + $0x18] sm:$0xff] %vm65, %v2396
    %2423 = vst.msk [vmem:[#allocation2 + $0x20] sm:$0xff] %vm65, %v2401
    %2424 = vst.msk [vmem:[#allocation2 + $0x28] sm:$0xff] %vm65, %v2406
    %2425 = vst.msk [vmem:[#allocation2 + $0x30] sm:$0xff] %vm65, %v2411
    %2426 = vst.msk [vmem:[#allocation2 + $0x38] sm:$0xff] %vm65, %v2416
    %v2427 = vld [vmem:[#allocation2] sm:$0xff]
    %v2429 = vsel %vm81, %v2266, 0
    %2431 = vmatprep.subr.mxu0 0.0
    %2432 = vmatpush1.msra.mxu0 %v2264
    %2433 = vmatprep.subr.mxu0 0.0
    %2434 = vmatpush1.msra.mxu0 %v2265
    %2435 = vmatprep.subr.mxu0 0.0
    %2436 = vmatpush1.msra.mxu0 %v2429
    %2437 = vmatprep.subr.mxu0 0.0
    %2438 = vmatpush1.msra.mxu0 0.0
    %2439 = vmatprep.subr.mxu0 0.0
    %2440 = vmatpush1.msra.mxu0 0.0
    %2441 = vmatprep.subr.mxu0 0.0
    %2442 = vmatpush1.msra.mxu0 0.0
    %2443 = vmatprep.subr.mxu0 0.0
    %2444 = vmatpush1.msra.mxu0 0.0
    %2445 = vmatprep.subr.mxu0 0.0
    %2446 = vmatpush1.msra.mxu0 0.0
    %2447 = vmatprep.subr.mxu0 0.0
    %2448 = vmatpush1.msra.mxu0 0.0
    %2449 = vmatprep.subr.mxu0 0.0
    %2450 = vmatpush1.msra.mxu0 0.0
    %2451 = vmatprep.subr.mxu0 0.0
    %2452 = vmatpush1.msra.mxu0 0.0
    %2453 = vmatprep.subr.mxu0 0.0
    %2454 = vmatpush1.msra.mxu0 0.0
    %2455 = vmatprep.subr.mxu0 0.0
    %2456 = vmatpush1.msra.mxu0 0.0
    %2457 = vmatprep.subr.mxu0 0.0
    %2458 = vmatpush1.msra.mxu0 0.0
    %2459 = vmatprep.subr.mxu0 0.0
    %2460 = vmatpush1.msra.mxu0 0.0
    %2461 = vmatprep.subr.mxu0 0.0
    %2462 = vmatpush1.msra.mxu0 0.0
    %2463 = vmatprep.subr.mxu0 0.0
    %2464 = vmatpush1.msra.mxu0 0.0
    %2465 = vmatprep.subr.mxu0 0.0
    %2466 = vmatpush1.msra.mxu0 0.0
    %2467 = vmatprep.subr.mxu0 0.0
    %2468 = vmatpush1.msra.mxu0 0.0
    %2469 = vmatprep.subr.mxu0 0.0
    %2470 = vmatpush1.msra.mxu0 0.0
    %2471 = vmatprep.subr.mxu0 0.0
    %2472 = vmatpush1.msra.mxu0 0.0
    %2473 = vmatprep.subr.mxu0 0.0
    %2474 = vmatpush1.msra.mxu0 0.0
    %2475 = vmatprep.subr.mxu0 0.0
    %2476 = vmatpush1.msra.mxu0 0.0
    %2477 = vmatprep.subr.mxu0 0.0
    %2478 = vmatpush1.msra.mxu0 0.0
    %2479 = vmatprep.subr.mxu0 0.0
    %2480 = vmatpush1.msra.mxu0 0.0
    %2481 = vmatprep.subr.mxu0 0.0
    %2482 = vmatpush1.msra.mxu0 0.0
    %2483 = vmatprep.subr.mxu0 0.0
    %2484 = vmatpush1.msra.mxu0 0.0
    %2485 = vmatprep.subr.mxu0 0.0
    %2486 = vmatpush1.msra.mxu0 0.0
    %2487 = vmatprep.subr.mxu0 0.0
    %2488 = vmatpush1.msra.mxu0 0.0
    %2489 = vmatprep.subr.mxu0 0.0
    %2490 = vmatpush1.msra.mxu0 0.0
    %2491 = vmatprep.subr.mxu0 0.0
    %2492 = vmatpush1.msra.mxu0 0.0
    %2493 = vmatprep.subr.mxu0 0.0
    %2494 = vmatpush1.msra.mxu0 0.0
    %2495 = vmatprep.mubr.f32.mxu0 0.0
    %2496 = vmatmul.mubr.f32.gmra.mrb[0].mxu0 %v79
    %v2497 = vpop.f32.mrb[0].mxu0
    %v2498 = vadd.f32 0.0, %v2497
    %v2499 = vpop.f32.mrb[0].mxu0
    %2500 = vdwg.mxu0
    %v2501 = vadd.f32 %v2427, %v2498
    %v2502 = vtanh.pop %v2501
    %2503 = vst.msk [vmem:[#allocation2] sm:$0xff] %vm65, %v2502
    %v2504 = vld [vmem:[%s158] sm:$0xff]
    %v2506 = vsel %vm65, %v2502, 0
    %2508 = vmatprep.subr.mxu0 0.0
    %2509 = vmatpush1.msra.mxu0 %v2264
    %2510 = vmatprep.subr.mxu0 0.0
    %2511 = vmatpush1.msra.mxu0 %v2265
    %2512 = vmatprep.subr.mxu0 0.0
    %2513 = vmatpush1.msra.mxu0 %v2429
    %2514 = vmatprep.subr.mxu0 0.0
    %2515 = vmatpush1.msra.mxu0 0.0
    %2516 = vmatprep.subr.mxu0 0.0
    %2517 = vmatpush1.msra.mxu0 0.0
    %2518 = vmatprep.subr.mxu0 0.0
    %2519 = vmatpush1.msra.mxu0 0.0
    %2520 = vmatprep.subr.mxu0 0.0
    %2521 = vmatpush1.msra.mxu0 0.0
    %2522 = vmatprep.subr.mxu0 0.0
    %2523 = vmatpush1.msra.mxu0 0.0
    %2524 = vmatprep.subr.mxu0 0.0
    %2525 = vmatpush1.msra.mxu0 0.0
    %2526 = vmatprep.subr.mxu0 0.0
    %2527 = vmatpush1.msra.mxu0 0.0
    %2528 = vmatprep.subr.mxu0 0.0
    %2529 = vmatpush1.msra.mxu0 0.0
    %2530 = vmatprep.subr.mxu0 0.0
    %2531 = vmatpush1.msra.mxu0 0.0
    %2532 = vmatprep.subr.mxu0 0.0
    %2533 = vmatpush1.msra.mxu0 0.0
    %2534 = vmatprep.subr.mxu0 0.0
    %2535 = vmatpush1.msra.mxu0 0.0
    %2536 = vmatprep.subr.mxu0 0.0
    %2537 = vmatpush1.msra.mxu0 0.0
    %2538 = vmatprep.subr.mxu0 0.0
    %2539 = vmatpush1.msra.mxu0 0.0
    %2540 = vmatprep.subr.mxu0 0.0
    %2541 = vmatpush1.msra.mxu0 0.0
    %2542 = vmatprep.subr.mxu0 0.0
    %2543 = vmatpush1.msra.mxu0 0.0
    %2544 = vmatprep.subr.mxu0 0.0
    %2545 = vmatpush1.msra.mxu0 0.0
    %2546 = vmatprep.subr.mxu0 0.0
    %2547 = vmatpush1.msra.mxu0 0.0
    %2548 = vmatprep.subr.mxu0 0.0
    %2549 = vmatpush1.msra.mxu0 0.0
    %2550 = vmatprep.subr.mxu0 0.0
    %2551 = vmatpush1.msra.mxu0 0.0
    %2552 = vmatprep.subr.mxu0 0.0
    %2553 = vmatpush1.msra.mxu0 0.0
    %2554 = vmatprep.subr.mxu0 0.0
    %2555 = vmatpush1.msra.mxu0 0.0
    %2556 = vmatprep.subr.mxu0 0.0
    %2557 = vmatpush1.msra.mxu0 0.0
    %2558 = vmatprep.subr.mxu0 0.0
    %2559 = vmatpush1.msra.mxu0 0.0
    %2560 = vmatprep.subr.mxu0 0.0
    %2561 = vmatpush1.msra.mxu0 0.0
    %2562 = vmatprep.subr.mxu0 0.0
    %2563 = vmatpush1.msra.mxu0 0.0
    %2564 = vmatprep.subr.mxu0 0.0
    %2565 = vmatpush1.msra.mxu0 0.0
    %2566 = vmatprep.subr.mxu0 0.0
    %2567 = vmatpush1.msra.mxu0 0.0
    %2568 = vmatprep.subr.mxu0 0.0
    %2569 = vmatpush1.msra.mxu0 0.0
    %2570 = vmatprep.subr.mxu0 0.0
    %2571 = vmatpush1.msra.mxu0 0.0
    %2572 = vmatprep.mubr.f32.mxu0 0.0
    %2573 = vmatmul.mubr.f32.gmra.mrb[0].mxu0 %v2506
    %v2574 = vpop.f32.mrb[0].mxu0
    %v2575 = vadd.f32 0.0, %v2574
    %v2576 = vpop.f32.mrb[0].mxu0
    %2577 = vdwg.mxu0
    %v2578 = vadd.f32 %v2504, %v2575
    %v2579 = vtanh.pop %v2578
    %2580 = vst.msk [vmem:[%s158] sm:$0xff] %vm65, %v2579
    %v2581 = vld [vmem:[%s236] sm:$0xff]
    %v2583 = vsel %vm65, %v2579, 0
    %2585 = vmatprep.subr.mxu0 0.0
    %2586 = vmatpush1.msra.mxu0 %v2264
    %2587 = vmatprep.subr.mxu0 0.0
    %2588 = vmatpush1.msra.mxu0 %v2265
    %2589 = vmatprep.subr.mxu0 0.0
    %2590 = vmatpush1.msra.mxu0 %v2429
    %2591 = vmatprep.subr.mxu0 0.0
    %2592 = vmatpush1.msra.mxu0 0.0
    %2593 = vmatprep.subr.mxu0 0.0
    %2594 = vmatpush1.msra.mxu0 0.0
    %2595 = vmatprep.subr.mxu0 0.0
    %2596 = vmatpush1.msra.mxu0 0.0
    %2597 = vmatprep.subr.mxu0 0.0
    %2598 = vmatpush1.msra.mxu0 0.0
    %2599 = vmatprep.subr.mxu0 0.0
    %2600 = vmatpush1.msra.mxu0 0.0
    %2601 = vmatprep.subr.mxu0 0.0
    %2602 = vmatpush1.msra.mxu0 0.0
    %2603 = vmatprep.subr.mxu0 0.0
    %2604 = vmatpush1.msra.mxu0 0.0
    %2605 = vmatprep.subr.mxu0 0.0
    %2606 = vmatpush1.msra.mxu0 0.0
    %2607 = vmatprep.subr.mxu0 0.0
    %2608 = vmatpush1.msra.mxu0 0.0
    %2609 = vmatprep.subr.mxu0 0.0
    %2610 = vmatpush1.msra.mxu0 0.0
    %2611 = vmatprep.subr.mxu0 0.0
    %2612 = vmatpush1.msra.mxu0 0.0
    %2613 = vmatprep.subr.mxu0 0.0
    %2614 = vmatpush1.msra.mxu0 0.0
    %2615 = vmatprep.subr.mxu0 0.0
    %2616 = vmatpush1.msra.mxu0 0.0
    %2617 = vmatprep.subr.mxu0 0.0
    %2618 = vmatpush1.msra.mxu0 0.0
    %2619 = vmatprep.subr.mxu0 0.0
    %2620 = vmatpush1.msra.mxu0 0.0
    %2621 = vmatprep.subr.mxu0 0.0
    %2622 = vmatpush1.msra.mxu0 0.0
    %2623 = vmatprep.subr.mxu0 0.0
    %2624 = vmatpush1.msra.mxu0 0.0
    %2625 = vmatprep.subr.mxu0 0.0
    %2626 = vmatpush1.msra.mxu0 0.0
    %2627 = vmatprep.subr.mxu0 0.0
    %2628 = vmatpush1.msra.mxu0 0.0
    %2629 = vmatprep.subr.mxu0 0.0
    %2630 = vmatpush1.msra.mxu0 0.0
    %2631 = vmatprep.subr.mxu0 0.0
    %2632 = vmatpush1.msra.mxu0 0.0
    %2633 = vmatprep.subr.mxu0 0.0
    %2634 = vmatpush1.msra.mxu0 0.0
    %2635 = vmatprep.subr.mxu0 0.0
    %2636 = vmatpush1.msra.mxu0 0.0
    %2637 = vmatprep.subr.mxu0 0.0
    %2638 = vmatpush1.msra.mxu0 0.0
    %2639 = vmatprep.subr.mxu0 0.0
    %2640 = vmatpush1.msra.mxu0 0.0
    %2641 = vmatprep.subr.mxu0 0.0
    %2642 = vmatpush1.msra.mxu0 0.0
    %2643 = vmatprep.subr.mxu0 0.0
    %2644 = vmatpush1.msra.mxu0 0.0
    %2645 = vmatprep.subr.mxu0 0.0
    %2646 = vmatpush1.msra.mxu0 0.0
    %2647 = vmatprep.subr.mxu0 0.0
    %2648 = vmatpush1.msra.mxu0 0.0
    %2649 = vmatprep.mubr.f32.mxu0 0.0
    %2650 = vmatmul.mubr.f32.gmra.mrb[0].mxu0 %v2583
    %v2651 = vpop.f32.mrb[0].mxu0
    %v2652 = vadd.f32 0.0, %v2651
    %v2653 = vpop.f32.mrb[0].mxu0
    %2654 = vdwg.mxu0
    %v2655 = vadd.f32 %v2581, %v2652
    %v2656 = vtanh.pop %v2655
    %2657 = vst.msk [vmem:[%s236] sm:$0xff] %vm65, %v2656
    %v2658 = vld [vmem:[%s314] sm:$0xff]
    %v2660 = vsel %vm65, %v2656, 0
    %2662 = vmatprep.subr.mxu0 0.0
    %2663 = vmatpush1.msra.mxu0 %v2264
    %2664 = vmatprep.subr.mxu0 0.0
    %2665 = vmatpush1.msra.mxu0 %v2265
    %2666 = vmatprep.subr.mxu0 0.0
    %2667 = vmatpush1.msra.mxu0 %v2429
    %2668 = vmatprep.subr.mxu0 0.0
    %2669 = vmatpush1.msra.mxu0 0.0
    %2670 = vmatprep.subr.mxu0 0.0
    %2671 = vmatpush1.msra.mxu0 0.0
    %2672 = vmatprep.subr.mxu0 0.0
    %2673 = vmatpush1.msra.mxu0 0.0
    %2674 = vmatprep.subr.mxu0 0.0
    %2675 = vmatpush1.msra.mxu0 0.0
    %2676 = vmatprep.subr.mxu0 0.0
    %2677 = vmatpush1.msra.mxu0 0.0
    %2678 = vmatprep.subr.mxu0 0.0
    %2679 = vmatpush1.msra.mxu0 0.0
    %2680 = vmatprep.subr.mxu0 0.0
    %2681 = vmatpush1.msra.mxu0 0.0
    %2682 = vmatprep.subr.mxu0 0.0
    %2683 = vmatpush1.msra.mxu0 0.0
    %2684 = vmatprep.subr.mxu0 0.0
    %2685 = vmatpush1.msra.mxu0 0.0
    %2686 = vmatprep.subr.mxu0 0.0
    %2687 = vmatpush1.msra.mxu0 0.0
    %2688 = vmatprep.subr.mxu0 0.0
    %2689 = vmatpush1.msra.mxu0 0.0
    %2690 = vmatprep.subr.mxu0 0.0
    %2691 = vmatpush1.msra.mxu0 0.0
    %2692 = vmatprep.subr.mxu0 0.0
    %2693 = vmatpush1.msra.mxu0 0.0
    %2694 = vmatprep.subr.mxu0 0.0
    %2695 = vmatpush1.msra.mxu0 0.0
    %2696 = vmatprep.subr.mxu0 0.0
    %2697 = vmatpush1.msra.mxu0 0.0
    %2698 = vmatprep.subr.mxu0 0.0
    %2699 = vmatpush1.msra.mxu0 0.0
    %2700 = vmatprep.subr.mxu0 0.0
    %2701 = vmatpush1.msra.mxu0 0.0
    %2702 = vmatprep.subr.mxu0 0.0
    %2703 = vmatpush1.msra.mxu0 0.0
    %2704 = vmatprep.subr.mxu0 0.0
    %2705 = vmatpush1.msra.mxu0 0.0
    %2706 = vmatprep.subr.mxu0 0.0
    %2707 = vmatpush1.msra.mxu0 0.0
    %2708 = vmatprep.subr.mxu0 0.0
    %2709 = vmatpush1.msra.mxu0 0.0
    %2710 = vmatprep.subr.mxu0 0.0
    %2711 = vmatpush1.msra.mxu0 0.0
    %2712 = vmatprep.subr.mxu0 0.0
    %2713 = vmatpush1.msra.mxu0 0.0
    %2714 = vmatprep.subr.mxu0 0.0
    %2715 = vmatpush1.msra.mxu0 0.0
    %2716 = vmatprep.subr.mxu0 0.0
    %2717 = vmatpush1.msra.mxu0 0.0
    %2718 = vmatprep.subr.mxu0 0.0
    %2719 = vmatpush1.msra.mxu0 0.0
    %2720 = vmatprep.subr.mxu0 0.0
    %2721 = vmatpush1.msra.mxu0 0.0
    %2722 = vmatprep.subr.mxu0 0.0
    %2723 = vmatpush1.msra.mxu0 0.0
    %2724 = vmatprep.subr.mxu0 0.0
    %2725 = vmatpush1.msra.mxu0 0.0
    %2726 = vmatprep.mubr.f32.mxu0 0.0
    %2727 = vmatmul.mubr.f32.gmra.mrb[0].mxu0 %v2660
    %v2728 = vpop.f32.mrb[0].mxu0
    %v2729 = vadd.f32 0.0, %v2728
    %v2730 = vpop.f32.mrb[0].mxu0
    %2731 = vdwg.mxu0
    %v2732 = vadd.f32 %v2658, %v2729
    %v2733 = vtanh.pop %v2732
    %2734 = vst.msk [vmem:[%s314] sm:$0xff] %vm65, %v2733
    %v2735 = vld [vmem:[%s392] sm:$0xff]
    %v2737 = vsel %vm65, %v2733, 0
    %2739 = vmatprep.subr.mxu0 0.0
    %2740 = vmatpush1.msra.mxu0 %v2264
    %2741 = vmatprep.subr.mxu0 0.0
    %2742 = vmatpush1.msra.mxu0 %v2265
    %2743 = vmatprep.subr.mxu0 0.0
    %2744 = vmatpush1.msra.mxu0 %v2429
    %2745 = vmatprep.subr.mxu0 0.0
    %2746 = vmatpush1.msra.mxu0 0.0
    %2747 = vmatprep.subr.mxu0 0.0
    %2748 = vmatpush1.msra.mxu0 0.0
    %2749 = vmatprep.subr.mxu0 0.0
    %2750 = vmatpush1.msra.mxu0 0.0
    %2751 = vmatprep.subr.mxu0 0.0
    %2752 = vmatpush1.msra.mxu0 0.0
    %2753 = vmatprep.subr.mxu0 0.0
    %2754 = vmatpush1.msra.mxu0 0.0
    %2755 = vmatprep.subr.mxu0 0.0
    %2756 = vmatpush1.msra.mxu0 0.0
    %2757 = vmatprep.subr.mxu0 0.0
    %2758 = vmatpush1.msra.mxu0 0.0
    %2759 = vmatprep.subr.mxu0 0.0
    %2760 = vmatpush1.msra.mxu0 0.0
    %2761 = vmatprep.subr.mxu0 0.0
    %2762 = vmatpush1.msra.mxu0 0.0
    %2763 = vmatprep.subr.mxu0 0.0
    %2764 = vmatpush1.msra.mxu0 0.0
    %2765 = vmatprep.subr.mxu0 0.0
    %2766 = vmatpush1.msra.mxu0 0.0
    %2767 = vmatprep.subr.mxu0 0.0
    %2768 = vmatpush1.msra.mxu0 0.0
    %2769 = vmatprep.subr.mxu0 0.0
    %2770 = vmatpush1.msra.mxu0 0.0
    %2771 = vmatprep.subr.mxu0 0.0
    %2772 = vmatpush1.msra.mxu0 0.0
    %2773 = vmatprep.subr.mxu0 0.0
    %2774 = vmatpush1.msra.mxu0 0.0
    %2775 = vmatprep.subr.mxu0 0.0
    %2776 = vmatpush1.msra.mxu0 0.0
    %2777 = vmatprep.subr.mxu0 0.0
    %2778 = vmatpush1.msra.mxu0 0.0
    %2779 = vmatprep.subr.mxu0 0.0
    %2780 = vmatpush1.msra.mxu0 0.0
    %2781 = vmatprep.subr.mxu0 0.0
    %2782 = vmatpush1.msra.mxu0 0.0
    %2783 = vmatprep.subr.mxu0 0.0
    %2784 = vmatpush1.msra.mxu0 0.0
    %2785 = vmatprep.subr.mxu0 0.0
    %2786 = vmatpush1.msra.mxu0 0.0
    %2787 = vmatprep.subr.mxu0 0.0
    %2788 = vmatpush1.msra.mxu0 0.0
    %2789 = vmatprep.subr.mxu0 0.0
    %2790 = vmatpush1.msra.mxu0 0.0
    %2791 = vmatprep.subr.mxu0 0.0
    %2792 = vmatpush1.msra.mxu0 0.0
    %2793 = vmatprep.subr.mxu0 0.0
    %2794 = vmatpush1.msra.mxu0 0.0
    %2795 = vmatprep.subr.mxu0 0.0
    %2796 = vmatpush1.msra.mxu0 0.0
    %2797 = vmatprep.subr.mxu0 0.0
    %2798 = vmatpush1.msra.mxu0 0.0
    %2799 = vmatprep.subr.mxu0 0.0
    %2800 = vmatpush1.msra.mxu0 0.0
    %2801 = vmatprep.subr.mxu0 0.0
    %2802 = vmatpush1.msra.mxu0 0.0
    %2803 = vmatprep.mubr.f32.mxu0 0.0
    %2804 = vmatmul.mubr.f32.gmra.mrb[0].mxu0 %v2737
    %v2805 = vpop.f32.mrb[0].mxu0
    %v2806 = vadd.f32 0.0, %v2805
    %v2807 = vpop.f32.mrb[0].mxu0
    %2808 = vdwg.mxu0
    %v2809 = vadd.f32 %v2735, %v2806
    %v2810 = vtanh.pop %v2809
    %2811 = vst.msk [vmem:[%s392] sm:$0xff] %vm65, %v2810
    %v2812 = vld [vmem:[%s470] sm:$0xff]
    %v2814 = vsel %vm65, %v2810, 0
    %2816 = vmatprep.subr.mxu0 0.0
    %2817 = vmatpush1.msra.mxu0 %v2264
    %2818 = vmatprep.subr.mxu0 0.0
    %2819 = vmatpush1.msra.mxu0 %v2265
    %2820 = vmatprep.subr.mxu0 0.0
    %2821 = vmatpush1.msra.mxu0 %v2429
    %2822 = vmatprep.subr.mxu0 0.0
    %2823 = vmatpush1.msra.mxu0 0.0
    %2824 = vmatprep.subr.mxu0 0.0
    %2825 = vmatpush1.msra.mxu0 0.0
    %2826 = vmatprep.subr.mxu0 0.0
    %2827 = vmatpush1.msra.mxu0 0.0
    %2828 = vmatprep.subr.mxu0 0.0
    %2829 = vmatpush1.msra.mxu0 0.0
    %2830 = vmatprep.subr.mxu0 0.0
    %2831 = vmatpush1.msra.mxu0 0.0
    %2832 = vmatprep.subr.mxu0 0.0
    %2833 = vmatpush1.msra.mxu0 0.0
    %2834 = vmatprep.subr.mxu0 0.0
    %2835 = vmatpush1.msra.mxu0 0.0
    %2836 = vmatprep.subr.mxu0 0.0
    %2837 = vmatpush1.msra.mxu0 0.0
    %2838 = vmatprep.subr.mxu0 0.0
    %2839 = vmatpush1.msra.mxu0 0.0
    %2840 = vmatprep.subr.mxu0 0.0
    %2841 = vmatpush1.msra.mxu0 0.0
    %2842 = vmatprep.subr.mxu0 0.0
    %2843 = vmatpush1.msra.mxu0 0.0
    %2844 = vmatprep.subr.mxu0 0.0
    %2845 = vmatpush1.msra.mxu0 0.0
    %2846 = vmatprep.subr.mxu0 0.0
    %2847 = vmatpush1.msra.mxu0 0.0
    %2848 = vmatprep.subr.mxu0 0.0
    %2849 = vmatpush1.msra.mxu0 0.0
    %2850 = vmatprep.subr.mxu0 0.0
    %2851 = vmatpush1.msra.mxu0 0.0
    %2852 = vmatprep.subr.mxu0 0.0
    %2853 = vmatpush1.msra.mxu0 0.0
    %2854 = vmatprep.subr.mxu0 0.0
    %2855 = vmatpush1.msra.mxu0 0.0
    %2856 = vmatprep.subr.mxu0 0.0
    %2857 = vmatpush1.msra.mxu0 0.0
    %2858 = vmatprep.subr.mxu0 0.0
    %2859 = vmatpush1.msra.mxu0 0.0
    %2860 = vmatprep.subr.mxu0 0.0
    %2861 = vmatpush1.msra.mxu0 0.0
    %2862 = vmatprep.subr.mxu0 0.0
    %2863 = vmatpush1.msra.mxu0 0.0
    %2864 = vmatprep.subr.mxu0 0.0
    %2865 = vmatpush1.msra.mxu0 0.0
    %2866 = vmatprep.subr.mxu0 0.0
    %2867 = vmatpush1.msra.mxu0 0.0
    %2868 = vmatprep.subr.mxu0 0.0
    %2869 = vmatpush1.msra.mxu0 0.0
    %2870 = vmatprep.subr.mxu0 0.0
    %2871 = vmatpush1.msra.mxu0 0.0
    %2872 = vmatprep.subr.mxu0 0.0
    %2873 = vmatpush1.msra.mxu0 0.0
    %2874 = vmatprep.subr.mxu0 0.0
    %2875 = vmatpush1.msra.mxu0 0.0
    %2876 = vmatprep.subr.mxu0 0.0
    %2877 = vmatpush1.msra.mxu0 0.0
    %2878 = vmatprep.subr.mxu0 0.0
    %2879 = vmatpush1.msra.mxu0 0.0
    %2880 = vmatprep.mubr.f32.mxu0 0.0
    %2881 = vmatmul.mubr.f32.gmra.mrb[0].mxu0 %v2814
    %v2882 = vpop.f32.mrb[0].mxu0
    %v2883 = vadd.f32 0.0, %v2882
    %v2884 = vpop.f32.mrb[0].mxu0
    %2885 = vdwg.mxu0
    %v2886 = vadd.f32 %v2812, %v2883
    %v2887 = vtanh.pop %v2886
    %2888 = vst.msk [vmem:[%s470] sm:$0xff] %vm65, %v2887
    %v2889 = vld [vmem:[%s548] sm:$0xff]
    %v2891 = vsel %vm65, %v2887, 0
    %2893 = vmatprep.subr.mxu0 0.0
    %2894 = vmatpush1.msra.mxu0 %v2264
    %2895 = vmatprep.subr.mxu0 0.0
    %2896 = vmatpush1.msra.mxu0 %v2265
    %2897 = vmatprep.subr.mxu0 0.0
    %2898 = vmatpush1.msra.mxu0 %v2429
    %2899 = vmatprep.subr.mxu0 0.0
    %2900 = vmatpush1.msra.mxu0 0.0
    %2901 = vmatprep.subr.mxu0 0.0
    %2902 = vmatpush1.msra.mxu0 0.0
    %2903 = vmatprep.subr.mxu0 0.0
    %2904 = vmatpush1.msra.mxu0 0.0
    %2905 = vmatprep.subr.mxu0 0.0
    %2906 = vmatpush1.msra.mxu0 0.0
    %2907 = vmatprep.subr.mxu0 0.0
    %2908 = vmatpush1.msra.mxu0 0.0
    %2909 = vmatprep.subr.mxu0 0.0
    %2910 = vmatpush1.msra.mxu0 0.0
    %2911 = vmatprep.subr.mxu0 0.0
    %2912 = vmatpush1.msra.mxu0 0.0
    %2913 = vmatprep.subr.mxu0 0.0
    %2914 = vmatpush1.msra.mxu0 0.0
    %2915 = vmatprep.subr.mxu0 0.0
    %2916 = vmatpush1.msra.mxu0 0.0
    %2917 = vmatprep.subr.mxu0 0.0
    %2918 = vmatpush1.msra.mxu0 0.0
    %2919 = vmatprep.subr.mxu0 0.0
    %2920 = vmatpush1.msra.mxu0 0.0
    %2921 = vmatprep.subr.mxu0 0.0
    %2922 = vmatpush1.msra.mxu0 0.0
    %2923 = vmatprep.subr.mxu0 0.0
    %2924 = vmatpush1.msra.mxu0 0.0
    %2925 = vmatprep.subr.mxu0 0.0
    %2926 = vmatpush1.msra.mxu0 0.0
    %2927 = vmatprep.subr.mxu0 0.0
    %2928 = vmatpush1.msra.mxu0 0.0
    %2929 = vmatprep.subr.mxu0 0.0
    %2930 = vmatpush1.msra.mxu0 0.0
    %2931 = vmatprep.subr.mxu0 0.0
    %2932 = vmatpush1.msra.mxu0 0.0
    %2933 = vmatprep.subr.mxu0 0.0
    %2934 = vmatpush1.msra.mxu0 0.0
    %2935 = vmatprep.subr.mxu0 0.0
    %2936 = vmatpush1.msra.mxu0 0.0
    %2937 = vmatprep.subr.mxu0 0.0
    %2938 = vmatpush1.msra.mxu0 0.0
    %2939 = vmatprep.subr.mxu0 0.0
    %2940 = vmatpush1.msra.mxu0 0.0
    %2941 = vmatprep.subr.mxu0 0.0
    %2942 = vmatpush1.msra.mxu0 0.0
    %2943 = vmatprep.subr.mxu0 0.0
    %2944 = vmatpush1.msra.mxu0 0.0
    %2945 = vmatprep.subr.mxu0 0.0
    %2946 = vmatpush1.msra.mxu0 0.0
    %2947 = vmatprep.subr.mxu0 0.0
    %2948 = vmatpush1.msra.mxu0 0.0
    %2949 = vmatprep.subr.mxu0 0.0
    %2950 = vmatpush1.msra.mxu0 0.0
    %2951 = vmatprep.subr.mxu0 0.0
    %2952 = vmatpush1.msra.mxu0 0.0
    %2953 = vmatprep.subr.mxu0 0.0
    %2954 = vmatpush1.msra.mxu0 0.0
    %2955 = vmatprep.subr.mxu0 0.0
    %2956 = vmatpush1.msra.mxu0 0.0
    %2957 = vmatprep.mubr.f32.mxu0 0.0
    %2958 = vmatmul.mubr.f32.gmra.mrb[0].mxu0 %v2891
    %v2959 = vpop.f32.mrb[0].mxu0
    %v2960 = vadd.f32 0.0, %v2959
    %v2961 = vpop.f32.mrb[0].mxu0
    %2962 = vdwg.mxu0
    %v2963 = vadd.f32 %v2889, %v2960
    %v2964 = vtanh.pop %v2963
    %2965 = vst.msk [vmem:[%s548] sm:$0xff] %vm65, %v2964
    %v2966 = vld [vmem:[%s626] sm:$0xff]
    %v2968 = vsel %vm65, %v2964, 0
    %2970 = vmatprep.subr.mxu0 0.0
    %2971 = vmatpush1.msra.mxu0 %v2264
    %2972 = vmatprep.subr.mxu0 0.0
    %2973 = vmatpush1.msra.mxu0 %v2265
    %2974 = vmatprep.subr.mxu0 0.0
    %2975 = vmatpush1.msra.mxu0 %v2429
    %2976 = vmatprep.subr.mxu0 0.0
    %2977 = vmatpush1.msra.mxu0 0.0
    %2978 = vmatprep.subr.mxu0 0.0
    %2979 = vmatpush1.msra.mxu0 0.0
    %2980 = vmatprep.subr.mxu0 0.0
    %2981 = vmatpush1.msra.mxu0 0.0
    %2982 = vmatprep.subr.mxu0 0.0
    %2983 = vmatpush1.msra.mxu0 0.0
    %2984 = vmatprep.subr.mxu0 0.0
    %2985 = vmatpush1.msra.mxu0 0.0
    %2986 = vmatprep.subr.mxu0 0.0
    %2987 = vmatpush1.msra.mxu0 0.0
    %2988 = vmatprep.subr.mxu0 0.0
    %2989 = vmatpush1.msra.mxu0 0.0
    %2990 = vmatprep.subr.mxu0 0.0
    %2991 = vmatpush1.msra.mxu0 0.0
    %2992 = vmatprep.subr.mxu0 0.0
    %2993 = vmatpush1.msra.mxu0 0.0
    %2994 = vmatprep.subr.mxu0 0.0
    %2995 = vmatpush1.msra.mxu0 0.0
    %2996 = vmatprep.subr.mxu0 0.0
    %2997 = vmatpush1.msra.mxu0 0.0
    %2998 = vmatprep.subr.mxu0 0.0
    %2999 = vmatpush1.msra.mxu0 0.0
    %3000 = vmatprep.subr.mxu0 0.0
    %3001 = vmatpush1.msra.mxu0 0.0
    %3002 = vmatprep.subr.mxu0 0.0
    %3003 = vmatpush1.msra.mxu0 0.0
    %3004 = vmatprep.subr.mxu0 0.0
    %3005 = vmatpush1.msra.mxu0 0.0
    %3006 = vmatprep.subr.mxu0 0.0
    %3007 = vmatpush1.msra.mxu0 0.0
    %3008 = vmatprep.subr.mxu0 0.0
    %3009 = vmatpush1.msra.mxu0 0.0
    %3010 = vmatprep.subr.mxu0 0.0
    %3011 = vmatpush1.msra.mxu0 0.0
    %3012 = vmatprep.subr.mxu0 0.0
    %3013 = vmatpush1.msra.mxu0 0.0
    %3014 = vmatprep.subr.mxu0 0.0
    %3015 = vmatpush1.msra.mxu0 0.0
    %3016 = vmatprep.subr.mxu0 0.0
    %3017 = vmatpush1.msra.mxu0 0.0
    %3018 = vmatprep.subr.mxu0 0.0
    %3019 = vmatpush1.msra.mxu0 0.0
    %3020 = vmatprep.subr.mxu0 0.0
    %3021 = vmatpush1.msra.mxu0 0.0
    %3022 = vmatprep.subr.mxu0 0.0
    %3023 = vmatpush1.msra.mxu0 0.0
    %3024 = vmatprep.subr.mxu0 0.0
    %3025 = vmatpush1.msra.mxu0 0.0
    %3026 = vmatprep.subr.mxu0 0.0
    %3027 = vmatpush1.msra.mxu0 0.0
    %3028 = vmatprep.subr.mxu0 0.0
    %3029 = vmatpush1.msra.mxu0 0.0
    %3030 = vmatprep.subr.mxu0 0.0
    %3031 = vmatpush1.msra.mxu0 0.0
    %3032 = vmatprep.subr.mxu0 0.0
    %3033 = vmatpush1.msra.mxu0 0.0
    %3034 = vmatprep.mubr.f32.mxu0 0.0
    %3035 = vmatmul.mubr.f32.gmra.mrb[0].mxu0 %v2968
    %v3036 = vpop.f32.mrb[0].mxu0
    %v3037 = vadd.f32 0.0, %v3036
    %v3038 = vpop.f32.mrb[0].mxu0
    %3039 = vdwg.mxu0
    %v3040 = vadd.f32 %v2966, %v3037
    %v3041 = vtanh.pop %v3040
    %3042 = vst.msk [vmem:[%s626] sm:$0xff] %vm65, %v3041
    %s3043 = scalar_lea.vmem %s3, 96
    %v3044 = vld [vmem:[%s3043] sm:$0xff]
    %v3045 = vld [vmem:[%s3043 + $0x8] sm:$0xff]
    %v3046 = vld [vmem:[%s3043 + $0x10] sm:$0xf]
    %v3047 = vld [vmem:[#allocation2] sm:$0xff]
    %v3048 = vld [vmem:[#allocation2 + $0x8] sm:$0xff]
    %v3049 = vld [vmem:[#allocation2 + $0x10] sm:$0xff]
    %v3050 = vld [vmem:[#allocation2 + $0x18] sm:$0xff]
    %v3051 = vld [vmem:[#allocation2 + $0x20] sm:$0xff]
    %v3052 = vld [vmem:[#allocation2 + $0x28] sm:$0xff]
    %v3053 = vld [vmem:[#allocation2 + $0x30] sm:$0xff]
    %v3054 = vld [vmem:[#allocation2 + $0x38] sm:$0xff]
    %s3055 = scalar_lea.vmem %s2, 72
    %v3056 = vld [vmem:[%s3055] sm:$0xff]
    %v3057 = vld [vmem:[%s3055 + $0x8] sm:$0xff]
    %v3058 = vld [vmem:[%s3055 + $0x10] sm:$0xf]
    %s3059 = scalar_lea.vmem %s4, 4
    %v3060 = vld [vmem:[%s3059] sm:$0x1]
    %v3062 = vlaneseq
    %v3063 = vshrl.u32 %v3062, 7
    %v3064 = vsub.s32 0, %v3063
    %v3065 = vrot.slane %v3060, %v3064
    %v3068 = vsel %vm65, %v3047, 0
    %v3071 = vsel %vm65, %v3048, 0
    %v3074 = vsel %vm65, %v3049, 0
    %v3077 = vsel %vm65, %v3050, 0
    %v3080 = vsel %vm65, %v3051, 0
    %v3083 = vsel %vm65, %v3052, 0
    %v3086 = vsel %vm65, %v3053, 0
    %v3089 = vsel %vm65, %v3054, 0
    %v3092 = vsel %vm81, %v3058, 0
    %3094 = vmatprep.subr.mxu0 0.0
    %3095 = vmatpush1.msra.mxu0 %v3056
    %3096 = vmatprep.subr.mxu0 0.0
    %3097 = vmatpush1.msra.mxu0 %v3057
    %3098 = vmatprep.subr.mxu0 0.0
    %3099 = vmatpush1.msra.mxu0 %v3092
    %3100 = vmatprep.subr.mxu0 0.0
    %3101 = vmatpush1.msra.mxu0 0.0
    %3102 = vmatprep.subr.mxu0 0.0
    %3103 = vmatpush1.msra.mxu0 0.0
    %3104 = vmatprep.subr.mxu0 0.0
    %3105 = vmatpush1.msra.mxu0 0.0
    %3106 = vmatprep.subr.mxu0 0.0
    %3107 = vmatpush1.msra.mxu0 0.0
    %3108 = vmatprep.subr.mxu0 0.0
    %3109 = vmatpush1.msra.mxu0 0.0
    %3110 = vmatprep.subr.mxu0 0.0
    %3111 = vmatpush1.msra.mxu0 0.0
    %3112 = vmatprep.subr.mxu0 0.0
    %3113 = vmatpush1.msra.mxu0 0.0
    %3114 = vmatprep.subr.mxu0 0.0
    %3115 = vmatpush1.msra.mxu0 0.0
    %3116 = vmatprep.subr.mxu0 0.0
    %3117 = vmatpush1.msra.mxu0 0.0
    %3118 = vmatprep.subr.mxu0 0.0
    %3119 = vmatpush1.msra.mxu0 0.0
    %3120 = vmatprep.subr.mxu0 0.0
    %3121 = vmatpush1.msra.mxu0 0.0
    %3122 = vmatprep.subr.mxu0 0.0
    %3123 = vmatpush1.msra.mxu0 0.0
    %3124 = vmatprep.subr.mxu0 0.0
    %3125 = vmatpush1.msra.mxu0 0.0
    %3126 = vmatprep.subr.mxu0 0.0
    %3127 = vmatpush1.msra.mxu0 0.0
    %3128 = vmatprep.subr.mxu0 0.0
    %3129 = vmatpush1.msra.mxu0 0.0
    %3130 = vmatprep.subr.mxu0 0.0
    %3131 = vmatpush1.msra.mxu0 0.0
    %3132 = vmatprep.subr.mxu0 0.0
    %3133 = vmatpush1.msra.mxu0 0.0
    %3134 = vmatprep.subr.mxu0 0.0
    %3135 = vmatpush1.msra.mxu0 0.0
    %3136 = vmatprep.subr.mxu0 0.0
    %3137 = vmatpush1.msra.mxu0 0.0
    %3138 = vmatprep.subr.mxu0 0.0
    %3139 = vmatpush1.msra.mxu0 0.0
    %3140 = vmatprep.subr.mxu0 0.0
    %3141 = vmatpush1.msra.mxu0 0.0
    %3142 = vmatprep.subr.mxu0 0.0
    %3143 = vmatpush1.msra.mxu0 0.0
    %3144 = vmatprep.subr.mxu0 0.0
    %3145 = vmatpush1.msra.mxu0 0.0
    %3146 = vmatprep.subr.mxu0 0.0
    %3147 = vmatpush1.msra.mxu0 0.0
    %3148 = vmatprep.subr.mxu0 0.0
    %3149 = vmatpush1.msra.mxu0 0.0
    %3150 = vmatprep.subr.mxu0 0.0
    %3151 = vmatpush1.msra.mxu0 0.0
    %3152 = vmatprep.subr.mxu0 0.0
    %3153 = vmatpush1.msra.mxu0 0.0
    %3154 = vmatprep.subr.mxu0 0.0
    %3155 = vmatpush1.msra.mxu0 0.0
    %3156 = vmatprep.subr.mxu0 0.0
    %3157 = vmatpush1.msra.mxu0 0.0
    %3158 = vmatprep.mubr.f32.mxu0 0.0
    %3159 = vmatmul.mubr.f32.gmra.mrb[0].mxu0 %v3068
    %v3160 = vpop.f32.mrb[0].mxu0
    %v3161 = vadd.f32 %v3065, %v3160
    %v3162 = vpop.f32.mrb[0].mxu0
    %3163 = vmatprep.mubr.f32.mxu0 0.0
    %3164 = vmatmul.mubr.f32.gmra.mrb[0].mxu0 %v3071
    %v3165 = vpop.f32.mrb[0].mxu0
    %v3166 = vadd.f32 %v3065, %v3165
    %v3167 = vpop.f32.mrb[0].mxu0
    %3168 = vmatprep.mubr.f32.mxu0 0.0
    %3169 = vmatmul.mubr.f32.gmra.mrb[0].mxu0 %v3074
    %v3170 = vpop.f32.mrb[0].mxu0
    %v3171 = vadd.f32 %v3065, %v3170
    %v3172 = vpop.f32.mrb[0].mxu0
    %3173 = vmatprep.mubr.f32.mxu0 0.0
    %3174 = vmatmul.mubr.f32.gmra.mrb[0].mxu0 %v3077
    %v3175 = vpop.f32.mrb[0].mxu0
    %v3176 = vadd.f32 %v3065, %v3175
    %v3177 = vpop.f32.mrb[0].mxu0
    %3178 = vmatprep.mubr.f32.mxu0 0.0
    %3179 = vmatmul.mubr.f32.gmra.mrb[0].mxu0 %v3080
    %v3180 = vpop.f32.mrb[0].mxu0
    %v3181 = vadd.f32 %v3065, %v3180
    %v3182 = vpop.f32.mrb[0].mxu0
    %3183 = vmatprep.mubr.f32.mxu0 0.0
    %3184 = vmatmul.mubr.f32.gmra.mrb[0].mxu0 %v3083
    %v3185 = vpop.f32.mrb[0].mxu0
    %v3186 = vadd.f32 %v3065, %v3185
    %v3187 = vpop.f32.mrb[0].mxu0
    %3188 = vmatprep.mubr.f32.mxu0 0.0
    %3189 = vmatmul.mubr.f32.gmra.mrb[0].mxu0 %v3086
    %v3190 = vpop.f32.mrb[0].mxu0
    %v3191 = vadd.f32 %v3065, %v3190
    %v3192 = vpop.f32.mrb[0].mxu0
    %3193 = vmatprep.mubr.f32.mxu0 0.0
    %3194 = vmatmul.mubr.f32.gmra.mrb[0].mxu0 %v3089
    %v3195 = vpop.f32.mrb[0].mxu0
    %v3196 = vadd.f32 %v3065, %v3195
    %v3197 = vpop.f32.mrb[0].mxu0
    %3198 = vdwg.mxu0
    %3199 = vst.msk [vmem:[#allocation2] sm:$0xff] %vm65, %v3161
    %3200 = vst.msk [vmem:[#allocation2 + $0x8] sm:$0xff] %vm65, %v3166
    %3201 = vst.msk [vmem:[#allocation2 + $0x10] sm:$0xff] %vm65, %v3171
    %3202 = vst.msk [vmem:[#allocation2 + $0x18] sm:$0xff] %vm65, %v3176
    %3203 = vst.msk [vmem:[#allocation2 + $0x20] sm:$0xff] %vm65, %v3181
    %3204 = vst.msk [vmem:[#allocation2 + $0x28] sm:$0xff] %vm65, %v3186
    %3205 = vst.msk [vmem:[#allocation2 + $0x30] sm:$0xff] %vm65, %v3191
    %3206 = vst.msk [vmem:[#allocation2 + $0x38] sm:$0xff] %vm65, %v3196
    %v3207 = vld [vmem:[#allocation2] sm:$0xff]
    %v3209 = vsel %vm81, %v3046, 0
    %3211 = vmatprep.subr.mxu0 0.0
    %3212 = vmatpush1.msra.mxu0 %v3044
    %3213 = vmatprep.subr.mxu0 0.0
    %3214 = vmatpush1.msra.mxu0 %v3045
    %3215 = vmatprep.subr.mxu0 0.0
    %3216 = vmatpush1.msra.mxu0 %v3209
    %3217 = vmatprep.subr.mxu0 0.0
    %3218 = vmatpush1.msra.mxu0 0.0
    %3219 = vmatprep.subr.mxu0 0.0
    %3220 = vmatpush1.msra.mxu0 0.0
    %3221 = vmatprep.subr.mxu0 0.0
    %3222 = vmatpush1.msra.mxu0 0.0
    %3223 = vmatprep.subr.mxu0 0.0
    %3224 = vmatpush1.msra.mxu0 0.0
    %3225 = vmatprep.subr.mxu0 0.0
    %3226 = vmatpush1.msra.mxu0 0.0
    %3227 = vmatprep.subr.mxu0 0.0
    %3228 = vmatpush1.msra.mxu0 0.0
    %3229 = vmatprep.subr.mxu0 0.0
    %3230 = vmatpush1.msra.mxu0 0.0
    %3231 = vmatprep.subr.mxu0 0.0
    %3232 = vmatpush1.msra.mxu0 0.0
    %3233 = vmatprep.subr.mxu0 0.0
    %3234 = vmatpush1.msra.mxu0 0.0
    %3235 = vmatprep.subr.mxu0 0.0
    %3236 = vmatpush1.msra.mxu0 0.0
    %3237 = vmatprep.subr.mxu0 0.0
    %3238 = vmatpush1.msra.mxu0 0.0
    %3239 = vmatprep.subr.mxu0 0.0
    %3240 = vmatpush1.msra.mxu0 0.0
    %3241 = vmatprep.subr.mxu0 0.0
    %3242 = vmatpush1.msra.mxu0 0.0
    %3243 = vmatprep.subr.mxu0 0.0
    %3244 = vmatpush1.msra.mxu0 0.0
    %3245 = vmatprep.subr.mxu0 0.0
    %3246 = vmatpush1.msra.mxu0 0.0
    %3247 = vmatprep.subr.mxu0 0.0
    %3248 = vmatpush1.msra.mxu0 0.0
    %3249 = vmatprep.subr.mxu0 0.0
    %3250 = vmatpush1.msra.mxu0 0.0
    %3251 = vmatprep.subr.mxu0 0.0
    %3252 = vmatpush1.msra.mxu0 0.0
    %3253 = vmatprep.subr.mxu0 0.0
    %3254 = vmatpush1.msra.mxu0 0.0
    %3255 = vmatprep.subr.mxu0 0.0
    %3256 = vmatpush1.msra.mxu0 0.0
    %3257 = vmatprep.subr.mxu0 0.0
    %3258 = vmatpush1.msra.mxu0 0.0
    %3259 = vmatprep.subr.mxu0 0.0
    %3260 = vmatpush1.msra.mxu0 0.0
    %3261 = vmatprep.subr.mxu0 0.0
    %3262 = vmatpush1.msra.mxu0 0.0
    %3263 = vmatprep.subr.mxu0 0.0
    %3264 = vmatpush1.msra.mxu0 0.0
    %3265 = vmatprep.subr.mxu0 0.0
    %3266 = vmatpush1.msra.mxu0 0.0
    %3267 = vmatprep.subr.mxu0 0.0
    %3268 = vmatpush1.msra.mxu0 0.0
    %3269 = vmatprep.subr.mxu0 0.0
    %3270 = vmatpush1.msra.mxu0 0.0
    %3271 = vmatprep.subr.mxu0 0.0
    %3272 = vmatpush1.msra.mxu0 0.0
    %3273 = vmatprep.subr.mxu0 0.0
    %3274 = vmatpush1.msra.mxu0 0.0
    %3275 = vmatprep.mubr.f32.mxu0 0.0
    %3276 = vmatmul.mubr.f32.gmra.mrb[0].mxu0 %v79
    %v3277 = vpop.f32.mrb[0].mxu0
    %v3278 = vadd.f32 0.0, %v3277
    %v3279 = vpop.f32.mrb[0].mxu0
    %3280 = vdwg.mxu0
    %v3281 = vadd.f32 %v3207, %v3278
    %v3282 = vtanh.pop %v3281
    %3283 = vst.msk [vmem:[#allocation2] sm:$0xff] %vm65, %v3282
    %v3284 = vld [vmem:[%s158] sm:$0xff]
    %v3286 = vsel %vm65, %v3282, 0
    %3288 = vmatprep.subr.mxu0 0.0
    %3289 = vmatpush1.msra.mxu0 %v3044
    %3290 = vmatprep.subr.mxu0 0.0
    %3291 = vmatpush1.msra.mxu0 %v3045
    %3292 = vmatprep.subr.mxu0 0.0
    %3293 = vmatpush1.msra.mxu0 %v3209
    %3294 = vmatprep.subr.mxu0 0.0
    %3295 = vmatpush1.msra.mxu0 0.0
    %3296 = vmatprep.subr.mxu0 0.0
    %3297 = vmatpush1.msra.mxu0 0.0
    %3298 = vmatprep.subr.mxu0 0.0
    %3299 = vmatpush1.msra.mxu0 0.0
    %3300 = vmatprep.subr.mxu0 0.0
    %3301 = vmatpush1.msra.mxu0 0.0
    %3302 = vmatprep.subr.mxu0 0.0
    %3303 = vmatpush1.msra.mxu0 0.0
    %3304 = vmatprep.subr.mxu0 0.0
    %3305 = vmatpush1.msra.mxu0 0.0
    %3306 = vmatprep.subr.mxu0 0.0
    %3307 = vmatpush1.msra.mxu0 0.0
    %3308 = vmatprep.subr.mxu0 0.0
    %3309 = vmatpush1.msra.mxu0 0.0
    %3310 = vmatprep.subr.mxu0 0.0
    %3311 = vmatpush1.msra.mxu0 0.0
    %3312 = vmatprep.subr.mxu0 0.0
    %3313 = vmatpush1.msra.mxu0 0.0
    %3314 = vmatprep.subr.mxu0 0.0
    %3315 = vmatpush1.msra.mxu0 0.0
    %3316 = vmatprep.subr.mxu0 0.0
    %3317 = vmatpush1.msra.mxu0 0.0
    %3318 = vmatprep.subr.mxu0 0.0
    %3319 = vmatpush1.msra.mxu0 0.0
    %3320 = vmatprep.subr.mxu0 0.0
    %3321 = vmatpush1.msra.mxu0 0.0
    %3322 = vmatprep.subr.mxu0 0.0
    %3323 = vmatpush1.msra.mxu0 0.0
    %3324 = vmatprep.subr.mxu0 0.0
    %3325 = vmatpush1.msra.mxu0 0.0
    %3326 = vmatprep.subr.mxu0 0.0
    %3327 = vmatpush1.msra.mxu0 0.0
    %3328 = vmatprep.subr.mxu0 0.0
    %3329 = vmatpush1.msra.mxu0 0.0
    %3330 = vmatprep.subr.mxu0 0.0
    %3331 = vmatpush1.msra.mxu0 0.0
    %3332 = vmatprep.subr.mxu0 0.0
    %3333 = vmatpush1.msra.mxu0 0.0
    %3334 = vmatprep.subr.mxu0 0.0
    %3335 = vmatpush1.msra.mxu0 0.0
    %3336 = vmatprep.subr.mxu0 0.0
    %3337 = vmatpush1.msra.mxu0 0.0
    %3338 = vmatprep.subr.mxu0 0.0
    %3339 = vmatpush1.msra.mxu0 0.0
    %3340 = vmatprep.subr.mxu0 0.0
    %3341 = vmatpush1.msra.mxu0 0.0
    %3342 = vmatprep.subr.mxu0 0.0
    %3343 = vmatpush1.msra.mxu0 0.0
    %3344 = vmatprep.subr.mxu0 0.0
    %3345 = vmatpush1.msra.mxu0 0.0
    %3346 = vmatprep.subr.mxu0 0.0
    %3347 = vmatpush1.msra.mxu0 0.0
    %3348 = vmatprep.subr.mxu0 0.0
    %3349 = vmatpush1.msra.mxu0 0.0
    %3350 = vmatprep.subr.mxu0 0.0
    %3351 = vmatpush1.msra.mxu0 0.0
    %3352 = vmatprep.mubr.f32.mxu0 0.0
    %3353 = vmatmul.mubr.f32.gmra.mrb[0].mxu0 %v3286
    %v3354 = vpop.f32.mrb[0].mxu0
    %v3355 = vadd.f32 0.0, %v3354
    %v3356 = vpop.f32.mrb[0].mxu0
    %3357 = vdwg.mxu0
    %v3358 = vadd.f32 %v3284, %v3355
    %v3359 = vtanh.pop %v3358
    %3360 = vst.msk [vmem:[%s158] sm:$0xff] %vm65, %v3359
    %v3361 = vld [vmem:[%s236] sm:$0xff]
    %v3363 = vsel %vm65, %v3359, 0
    %3365 = vmatprep.subr.mxu0 0.0
    %3366 = vmatpush1.msra.mxu0 %v3044
    %3367 = vmatprep.subr.mxu0 0.0
    %3368 = vmatpush1.msra.mxu0 %v3045
    %3369 = vmatprep.subr.mxu0 0.0
    %3370 = vmatpush1.msra.mxu0 %v3209
    %3371 = vmatprep.subr.mxu0 0.0
    %3372 = vmatpush1.msra.mxu0 0.0
    %3373 = vmatprep.subr.mxu0 0.0
    %3374 = vmatpush1.msra.mxu0 0.0
    %3375 = vmatprep.subr.mxu0 0.0
    %3376 = vmatpush1.msra.mxu0 0.0
    %3377 = vmatprep.subr.mxu0 0.0
    %3378 = vmatpush1.msra.mxu0 0.0
    %3379 = vmatprep.subr.mxu0 0.0
    %3380 = vmatpush1.msra.mxu0 0.0
    %3381 = vmatprep.subr.mxu0 0.0
    %3382 = vmatpush1.msra.mxu0 0.0
    %3383 = vmatprep.subr.mxu0 0.0
    %3384 = vmatpush1.msra.mxu0 0.0
    %3385 = vmatprep.subr.mxu0 0.0
    %3386 = vmatpush1.msra.mxu0 0.0
    %3387 = vmatprep.subr.mxu0 0.0
    %3388 = vmatpush1.msra.mxu0 0.0
    %3389 = vmatprep.subr.mxu0 0.0
    %3390 = vmatpush1.msra.mxu0 0.0
    %3391 = vmatprep.subr.mxu0 0.0
    %3392 = vmatpush1.msra.mxu0 0.0
    %3393 = vmatprep.subr.mxu0 0.0
    %3394 = vmatpush1.msra.mxu0 0.0
    %3395 = vmatprep.subr.mxu0 0.0
    %3396 = vmatpush1.msra.mxu0 0.0
    %3397 = vmatprep.subr.mxu0 0.0
    %3398 = vmatpush1.msra.mxu0 0.0
    %3399 = vmatprep.subr.mxu0 0.0
    %3400 = vmatpush1.msra.mxu0 0.0
    %3401 = vmatprep.subr.mxu0 0.0
    %3402 = vmatpush1.msra.mxu0 0.0
    %3403 = vmatprep.subr.mxu0 0.0
    %3404 = vmatpush1.msra.mxu0 0.0
    %3405 = vmatprep.subr.mxu0 0.0
    %3406 = vmatpush1.msra.mxu0 0.0
    %3407 = vmatprep.subr.mxu0 0.0
    %3408 = vmatpush1.msra.mxu0 0.0
    %3409 = vmatprep.subr.mxu0 0.0
    %3410 = vmatpush1.msra.mxu0 0.0
    %3411 = vmatprep.subr.mxu0 0.0
    %3412 = vmatpush1.msra.mxu0 0.0
    %3413 = vmatprep.subr.mxu0 0.0
    %3414 = vmatpush1.msra.mxu0 0.0
    %3415 = vmatprep.subr.mxu0 0.0
    %3416 = vmatpush1.msra.mxu0 0.0
    %3417 = vmatprep.subr.mxu0 0.0
    %3418 = vmatpush1.msra.mxu0 0.0
    %3419 = vmatprep.subr.mxu0 0.0
    %3420 = vmatpush1.msra.mxu0 0.0
    %3421 = vmatprep.subr.mxu0 0.0
    %3422 = vmatpush1.msra.mxu0 0.0
    %3423 = vmatprep.subr.mxu0 0.0
    %3424 = vmatpush1.msra.mxu0 0.0
    %3425 = vmatprep.subr.mxu0 0.0
    %3426 = vmatpush1.msra.mxu0 0.0
    %3427 = vmatprep.subr.mxu0 0.0
    %3428 = vmatpush1.msra.mxu0 0.0
    %3429 = vmatprep.mubr.f32.mxu0 0.0
    %3430 = vmatmul.mubr.f32.gmra.mrb[0].mxu0 %v3363
    %v3431 = vpop.f32.mrb[0].mxu0
    %v3432 = vadd.f32 0.0, %v3431
    %v3433 = vpop.f32.mrb[0].mxu0
    %3434 = vdwg.mxu0
    %v3435 = vadd.f32 %v3361, %v3432
    %v3436 = vtanh.pop %v3435
    %3437 = vst.msk [vmem:[%s236] sm:$0xff] %vm65, %v3436
    %v3438 = vld [vmem:[%s314] sm:$0xff]
    %v3440 = vsel %vm65, %v3436, 0
    %3442 = vmatprep.subr.mxu0 0.0
    %3443 = vmatpush1.msra.mxu0 %v3044
    %3444 = vmatprep.subr.mxu0 0.0
    %3445 = vmatpush1.msra.mxu0 %v3045
    %3446 = vmatprep.subr.mxu0 0.0
    %3447 = vmatpush1.msra.mxu0 %v3209
    %3448 = vmatprep.subr.mxu0 0.0
    %3449 = vmatpush1.msra.mxu0 0.0
    %3450 = vmatprep.subr.mxu0 0.0
    %3451 = vmatpush1.msra.mxu0 0.0
    %3452 = vmatprep.subr.mxu0 0.0
    %3453 = vmatpush1.msra.mxu0 0.0
    %3454 = vmatprep.subr.mxu0 0.0
    %3455 = vmatpush1.msra.mxu0 0.0
    %3456 = vmatprep.subr.mxu0 0.0
    %3457 = vmatpush1.msra.mxu0 0.0
    %3458 = vmatprep.subr.mxu0 0.0
    %3459 = vmatpush1.msra.mxu0 0.0
    %3460 = vmatprep.subr.mxu0 0.0
    %3461 = vmatpush1.msra.mxu0 0.0
    %3462 = vmatprep.subr.mxu0 0.0
    %3463 = vmatpush1.msra.mxu0 0.0
    %3464 = vmatprep.subr.mxu0 0.0
    %3465 = vmatpush1.msra.mxu0 0.0
    %3466 = vmatprep.subr.mxu0 0.0
    %3467 = vmatpush1.msra.mxu0 0.0
    %3468 = vmatprep.subr.mxu0 0.0
    %3469 = vmatpush1.msra.mxu0 0.0
    %3470 = vmatprep.subr.mxu0 0.0
    %3471 = vmatpush1.msra.mxu0 0.0
    %3472 = vmatprep.subr.mxu0 0.0
    %3473 = vmatpush1.msra.mxu0 0.0
    %3474 = vmatprep.subr.mxu0 0.0
    %3475 = vmatpush1.msra.mxu0 0.0
    %3476 = vmatprep.subr.mxu0 0.0
    %3477 = vmatpush1.msra.mxu0 0.0
    %3478 = vmatprep.subr.mxu0 0.0
    %3479 = vmatpush1.msra.mxu0 0.0
    %3480 = vmatprep.subr.mxu0 0.0
    %3481 = vmatpush1.msra.mxu0 0.0
    %3482 = vmatprep.subr.mxu0 0.0
    %3483 = vmatpush1.msra.mxu0 0.0
    %3484 = vmatprep.subr.mxu0 0.0
    %3485 = vmatpush1.msra.mxu0 0.0
    %3486 = vmatprep.subr.mxu0 0.0
    %3487 = vmatpush1.msra.mxu0 0.0
    %3488 = vmatprep.subr.mxu0 0.0
    %3489 = vmatpush1.msra.mxu0 0.0
    %3490 = vmatprep.subr.mxu0 0.0
    %3491 = vmatpush1.msra.mxu0 0.0
    %3492 = vmatprep.subr.mxu0 0.0
    %3493 = vmatpush1.msra.mxu0 0.0
    %3494 = vmatprep.subr.mxu0 0.0
    %3495 = vmatpush1.msra.mxu0 0.0
    %3496 = vmatprep.subr.mxu0 0.0
    %3497 = vmatpush1.msra.mxu0 0.0
    %3498 = vmatprep.subr.mxu0 0.0
    %3499 = vmatpush1.msra.mxu0 0.0
    %3500 = vmatprep.subr.mxu0 0.0
    %3501 = vmatpush1.msra.mxu0 0.0
    %3502 = vmatprep.subr.mxu0 0.0
    %3503 = vmatpush1.msra.mxu0 0.0
    %3504 = vmatprep.subr.mxu0 0.0
    %3505 = vmatpush1.msra.mxu0 0.0
    %3506 = vmatprep.mubr.f32.mxu0 0.0
    %3507 = vmatmul.mubr.f32.gmra.mrb[0].mxu0 %v3440
    %v3508 = vpop.f32.mrb[0].mxu0
    %v3509 = vadd.f32 0.0, %v3508
    %v3510 = vpop.f32.mrb[0].mxu0
    %3511 = vdwg.mxu0
    %v3512 = vadd.f32 %v3438, %v3509
    %v3513 = vtanh.pop %v3512
    %3514 = vst.msk [vmem:[%s314] sm:$0xff] %vm65, %v3513
    %v3515 = vld [vmem:[%s392] sm:$0xff]
    %v3517 = vsel %vm65, %v3513, 0
    %3519 = vmatprep.subr.mxu0 0.0
    %3520 = vmatpush1.msra.mxu0 %v3044
    %3521 = vmatprep.subr.mxu0 0.0
    %3522 = vmatpush1.msra.mxu0 %v3045
    %3523 = vmatprep.subr.mxu0 0.0
    %3524 = vmatpush1.msra.mxu0 %v3209
    %3525 = vmatprep.subr.mxu0 0.0
    %3526 = vmatpush1.msra.mxu0 0.0
    %3527 = vmatprep.subr.mxu0 0.0
    %3528 = vmatpush1.msra.mxu0 0.0
    %3529 = vmatprep.subr.mxu0 0.0
    %3530 = vmatpush1.msra.mxu0 0.0
    %3531 = vmatprep.subr.mxu0 0.0
    %3532 = vmatpush1.msra.mxu0 0.0
    %3533 = vmatprep.subr.mxu0 0.0
    %3534 = vmatpush1.msra.mxu0 0.0
    %3535 = vmatprep.subr.mxu0 0.0
    %3536 = vmatpush1.msra.mxu0 0.0
    %3537 = vmatprep.subr.mxu0 0.0
    %3538 = vmatpush1.msra.mxu0 0.0
    %3539 = vmatprep.subr.mxu0 0.0
    %3540 = vmatpush1.msra.mxu0 0.0
    %3541 = vmatprep.subr.mxu0 0.0
    %3542 = vmatpush1.msra.mxu0 0.0
    %3543 = vmatprep.subr.mxu0 0.0
    %3544 = vmatpush1.msra.mxu0 0.0
    %3545 = vmatprep.subr.mxu0 0.0
    %3546 = vmatpush1.msra.mxu0 0.0
    %3547 = vmatprep.subr.mxu0 0.0
    %3548 = vmatpush1.msra.mxu0 0.0
    %3549 = vmatprep.subr.mxu0 0.0
    %3550 = vmatpush1.msra.mxu0 0.0
    %3551 = vmatprep.subr.mxu0 0.0
    %3552 = vmatpush1.msra.mxu0 0.0
    %3553 = vmatprep.subr.mxu0 0.0
    %3554 = vmatpush1.msra.mxu0 0.0
    %3555 = vmatprep.subr.mxu0 0.0
    %3556 = vmatpush1.msra.mxu0 0.0
    %3557 = vmatprep.subr.mxu0 0.0
    %3558 = vmatpush1.msra.mxu0 0.0
    %3559 = vmatprep.subr.mxu0 0.0
    %3560 = vmatpush1.msra.mxu0 0.0
    %3561 = vmatprep.subr.mxu0 0.0
    %3562 = vmatpush1.msra.mxu0 0.0
    %3563 = vmatprep.subr.mxu0 0.0
    %3564 = vmatpush1.msra.mxu0 0.0
    %3565 = vmatprep.subr.mxu0 0.0
    %3566 = vmatpush1.msra.mxu0 0.0
    %3567 = vmatprep.subr.mxu0 0.0
    %3568 = vmatpush1.msra.mxu0 0.0
    %3569 = vmatprep.subr.mxu0 0.0
    %3570 = vmatpush1.msra.mxu0 0.0
    %3571 = vmatprep.subr.mxu0 0.0
    %3572 = vmatpush1.msra.mxu0 0.0
    %3573 = vmatprep.subr.mxu0 0.0
    %3574 = vmatpush1.msra.mxu0 0.0
    %3575 = vmatprep.subr.mxu0 0.0
    %3576 = vmatpush1.msra.mxu0 0.0
    %3577 = vmatprep.subr.mxu0 0.0
    %3578 = vmatpush1.msra.mxu0 0.0
    %3579 = vmatprep.subr.mxu0 0.0
    %3580 = vmatpush1.msra.mxu0 0.0
    %3581 = vmatprep.subr.mxu0 0.0
    %3582 = vmatpush1.msra.mxu0 0.0
    %3583 = vmatprep.mubr.f32.mxu0 0.0
    %3584 = vmatmul.mubr.f32.gmra.mrb[0].mxu0 %v3517
    %v3585 = vpop.f32.mrb[0].mxu0
    %v3586 = vadd.f32 0.0, %v3585
    %v3587 = vpop.f32.mrb[0].mxu0
    %3588 = vdwg.mxu0
    %v3589 = vadd.f32 %v3515, %v3586
    %v3590 = vtanh.pop %v3589
    %3591 = vst.msk [vmem:[%s392] sm:$0xff] %vm65, %v3590
    %v3592 = vld [vmem:[%s470] sm:$0xff]
    %v3594 = vsel %vm65, %v3590, 0
    %3596 = vmatprep.subr.mxu0 0.0
    %3597 = vmatpush1.msra.mxu0 %v3044
    %3598 = vmatprep.subr.mxu0 0.0
    %3599 = vmatpush1.msra.mxu0 %v3045
    %3600 = vmatprep.subr.mxu0 0.0
    %3601 = vmatpush1.msra.mxu0 %v3209
    %3602 = vmatprep.subr.mxu0 0.0
    %3603 = vmatpush1.msra.mxu0 0.0
    %3604 = vmatprep.subr.mxu0 0.0
    %3605 = vmatpush1.msra.mxu0 0.0
    %3606 = vmatprep.subr.mxu0 0.0
    %3607 = vmatpush1.msra.mxu0 0.0
    %3608 = vmatprep.subr.mxu0 0.0
    %3609 = vmatpush1.msra.mxu0 0.0
    %3610 = vmatprep.subr.mxu0 0.0
    %3611 = vmatpush1.msra.mxu0 0.0
    %3612 = vmatprep.subr.mxu0 0.0
    %3613 = vmatpush1.msra.mxu0 0.0
    %3614 = vmatprep.subr.mxu0 0.0
    %3615 = vmatpush1.msra.mxu0 0.0
    %3616 = vmatprep.subr.mxu0 0.0
    %3617 = vmatpush1.msra.mxu0 0.0
    %3618 = vmatprep.subr.mxu0 0.0
    %3619 = vmatpush1.msra.mxu0 0.0
    %3620 = vmatprep.subr.mxu0 0.0
    %3621 = vmatpush1.msra.mxu0 0.0
    %3622 = vmatprep.subr.mxu0 0.0
    %3623 = vmatpush1.msra.mxu0 0.0
    %3624 = vmatprep.subr.mxu0 0.0
    %3625 = vmatpush1.msra.mxu0 0.0
    %3626 = vmatprep.subr.mxu0 0.0
    %3627 = vmatpush1.msra.mxu0 0.0
    %3628 = vmatprep.subr.mxu0 0.0
    %3629 = vmatpush1.msra.mxu0 0.0
    %3630 = vmatprep.subr.mxu0 0.0
    %3631 = vmatpush1.msra.mxu0 0.0
    %3632 = vmatprep.subr.mxu0 0.0
    %3633 = vmatpush1.msra.mxu0 0.0
    %3634 = vmatprep.subr.mxu0 0.0
    %3635 = vmatpush1.msra.mxu0 0.0
    %3636 = vmatprep.subr.mxu0 0.0
    %3637 = vmatpush1.msra.mxu0 0.0
    %3638 = vmatprep.subr.mxu0 0.0
    %3639 = vmatpush1.msra.mxu0 0.0
    %3640 = vmatprep.subr.mxu0 0.0
    %3641 = vmatpush1.msra.mxu0 0.0
    %3642 = vmatprep.subr.mxu0 0.0
    %3643 = vmatpush1.msra.mxu0 0.0
    %3644 = vmatprep.subr.mxu0 0.0
    %3645 = vmatpush1.msra.mxu0 0.0
    %3646 = vmatprep.subr.mxu0 0.0
    %3647 = vmatpush1.msra.mxu0 0.0
    %3648 = vmatprep.subr.mxu0 0.0
    %3649 = vmatpush1.msra.mxu0 0.0
    %3650 = vmatprep.subr.mxu0 0.0
    %3651 = vmatpush1.msra.mxu0 0.0
    %3652 = vmatprep.subr.mxu0 0.0
    %3653 = vmatpush1.msra.mxu0 0.0
    %3654 = vmatprep.subr.mxu0 0.0
    %3655 = vmatpush1.msra.mxu0 0.0
    %3656 = vmatprep.subr.mxu0 0.0
    %3657 = vmatpush1.msra.mxu0 0.0
    %3658 = vmatprep.subr.mxu0 0.0
    %3659 = vmatpush1.msra.mxu0 0.0
    %3660 = vmatprep.mubr.f32.mxu0 0.0
    %3661 = vmatmul.mubr.f32.gmra.mrb[0].mxu0 %v3594
    %v3662 = vpop.f32.mrb[0].mxu0
    %v3663 = vadd.f32 0.0, %v3662
    %v3664 = vpop.f32.mrb[0].mxu0
    %3665 = vdwg.mxu0
    %v3666 = vadd.f32 %v3592, %v3663
    %v3667 = vtanh.pop %v3666
    %3668 = vst.msk [vmem:[%s470] sm:$0xff] %vm65, %v3667
    %v3669 = vld [vmem:[%s548] sm:$0xff]
    %v3671 = vsel %vm65, %v3667, 0
    %3673 = vmatprep.subr.mxu0 0.0
    %3674 = vmatpush1.msra.mxu0 %v3044
    %3675 = vmatprep.subr.mxu0 0.0
    %3676 = vmatpush1.msra.mxu0 %v3045
    %3677 = vmatprep.subr.mxu0 0.0
    %3678 = vmatpush1.msra.mxu0 %v3209
    %3679 = vmatprep.subr.mxu0 0.0
    %3680 = vmatpush1.msra.mxu0 0.0
    %3681 = vmatprep.subr.mxu0 0.0
    %3682 = vmatpush1.msra.mxu0 0.0
    %3683 = vmatprep.subr.mxu0 0.0
    %3684 = vmatpush1.msra.mxu0 0.0
    %3685 = vmatprep.subr.mxu0 0.0
    %3686 = vmatpush1.msra.mxu0 0.0
    %3687 = vmatprep.subr.mxu0 0.0
    %3688 = vmatpush1.msra.mxu0 0.0
    %3689 = vmatprep.subr.mxu0 0.0
    %3690 = vmatpush1.msra.mxu0 0.0
    %3691 = vmatprep.subr.mxu0 0.0
    %3692 = vmatpush1.msra.mxu0 0.0
    %3693 = vmatprep.subr.mxu0 0.0
    %3694 = vmatpush1.msra.mxu0 0.0
    %3695 = vmatprep.subr.mxu0 0.0
    %3696 = vmatpush1.msra.mxu0 0.0
    %3697 = vmatprep.subr.mxu0 0.0
    %3698 = vmatpush1.msra.mxu0 0.0
    %3699 = vmatprep.subr.mxu0 0.0
    %3700 = vmatpush1.msra.mxu0 0.0
    %3701 = vmatprep.subr.mxu0 0.0
    %3702 = vmatpush1.msra.mxu0 0.0
    %3703 = vmatprep.subr.mxu0 0.0
    %3704 = vmatpush1.msra.mxu0 0.0
    %3705 = vmatprep.subr.mxu0 0.0
    %3706 = vmatpush1.msra.mxu0 0.0
    %3707 = vmatprep.subr.mxu0 0.0
    %3708 = vmatpush1.msra.mxu0 0.0
    %3709 = vmatprep.subr.mxu0 0.0
    %3710 = vmatpush1.msra.mxu0 0.0
    %3711 = vmatprep.subr.mxu0 0.0
    %3712 = vmatpush1.msra.mxu0 0.0
    %3713 = vmatprep.subr.mxu0 0.0
    %3714 = vmatpush1.msra.mxu0 0.0
    %3715 = vmatprep.subr.mxu0 0.0
    %3716 = vmatpush1.msra.mxu0 0.0
    %3717 = vmatprep.subr.mxu0 0.0
    %3718 = vmatpush1.msra.mxu0 0.0
    %3719 = vmatprep.subr.mxu0 0.0
    %3720 = vmatpush1.msra.mxu0 0.0
    %3721 = vmatprep.subr.mxu0 0.0
    %3722 = vmatpush1.msra.mxu0 0.0
    %3723 = vmatprep.subr.mxu0 0.0
    %3724 = vmatpush1.msra.mxu0 0.0
    %3725 = vmatprep.subr.mxu0 0.0
    %3726 = vmatpush1.msra.mxu0 0.0
    %3727 = vmatprep.subr.mxu0 0.0
    %3728 = vmatpush1.msra.mxu0 0.0
    %3729 = vmatprep.subr.mxu0 0.0
    %3730 = vmatpush1.msra.mxu0 0.0
    %3731 = vmatprep.subr.mxu0 0.0
    %3732 = vmatpush1.msra.mxu0 0.0
    %3733 = vmatprep.subr.mxu0 0.0
    %3734 = vmatpush1.msra.mxu0 0.0
    %3735 = vmatprep.subr.mxu0 0.0
    %3736 = vmatpush1.msra.mxu0 0.0
    %3737 = vmatprep.mubr.f32.mxu0 0.0
    %3738 = vmatmul.mubr.f32.gmra.mrb[0].mxu0 %v3671
    %v3739 = vpop.f32.mrb[0].mxu0
    %v3740 = vadd.f32 0.0, %v3739
    %v3741 = vpop.f32.mrb[0].mxu0
    %3742 = vdwg.mxu0
    %v3743 = vadd.f32 %v3669, %v3740
    %v3744 = vtanh.pop %v3743
    %3745 = vst.msk [vmem:[%s548] sm:$0xff] %vm65, %v3744
    %v3746 = vld [vmem:[%s626] sm:$0xff]
    %v3748 = vsel %vm65, %v3744, 0
    %3750 = vmatprep.subr.mxu0 0.0
    %3751 = vmatpush1.msra.mxu0 %v3044
    %3752 = vmatprep.subr.mxu0 0.0
    %3753 = vmatpush1.msra.mxu0 %v3045
    %3754 = vmatprep.subr.mxu0 0.0
    %3755 = vmatpush1.msra.mxu0 %v3209
    %3756 = vmatprep.subr.mxu0 0.0
    %3757 = vmatpush1.msra.mxu0 0.0
    %3758 = vmatprep.subr.mxu0 0.0
    %3759 = vmatpush1.msra.mxu0 0.0
    %3760 = vmatprep.subr.mxu0 0.0
    %3761 = vmatpush1.msra.mxu0 0.0
    %3762 = vmatprep.subr.mxu0 0.0
    %3763 = vmatpush1.msra.mxu0 0.0
    %3764 = vmatprep.subr.mxu0 0.0
    %3765 = vmatpush1.msra.mxu0 0.0
    %3766 = vmatprep.subr.mxu0 0.0
    %3767 = vmatpush1.msra.mxu0 0.0
    %3768 = vmatprep.subr.mxu0 0.0
    %3769 = vmatpush1.msra.mxu0 0.0
    %3770 = vmatprep.subr.mxu0 0.0
    %3771 = vmatpush1.msra.mxu0 0.0
    %3772 = vmatprep.subr.mxu0 0.0
    %3773 = vmatpush1.msra.mxu0 0.0
    %3774 = vmatprep.subr.mxu0 0.0
    %3775 = vmatpush1.msra.mxu0 0.0
    %3776 = vmatprep.subr.mxu0 0.0
    %3777 = vmatpush1.msra.mxu0 0.0
    %3778 = vmatprep.subr.mxu0 0.0
    %3779 = vmatpush1.msra.mxu0 0.0
    %3780 = vmatprep.subr.mxu0 0.0
    %3781 = vmatpush1.msra.mxu0 0.0
    %3782 = vmatprep.subr.mxu0 0.0
    %3783 = vmatpush1.msra.mxu0 0.0
    %3784 = vmatprep.subr.mxu0 0.0
    %3785 = vmatpush1.msra.mxu0 0.0
    %3786 = vmatprep.subr.mxu0 0.0
    %3787 = vmatpush1.msra.mxu0 0.0
    %3788 = vmatprep.subr.mxu0 0.0
    %3789 = vmatpush1.msra.mxu0 0.0
    %3790 = vmatprep.subr.mxu0 0.0
    %3791 = vmatpush1.msra.mxu0 0.0
    %3792 = vmatprep.subr.mxu0 0.0
    %3793 = vmatpush1.msra.mxu0 0.0
    %3794 = vmatprep.subr.mxu0 0.0
    %3795 = vmatpush1.msra.mxu0 0.0
    %3796 = vmatprep.subr.mxu0 0.0
    %3797 = vmatpush1.msra.mxu0 0.0
    %3798 = vmatprep.subr.mxu0 0.0
    %3799 = vmatpush1.msra.mxu0 0.0
    %3800 = vmatprep.subr.mxu0 0.0
    %3801 = vmatpush1.msra.mxu0 0.0
    %3802 = vmatprep.subr.mxu0 0.0
    %3803 = vmatpush1.msra.mxu0 0.0
    %3804 = vmatprep.subr.mxu0 0.0
    %3805 = vmatpush1.msra.mxu0 0.0
    %3806 = vmatprep.subr.mxu0 0.0
    %3807 = vmatpush1.msra.mxu0 0.0
    %3808 = vmatprep.subr.mxu0 0.0
    %3809 = vmatpush1.msra.mxu0 0.0
    %3810 = vmatprep.subr.mxu0 0.0
    %3811 = vmatpush1.msra.mxu0 0.0
    %3812 = vmatprep.subr.mxu0 0.0
    %3813 = vmatpush1.msra.mxu0 0.0
    %3814 = vmatprep.mubr.f32.mxu0 0.0
    %3815 = vmatmul.mubr.f32.gmra.mrb[0].mxu0 %v3748
    %v3816 = vpop.f32.mrb[0].mxu0
    %v3817 = vadd.f32 0.0, %v3816
    %v3818 = vpop.f32.mrb[0].mxu0
    %3819 = vdwg.mxu0
    %v3820 = vadd.f32 %v3746, %v3817
    %v3821 = vtanh.pop %v3820
    %3822 = vst.msk [vmem:[%s626] sm:$0xff] %vm65, %v3821
    %v3823 = vld [vmem:[#allocation2 + $0x38] sm:$0xff]
    %v3824 = vld [vmem:[%s5] sm:$0xff]
    %v3825 = vld [vmem:[%s5 + $0x8] sm:$0xff]
    %v3826 = vld [vmem:[%s5 + $0x10] sm:$0xf]
    %v3827 = vld [vmem:[%s6] sm:$0x1]
    %v3829 = vlaneseq
    %v3830 = vshrl.u32 %v3829, 7
    %v3831 = vsub.s32 0, %v3830
    %v3832 = vrot.slane %v3827, %v3831
    %v3835 = vsel %vm65, %v3823, 0
    %v3838 = vsel %vm81, %v3826, 0
    %3840 = vmatprep.subr.mxu0 0.0
    %3841 = vmatpush1.msra.mxu0 %v3824
    %3842 = vmatprep.subr.mxu0 0.0
    %3843 = vmatpush1.msra.mxu0 %v3825
    %3844 = vmatprep.subr.mxu0 0.0
    %3845 = vmatpush1.msra.mxu0 %v3838
    %3846 = vmatprep.subr.mxu0 0.0
    %3847 = vmatpush1.msra.mxu0 0.0
    %3848 = vmatprep.subr.mxu0 0.0
    %3849 = vmatpush1.msra.mxu0 0.0
    %3850 = vmatprep.subr.mxu0 0.0
    %3851 = vmatpush1.msra.mxu0 0.0
    %3852 = vmatprep.subr.mxu0 0.0
    %3853 = vmatpush1.msra.mxu0 0.0
    %3854 = vmatprep.subr.mxu0 0.0
    %3855 = vmatpush1.msra.mxu0 0.0
    %3856 = vmatprep.subr.mxu0 0.0
    %3857 = vmatpush1.msra.mxu0 0.0
    %3858 = vmatprep.subr.mxu0 0.0
    %3859 = vmatpush1.msra.mxu0 0.0
    %3860 = vmatprep.subr.mxu0 0.0
    %3861 = vmatpush1.msra.mxu0 0.0
    %3862 = vmatprep.subr.mxu0 0.0
    %3863 = vmatpush1.msra.mxu0 0.0
    %3864 = vmatprep.subr.mxu0 0.0
    %3865 = vmatpush1.msra.mxu0 0.0
    %3866 = vmatprep.subr.mxu0 0.0
    %3867 = vmatpush1.msra.mxu0 0.0
    %3868 = vmatprep.subr.mxu0 0.0
    %3869 = vmatpush1.msra.mxu0 0.0
    %3870 = vmatprep.subr.mxu0 0.0
    %3871 = vmatpush1.msra.mxu0 0.0
    %3872 = vmatprep.subr.mxu0 0.0
    %3873 = vmatpush1.msra.mxu0 0.0
    %3874 = vmatprep.subr.mxu0 0.0
    %3875 = vmatpush1.msra.mxu0 0.0
    %3876 = vmatprep.subr.mxu0 0.0
    %3877 = vmatpush1.msra.mxu0 0.0
    %3878 = vmatprep.subr.mxu0 0.0
    %3879 = vmatpush1.msra.mxu0 0.0
    %3880 = vmatprep.subr.mxu0 0.0
    %3881 = vmatpush1.msra.mxu0 0.0
    %3882 = vmatprep.subr.mxu0 0.0
    %3883 = vmatpush1.msra.mxu0 0.0
    %3884 = vmatprep.subr.mxu0 0.0
    %3885 = vmatpush1.msra.mxu0 0.0
    %3886 = vmatprep.subr.mxu0 0.0
    %3887 = vmatpush1.msra.mxu0 0.0
    %3888 = vmatprep.subr.mxu0 0.0
    %3889 = vmatpush1.msra.mxu0 0.0
    %3890 = vmatprep.subr.mxu0 0.0
    %3891 = vmatpush1.msra.mxu0 0.0
    %3892 = vmatprep.subr.mxu0 0.0
    %3893 = vmatpush1.msra.mxu0 0.0
    %3894 = vmatprep.subr.mxu0 0.0
    %3895 = vmatpush1.msra.mxu0 0.0
    %3896 = vmatprep.subr.mxu0 0.0
    %3897 = vmatpush1.msra.mxu0 0.0
    %3898 = vmatprep.subr.mxu0 0.0
    %3899 = vmatpush1.msra.mxu0 0.0
    %3900 = vmatprep.subr.mxu0 0.0
    %3901 = vmatpush1.msra.mxu0 0.0
    %3902 = vmatprep.subr.mxu0 0.0
    %3903 = vmatpush1.msra.mxu0 0.0
    %3904 = vmatprep.mubr.f32.mxu0 0.0
    %3905 = vmatmul.mubr.f32.gmra.mrb[0].mxu0 %v3835
    %v3906 = vpop.f32.mrb[0].mxu0
    %v3907 = vadd.f32 %v3832, %v3906
    %v3908 = vpop.f32.mrb[0].mxu0
    %3909 = vdwg.mxu0
    %3910 = vst [vmem:[#allocation3] sm:$0xff] %v3907
    // Predicated region
    $region30: #{tpu_custom_call.1} parent=1 // pred_check
      _
    $region31: #{tpu_custom_call.1} parent=1 // pred_check_branch
      %3912 = sbr.rel (0) target = $region33
    $region32: #{tpu_custom_call.1} parent=1 // pred_region
      %s3914 = ssub.s32 128, 128
      %3915 = vsyncadd [#allocation4], %s3914
      %s3917 = sshll.u32 [#allocation3], 4
      %s3918 = int_to_ptr.vmem [resolvable:$true] %s3917
      %3920 = dma.vmem_to_hbm [thread:$0]  %s3918, 128, %s7, [#allocation4]
    $region33: #{tpu_custom_call.1} parent=1 // pred_fallthru
      _
    // Predicated region
    $region34: #{tpu_custom_call.1} parent=1 // pred_check
      _
    $region35: #{tpu_custom_call.1} parent=1 // pred_check_branch
      %3922 = sbr.rel (0) target = $region37
    $region36: #{tpu_custom_call.1} parent=1 // pred_region
      %3923 = dma.done [#allocation4], 128
    $region37: #{tpu_custom_call.1} parent=1 // pred_fallthru
      _
    %3924 = vsyncpa [#allocation4], 1

</llo_original>
